<compile_context>
chip_gen: v7x
topology: tpu7x:2x2x1
jax: 0.10.0
libtpu: 0.0.40
codegen_flags: <defaults>
</compile_context>

<pallas_src>
import functools

import jax
import jax.numpy as jnp
import numpy as np
from jax import lax
from jax.experimental import pallas as pl
from jax.experimental.pallas import tpu as pltpu


# --------------------------------------------------------------------------
# Kernel
# --------------------------------------------------------------------------
def _residual_block_kernel(Bt, H, W, Cin, Cout, has_proj, *refs):
    f32 = jnp.float32
    bf16 = jnp.bfloat16
    M = Bt * H
    WCi = W * Cin
    WCo = W * Cout

    if has_proj:
        (x_ref, wc1_ref, s1_ref, b1_ref, wc2_ref, s2_ref, b2_ref,
         pool_ref, fc1_ref, fc2w_ref, wsc_ref, ss_ref, bs_ref,
         o_ref, xrow_scr, yrow_scr) = refs
    else:
        (x_ref, wc1_ref, s1_ref, b1_ref, wc2_ref, s2_ref, b2_ref,
         pool_ref, fc1_ref, fc2w_ref,
         o_ref, xrow_scr, yrow_scr) = refs

    # H-padding lives in the scratch border rows (0 and H+1); only these two
    # rows are re-zeroed per step (cheap, megacore-safe).  Interior rows are
    # fully overwritten below before being read.
    xrow_scr[:, 0:1, :] = jnp.zeros((Bt, 1, WCi), f32)
    xrow_scr[:, H + 1:H + 2, :] = jnp.zeros((Bt, 1, WCi), f32)
    yrow_scr[:, 0:1, :] = jnp.zeros((Bt, 1, WCo), f32)
    yrow_scr[:, H + 1:H + 2, :] = jnp.zeros((Bt, 1, WCo), f32)

    def band_conv3(scr, w_ref, wc_in):
        # 3x3 conv as three accumulated MXU matmuls (one per kernel row kh).
        # The banded RHS w_ref[kh] folds the kw taps and the zero padding
        # along W into the K = W*C contraction; the kh shift is just a
        # sublane offset of the scratch view.  No fat-K concatenate, no
        # (M, 3*W*C) temporary.
        acc = None
        for kh in range(3):
            lhs = scr[:, kh:kh + H, :].reshape(M, wc_in).astype(bf16)
            part = jnp.dot(lhs, w_ref[kh], preferred_element_type=f32)
            acc = part if acc is None else acc + part
        return acc

    # ---- conv1 (3x3, stride 1, pad 1) + bn1 + relu ----
    x_val = x_ref[...]                                  # bf16 if has_proj else f32
    xrow_scr[:, 1:H + 1, :] = x_val.astype(f32)
    acc1 = band_conv3(xrow_scr, wc1_ref, WCi)           # (M, W*Cout) f32
    out1 = jnp.maximum(acc1 * s1_ref[...] + b1_ref[...], 0.0)

    # ---- conv2 (3x3, pad 1) + bn2 ----
    yrow_scr[:, 1:H + 1, :] = out1.reshape(Bt, H, WCo)
    acc2 = band_conv3(yrow_scr, wc2_ref, WCo)
    out2 = acc2 * s2_ref[...] + b2_ref[...]             # (M, W*Cout) f32
    out2_3d = out2.reshape(Bt, H, WCo)

    # ---- squeeze & excitation (bf16 MXU operands, f32 accumulation) ----
    rowsum = jnp.sum(out2_3d, axis=1)                   # (Bt, W*Cout) f32
    pooled = jnp.dot(rowsum.astype(bf16), pool_ref[...],
                     preferred_element_type=f32)        # (Bt, Cout) = mean over H*W
    hid = jnp.maximum(jnp.dot(pooled.astype(bf16), fc1_ref[...],
                              preferred_element_type=f32), 0.0)
    # fc2 columns are pre-replicated W times (lane layout is w-major,
    # c-minor), so this matmul directly yields the lane-dense gate: the old
    # gate-expand matmul is gone.
    gate_d = jax.nn.sigmoid(jnp.dot(hid.astype(bf16), fc2w_ref[...],
                                    preferred_element_type=f32))  # (Bt, W*Cout)
    out_se = out2_3d * gate_d[:, None, :]

    # ---- shortcut (identity, or 1x1 conv + BN as block-diagonal matmul) ----
    if has_proj:
        sc = jnp.dot(x_val.astype(bf16).reshape(M, WCi), wsc_ref[...],
                     preferred_element_type=f32)
        sc = (sc * ss_ref[...] + bs_ref[...]).reshape(Bt, H, WCo)
    else:
        sc = x_val.astype(f32)                          # Cin == Cout, f32 residual

    o_ref[...] = jnp.maximum(out_se + sc, 0.0).astype(o_ref.dtype)


# --------------------------------------------------------------------------
# One-time weight / layout preparation (hoisted off the per-forward path)
# --------------------------------------------------------------------------
def _band_conv_weight(w_hwio, W):
    """(3, 3, Cin, Cout) HWIO conv weight -> (3, W*Cin, W*Cout) per-kh banded mats.

    Within band kh, row (v, ci) x col (w, co) is w[kh, v - w + 1, ci, co] when
    the kw tap lies in [0, 3), else 0: the kw taps and the zero padding along
    W are folded into the K = W*Cin contraction.
    """
    KH, KW, Cin, Cout = w_hwio.shape
    v = jnp.arange(W)[:, None]
    w = jnp.arange(W)[None, :]
    kw = v - w + (KW // 2)
    valid = (kw >= 0) & (kw < KW)
    blocks = w_hwio[:, jnp.clip(kw, 0, KW - 1)]          # (KH, W, W, Cin, Cout)
    blocks = blocks * valid[None, :, :, None, None].astype(w_hwio.dtype)
    return blocks.transpose(0, 1, 3, 2, 4).reshape(KH, W * Cin, W * Cout)


def _block_diag_weight(w_io, W):
    """(Cin, Cout) 1x1-conv weight -> (W*Cin, W*Cout) block-diagonal matrix."""
    Cin, Cout = w_io.shape
    eye = jnp.eye(W, dtype=w_io.dtype)
    return (eye[:, None, :, None] * w_io[None, :, None, :]).reshape(W * Cin, W * Cout)


def _tile_lanes(v, W):
    """(C,) per-channel vector -> (1, W*C) row-dense broadcast (f32)."""
    return jnp.tile(jnp.asarray(v, jnp.float32).reshape(-1), W).reshape(1, -1)


def prepare_residual_block_params(params, H, W):
    """Build all kernel-ready constants once per parameter set.

    params: w1/w2 (3,3,Ci,Co) HWIO, folded-BN s1/b1/s2/b2 (Co,), SE fc1 (Co,Cr),
    fc2 (Cr,Co), has_proj; if has_proj: ws (Ci,Co), folded-BN ss/bs (Co,).
    """
    bf16 = jnp.bfloat16
    Cout = params["w1"].shape[-1]
    has_proj = bool(params["has_proj"])
    eye = jnp.eye(Cout, dtype=jnp.float32)
    prep = dict(
        has_proj=has_proj,
        wc1=_band_conv_weight(params["w1"], W).astype(bf16),   # (3, W*Ci, W*Co)
        wc2=_band_conv_weight(params["w2"], W).astype(bf16),   # (3, W*Co, W*Co)
        s1=_tile_lanes(params["s1"], W), b1=_tile_lanes(params["b1"], W),
        s2=_tile_lanes(params["s2"], W), b2=_tile_lanes(params["b2"], W),
        pool=(jnp.tile(eye, (W, 1)) / float(H * W)).astype(bf16),   # (W*Co, Co)
        fc1=params["fc1"].astype(bf16),                             # (Co, Cr)
        fc2w=jnp.tile(params["fc2"], (1, W)).astype(bf16),          # (Cr, W*Co)
    )
    if has_proj:
        prep["wsc"] = _block_diag_weight(params["ws"], W).astype(bf16)
        prep["ss"] = _tile_lanes(params["ss"], W)
        prep["bs"] = _tile_lanes(params["bs"], W)
    return prep


def _pick_batch_tile(B, H, target_m=256):
    """Largest batch tile with Bt*H <= ~one MXU height (256) so per-conv RHS
    weight-load passes are amortized over a full array of LHS rows; when
    B*H > 256 this naturally leaves >= 2 'parallel' steps for v7x's 2 TCs."""
    best = 1
    for bt in range(1, B + 1):
        if B % bt == 0 and bt * H <= max(target_m, H):
            best = bt
    return best


def residual_block_pallas(x_nchw, prep, batch_tile=None):
    """Eval-mode ResidualBlock forward: (B, Cin, H, W) f32 -> (B, Cout, H, W)."""
    # TODO(synk): stride > 1 (downsampling residual blocks) not implemented.
    B, Cin, H, W = x_nchw.shape
    has_proj = prep["has_proj"]
    Cout = prep["wc1"].shape[-1] // W
    if not has_proj and Cin != Cout:
        raise ValueError("identity shortcut requires in_ch == out_ch")

    Bt = _pick_batch_tile(B, H) if batch_tile is None else batch_tile
    if B % Bt != 0:
        raise ValueError(f"batch {B} not divisible by batch tile {Bt}")

    WCi, WCo = W * Cin, W * Cout

    # Row-dense input: (B, H, W*Cin) keeps W*Cin on the 128-lane axis (single,
    # dense DMA per tile).  With a projection shortcut x only feeds bf16
    # matmuls, so DMA it in bf16; keep f32 for the identity-residual case.
    x_rows = jnp.transpose(x_nchw, (0, 2, 3, 1)).reshape(B, H, WCi)
    if has_proj:
        x_rows = x_rows.astype(jnp.bfloat16)

    kernel = functools.partial(_residual_block_kernel,
                               Bt, H, W, Cin, Cout, has_proj)

    def _full(a):
        n = a.ndim
        return pl.BlockSpec(a.shape, lambda b: (0,) * n)

    args = [x_rows, prep["wc1"], prep["s1"], prep["b1"],
            prep["wc2"], prep["s2"], prep["b2"],
            prep["pool"], prep["fc1"], prep["fc2w"]]
    in_specs = [pl.BlockSpec((Bt, H, WCi), lambda b: (b, 0, 0))]
    in_specs += [_full(a) for a in args[1:]]
    if has_proj:
        extra = [prep["wsc"], prep["ss"], prep["bs"]]
        args += extra
        in_specs += [_full(a) for a in extra]

    grid_spec = pltpu.PrefetchScalarGridSpec(
        num_scalar_prefetch=0,
        grid=(B // Bt,),
        in_specs=in_specs,
        out_specs=pl.BlockSpec((Bt, H, WCo), lambda b: (b, 0, 0)),
        scratch_shapes=[
            pltpu.VMEM((Bt, H + 2, WCi), jnp.float32),   # H-padded x rows
            pltpu.VMEM((Bt, H + 2, WCo), jnp.float32),   # H-padded conv1-out rows
        ],
    )

    out_rows = pl.pallas_call(
        kernel,
        out_shape=jax.ShapeDtypeStruct((B, H, WCo), x_nchw.dtype),
        grid_spec=grid_spec,
        compiler_params=pltpu.CompilerParams(dimension_semantics=("parallel",)),
    )(*args)

    return jnp.transpose(out_rows.reshape(B, H, W, Cout), (0, 3, 1, 2))


# --------------------------------------------------------------------------
# Pure-JAX reference (for sanity check)
# --------------------------------------------------------------------------
def _ref_forward(x_nchw, p):
    x = jnp.transpose(x_nchw, (0, 2, 3, 1))  # NHWC

    def conv3(v, w):
        return lax.conv_general_dilated(v, w, (1, 1), "SAME",
                                        dimension_numbers=("NHWC", "HWIO", "NHWC"))

    out = conv3(x, p["w1"])
    out = jnp.maximum(out * p["s1"] + p["b1"], 0.0)
    out = conv3(out, p["w2"])
    out = out * p["s2"] + p["b2"]
    pooled = out.mean(axis=(1, 2))                                   # (B, Cout)
    gate = jax.nn.sigmoid(jnp.maximum(pooled @ p["fc1"], 0.0) @ p["fc2"])
    out = out * gate[:, None, None, :]
    if p["has_proj"]:
        sc = jnp.einsum("bhwc,cd->bhwd", x, p["ws"])
        sc = sc * p["ss"] + p["bs"]
    else:
        sc = x
    out = jnp.maximum(out + sc, 0.0)
    return jnp.transpose(out, (0, 3, 1, 2))


def _fold_bn(gamma, beta, mean, var, eps=1e-5):
    scale = gamma / jnp.sqrt(var + eps)
    bias = beta - mean * scale
    return scale, bias


if __name__ == "__main__":
    # stride=1, in_ch != out_ch -> projection shortcut; W*Cin = 128 lane-dense.
    B, Cin, Cout, H, W = 16, 8, 16, 16, 16
    Cr = Cout // 4                          # SE reduction = 4

    key = jax.random.PRNGKey(0)
    ks = jax.random.split(key, 20)

    def bn_params(k0, k1, k2, k3, c):
        gamma = jax.random.uniform(k0, (c,), minval=0.5, maxval=1.5)
        beta = jax.random.normal(k1, (c,)) * 0.1
        mean = jax.random.normal(k2, (c,)) * 0.1
        var = jax.random.uniform(k3, (c,), minval=0.5, maxval=1.5)
        return _fold_bn(gamma, beta, mean, var)

    w1 = jax.random.normal(ks[0], (3, 3, Cin, Cout), jnp.float32) * 0.1
    s1, b1 = bn_params(ks[1], ks[2], ks[3], ks[4], Cout)
    w2 = jax.random.normal(ks[5], (3, 3, Cout, Cout), jnp.float32) * 0.1
    s2, b2 = bn_params(ks[6], ks[7], ks[8], ks[9], Cout)
    fc1 = jax.random.normal(ks[10], (Cout, Cr), jnp.float32) * 0.2
    fc2 = jax.random.normal(ks[11], (Cr, Cout), jnp.float32) * 0.2
    ws = jax.random.normal(ks[12], (Cin, Cout), jnp.float32) * 0.1
    ss, bs = bn_params(ks[13], ks[14], ks[15], ks[16], Cout)

    params = dict(w1=w1, s1=s1, b1=b1, w2=w2, s2=s2, b2=b2,
                  fc1=fc1, fc2=fc2, ws=ws, ss=ss, bs=bs, has_proj=True)

    x = jax.random.normal(ks[17], (B, Cin, H, W), jnp.float32)

    # One-time weight prep, then forward.
    prep = prepare_residual_block_params(params, H, W)
    ref = jax.block_until_ready(_ref_forward(x, params))

    # Auto batch tile (M = Bt*H -> 256, single step here).
    out = jax.block_until_ready(residual_block_pallas(x, prep))
    np.testing.assert_allclose(np.asarray(out), np.asarray(ref),
                               rtol=2e-2, atol=2e-2)

    # Multi-step grid path (batch tile override) for index-map coverage.
    out_tiled = jax.block_until_ready(residual_block_pallas(x, prep, batch_tile=4))
    np.testing.assert_allclose(np.asarray(out_tiled), np.asarray(ref),
                               rtol=2e-2, atol=2e-2)

    print("KERNEL_OK")
</pallas_src>

<mosaic_0001>
module attributes {stable_mosaic.version = 11 : i64} {
  func.func @_residual_block_kernel(%arg0: i32, %arg1: memref<16x16x128xbf16, #tpu.memory_space<vmem>>, %arg2: memref<3x128x256xbf16, #tpu.memory_space<vmem>>, %arg3: memref<1x256xf32, #tpu.memory_space<vmem>>, %arg4: memref<1x256xf32, #tpu.memory_space<vmem>>, %arg5: memref<3x256x256xbf16, #tpu.memory_space<vmem>>, %arg6: memref<1x256xf32, #tpu.memory_space<vmem>>, %arg7: memref<1x256xf32, #tpu.memory_space<vmem>>, %arg8: memref<256x16xbf16, #tpu.memory_space<vmem>>, %arg9: memref<16x4xbf16, #tpu.memory_space<vmem>>, %arg10: memref<4x256xbf16, #tpu.memory_space<vmem>>, %arg11: memref<128x256xbf16, #tpu.memory_space<vmem>>, %arg12: memref<1x256xf32, #tpu.memory_space<vmem>>, %arg13: memref<1x256xf32, #tpu.memory_space<vmem>>, %arg14: memref<16x16x256xf32, #tpu.memory_space<vmem>>, %arg15: memref<16x18x128xf32, #tpu.memory_space<vmem>>, %arg16: memref<16x18x256xf32, #tpu.memory_space<vmem>>) attributes {dimension_semantics = [#tpu.dimension_semantics<parallel>], iteration_bounds = array<i64: 1>, scalar_prefetch = 0 : i64, scratch_operands = 2 : i64, tpu.core_type = #tpu.core_type<tc>, window_params = [{transform_indices = @transform_0, window_bounds = array<i64: 16, 16, 128>}, {pipeline_mode = #tpu.pipeline_mode<synchronous>, transform_indices = @transform_1, window_bounds = array<i64: 3, 128, 256>}, {pipeline_mode = #tpu.pipeline_mode<synchronous>, transform_indices = @transform_2, window_bounds = array<i64: 1, 256>}, {pipeline_mode = #tpu.pipeline_mode<synchronous>, transform_indices = @transform_3, window_bounds = array<i64: 1, 256>}, {pipeline_mode = #tpu.pipeline_mode<synchronous>, transform_indices = @transform_4, window_bounds = array<i64: 3, 256, 256>}, {pipeline_mode = #tpu.pipeline_mode<synchronous>, transform_indices = @transform_5, window_bounds = array<i64: 1, 256>}, {pipeline_mode = #tpu.pipeline_mode<synchronous>, transform_indices = @transform_6, window_bounds = array<i64: 1, 256>}, {pipeline_mode = #tpu.pipeline_mode<synchronous>, transform_indices = @transform_7, window_bounds = array<i64: 256, 16>}, {pipeline_mode = #tpu.pipeline_mode<synchronous>, transform_indices = @transform_8, window_bounds = array<i64: 16, 4>}, {pipeline_mode = #tpu.pipeline_mode<synchronous>, transform_indices = @transform_9, window_bounds = array<i64: 4, 256>}, {pipeline_mode = #tpu.pipeline_mode<synchronous>, transform_indices = @transform_10, window_bounds = array<i64: 128, 256>}, {pipeline_mode = #tpu.pipeline_mode<synchronous>, transform_indices = @transform_11, window_bounds = array<i64: 1, 256>}, {pipeline_mode = #tpu.pipeline_mode<synchronous>, transform_indices = @transform_12, window_bounds = array<i64: 1, 256>}, {transform_indices = @transform_13, window_bounds = array<i64: 16, 16, 256>}]} {
    %cst = arith.constant 0.000000e+00 : f32
    %0 = vector.broadcast %cst : f32 to vector<16x1x128xf32>
    %c0 = arith.constant 0 : index
    %c0_0 = arith.constant 0 : index
    %c0_1 = arith.constant 0 : index
    %1 = vector.load %arg15[%c0, %c0_0, %c0_1] : memref<16x18x128xf32, #tpu.memory_space<vmem>>, vector<16x1x128xf32>
    tpu.vector_store %arg15[%c0, %c0_0, %c0_1], %0 {strides = array<i32>} : memref<16x18x128xf32, #tpu.memory_space<vmem>>, vector<16x1x128xf32>,
    %cst_2 = arith.constant 0.000000e+00 : f32
    %2 = vector.broadcast %cst_2 : f32 to vector<16x1x128xf32>
    %c0_3 = arith.constant 0 : index
    %c17 = arith.constant 17 : index
    %c0_4 = arith.constant 0 : index
    %3 = vector.load %arg15[%c0_3, %c17, %c0_4] : memref<16x18x128xf32, #tpu.memory_space<vmem>>, vector<16x1x128xf32>
    tpu.vector_store %arg15[%c0_3, %c17, %c0_4], %2 {strides = array<i32>} : memref<16x18x128xf32, #tpu.memory_space<vmem>>, vector<16x1x128xf32>,
    %cst_5 = arith.constant 0.000000e+00 : f32
    %4 = vector.broadcast %cst_5 : f32 to vector<16x1x256xf32>
    %c0_6 = arith.constant 0 : index
    %c0_7 = arith.constant 0 : index
    %c0_8 = arith.constant 0 : index
    %5 = vector.load %arg16[%c0_6, %c0_7, %c0_8] : memref<16x18x256xf32, #tpu.memory_space<vmem>>, vector<16x1x256xf32>
    tpu.vector_store %arg16[%c0_6, %c0_7, %c0_8], %4 {strides = array<i32>} : memref<16x18x256xf32, #tpu.memory_space<vmem>>, vector<16x1x256xf32>,
    %cst_9 = arith.constant 0.000000e+00 : f32
    %6 = vector.broadcast %cst_9 : f32 to vector<16x1x256xf32>
    %c0_10 = arith.constant 0 : index
    %c17_11 = arith.constant 17 : index
    %c0_12 = arith.constant 0 : index
    %7 = vector.load %arg16[%c0_10, %c17_11, %c0_12] : memref<16x18x256xf32, #tpu.memory_space<vmem>>, vector<16x1x256xf32>
    tpu.vector_store %arg16[%c0_10, %c17_11, %c0_12], %6 {strides = array<i32>} : memref<16x18x256xf32, #tpu.memory_space<vmem>>, vector<16x1x256xf32>,
    %c0_13 = arith.constant 0 : index
    %c0_14 = arith.constant 0 : index
    %c0_15 = arith.constant 0 : index
    %8 = vector.load %arg1[%c0_13, %c0_14, %c0_15] : memref<16x16x128xbf16, #tpu.memory_space<vmem>>, vector<16x16x128xbf16>
    %9 = arith.extf %8 : vector<16x16x128xbf16> to vector<16x16x128xf32>
    %c0_16 = arith.constant 0 : index
    %c1 = arith.constant 1 : index
    %c0_17 = arith.constant 0 : index
    %10 = vector.load %arg15[%c0_16, %c1, %c0_17] : memref<16x18x128xf32, #tpu.memory_space<vmem>>, vector<16x16x128xf32>
    tpu.vector_store %arg15[%c0_16, %c1, %c0_17], %9 {strides = array<i32>} : memref<16x18x128xf32, #tpu.memory_space<vmem>>, vector<16x16x128xf32>,
    %c0_18 = arith.constant 0 : index
    %c0_19 = arith.constant 0 : index
    %c0_20 = arith.constant 0 : index
    %11 = vector.load %arg15[%c0_18, %c0_19, %c0_20] : memref<16x18x128xf32, #tpu.memory_space<vmem>>, vector<16x16x128xf32>
    %12 = vector.shape_cast %11 : vector<16x16x128xf32> to vector<256x128xf32>
    %13 = arith.truncf %12 : vector<256x128xf32> to vector<256x128xbf16>
    %c0_21 = arith.constant 0 : index
    %c0_22 = arith.constant 0 : index
    %c0_23 = arith.constant 0 : index
    %14 = vector.load %arg2[%c0_21, %c0_22, %c0_23] : memref<3x128x256xbf16, #tpu.memory_space<vmem>>, vector<1x128x256xbf16>
    %15 = vector.shape_cast %14 : vector<1x128x256xbf16> to vector<128x256xbf16>
    %cst_24 = arith.constant dense<0.000000e+00> : vector<256x256xf32>
    %16 = tpu.matmul %13, %15, %cst_24 {dimension_numbers = #tpu.dot_dimension_numbers<[1], [0], [0], [1], [0, 0, 1, 1], [], []>} : vector<256x128xbf16>, vector<128x256xbf16>, vector<256x256xf32> -> vector<256x256xf32>
    %c0_25 = arith.constant 0 : index
    %c1_26 = arith.constant 1 : index
    %c0_27 = arith.constant 0 : index
    %17 = vector.load %arg15[%c0_25, %c1_26, %c0_27] : memref<16x18x128xf32, #tpu.memory_space<vmem>>, vector<16x16x128xf32>
    %18 = vector.shape_cast %17 : vector<16x16x128xf32> to vector<256x128xf32>
    %19 = arith.truncf %18 : vector<256x128xf32> to vector<256x128xbf16>
    %c1_28 = arith.constant 1 : index
    %c0_29 = arith.constant 0 : index
    %c0_30 = arith.constant 0 : index
    %20 = vector.load %arg2[%c1_28, %c0_29, %c0_30] : memref<3x128x256xbf16, #tpu.memory_space<vmem>>, vector<1x128x256xbf16>
    %21 = vector.shape_cast %20 : vector<1x128x256xbf16> to vector<128x256xbf16>
    %cst_31 = arith.constant dense<0.000000e+00> : vector<256x256xf32>
    %22 = tpu.matmul %19, %21, %cst_31 {dimension_numbers = #tpu.dot_dimension_numbers<[1], [0], [0], [1], [0, 0, 1, 1], [], []>} : vector<256x128xbf16>, vector<128x256xbf16>, vector<256x256xf32> -> vector<256x256xf32>
    %23 = arith.addf %16, %22 : vector<256x256xf32>
    %c0_32 = arith.constant 0 : index
    %c2 = arith.constant 2 : index
    %c0_33 = arith.constant 0 : index
    %24 = vector.load %arg15[%c0_32, %c2, %c0_33] : memref<16x18x128xf32, #tpu.memory_space<vmem>>, vector<16x16x128xf32>
    %25 = vector.shape_cast %24 : vector<16x16x128xf32> to vector<256x128xf32>
    %26 = arith.truncf %25 : vector<256x128xf32> to vector<256x128xbf16>
    %c2_34 = arith.constant 2 : index
    %c0_35 = arith.constant 0 : index
    %c0_36 = arith.constant 0 : index
    %27 = vector.load %arg2[%c2_34, %c0_35, %c0_36] : memref<3x128x256xbf16, #tpu.memory_space<vmem>>, vector<1x128x256xbf16>
    %28 = vector.shape_cast %27 : vector<1x128x256xbf16> to vector<128x256xbf16>
    %cst_37 = arith.constant dense<0.000000e+00> : vector<256x256xf32>
    %29 = tpu.matmul %26, %28, %cst_37 {dimension_numbers = #tpu.dot_dimension_numbers<[1], [0], [0], [1], [0, 0, 1, 1], [], []>} : vector<256x128xbf16>, vector<128x256xbf16>, vector<256x256xf32> -> vector<256x256xf32>
    %30 = arith.addf %23, %29 : vector<256x256xf32>
    %c0_38 = arith.constant 0 : index
    %c0_39 = arith.constant 0 : index
    %31 = vector.load %arg3[%c0_38, %c0_39] : memref<1x256xf32, #tpu.memory_space<vmem>>, vector<1x256xf32>
    %32 = vector.broadcast %31 : vector<1x256xf32> to vector<256x256xf32>
    %33 = arith.mulf %30, %32 : vector<256x256xf32>
    %c0_40 = arith.constant 0 : index
    %c0_41 = arith.constant 0 : index
    %34 = vector.load %arg4[%c0_40, %c0_41] : memref<1x256xf32, #tpu.memory_space<vmem>>, vector<1x256xf32>
    %35 = vector.broadcast %34 : vector<1x256xf32> to vector<256x256xf32>
    %36 = arith.addf %33, %35 : vector<256x256xf32>
    %cst_42 = arith.constant 0.000000e+00 : f32
    %37 = vector.broadcast %cst_42 : f32 to vector<256x256xf32>
    %38 = arith.maximumf %36, %37 : vector<256x256xf32>
    %39 = vector.shape_cast %38 : vector<256x256xf32> to vector<16x16x256xf32>
    %c0_43 = arith.constant 0 : index
    %c1_44 = arith.constant 1 : index
    %c0_45 = arith.constant 0 : index
    %40 = vector.load %arg16[%c0_43, %c1_44, %c0_45] : memref<16x18x256xf32, #tpu.memory_space<vmem>>, vector<16x16x256xf32>
    tpu.vector_store %arg16[%c0_43, %c1_44, %c0_45], %39 {strides = array<i32>} : memref<16x18x256xf32, #tpu.memory_space<vmem>>, vector<16x16x256xf32>,
    %c0_46 = arith.constant 0 : index
    %c0_47 = arith.constant 0 : index
    %c0_48 = arith.constant 0 : index
    %41 = vector.load %arg16[%c0_46, %c0_47, %c0_48] : memref<16x18x256xf32, #tpu.memory_space<vmem>>, vector<16x16x256xf32>
    %42 = vector.shape_cast %41 : vector<16x16x256xf32> to vector<256x256xf32>
    %43 = arith.truncf %42 : vector<256x256xf32> to vector<256x256xbf16>
    %c0_49 = arith.constant 0 : index
    %c0_50 = arith.constant 0 : index
    %c0_51 = arith.constant 0 : index
    %44 = vector.load %arg5[%c0_49, %c0_50, %c0_51] : memref<3x256x256xbf16, #tpu.memory_space<vmem>>, vector<1x256x256xbf16>
    %45 = vector.shape_cast %44 : vector<1x256x256xbf16> to vector<256x256xbf16>
    %cst_52 = arith.constant dense<0.000000e+00> : vector<256x256xf32>
    %46 = tpu.matmul %43, %45, %cst_52 {dimension_numbers = #tpu.dot_dimension_numbers<[1], [0], [0], [1], [0, 0, 1, 1], [], []>} : vector<256x256xbf16>, vector<256x256xbf16>, vector<256x256xf32> -> vector<256x256xf32>
    %c0_53 = arith.constant 0 : index
    %c1_54 = arith.constant 1 : index
    %c0_55 = arith.constant 0 : index
    %47 = vector.load %arg16[%c0_53, %c1_54, %c0_55] : memref<16x18x256xf32, #tpu.memory_space<vmem>>, vector<16x16x256xf32>
    %48 = vector.shape_cast %47 : vector<16x16x256xf32> to vector<256x256xf32>
    %49 = arith.truncf %48 : vector<256x256xf32> to vector<256x256xbf16>
    %c1_56 = arith.constant 1 : index
    %c0_57 = arith.constant 0 : index
    %c0_58 = arith.constant 0 : index
    %50 = vector.load %arg5[%c1_56, %c0_57, %c0_58] : memref<3x256x256xbf16, #tpu.memory_space<vmem>>, vector<1x256x256xbf16>
    %51 = vector.shape_cast %50 : vector<1x256x256xbf16> to vector<256x256xbf16>
    %cst_59 = arith.constant dense<0.000000e+00> : vector<256x256xf32>
    %52 = tpu.matmul %49, %51, %cst_59 {dimension_numbers = #tpu.dot_dimension_numbers<[1], [0], [0], [1], [0, 0, 1, 1], [], []>} : vector<256x256xbf16>, vector<256x256xbf16>, vector<256x256xf32> -> vector<256x256xf32>
    %53 = arith.addf %46, %52 : vector<256x256xf32>
    %c0_60 = arith.constant 0 : index
    %c2_61 = arith.constant 2 : index
    %c0_62 = arith.constant 0 : index
    %54 = vector.load %arg16[%c0_60, %c2_61, %c0_62] : memref<16x18x256xf32, #tpu.memory_space<vmem>>, vector<16x16x256xf32>
    %55 = vector.shape_cast %54 : vector<16x16x256xf32> to vector<256x256xf32>
    %56 = arith.truncf %55 : vector<256x256xf32> to vector<256x256xbf16>
    %c2_63 = arith.constant 2 : index
    %c0_64 = arith.constant 0 : index
    %c0_65 = arith.constant 0 : index
    %57 = vector.load %arg5[%c2_63, %c0_64, %c0_65] : memref<3x256x256xbf16, #tpu.memory_space<vmem>>, vector<1x256x256xbf16>
    %58 = vector.shape_cast %57 : vector<1x256x256xbf16> to vector<256x256xbf16>
    %cst_66 = arith.constant dense<0.000000e+00> : vector<256x256xf32>
    %59 = tpu.matmul %56, %58, %cst_66 {dimension_numbers = #tpu.dot_dimension_numbers<[1], [0], [0], [1], [0, 0, 1, 1], [], []>} : vector<256x256xbf16>, vector<256x256xbf16>, vector<256x256xf32> -> vector<256x256xf32>
    %60 = arith.addf %53, %59 : vector<256x256xf32>
    %c0_67 = arith.constant 0 : index
    %c0_68 = arith.constant 0 : index
    %61 = vector.load %arg6[%c0_67, %c0_68] : memref<1x256xf32, #tpu.memory_space<vmem>>, vector<1x256xf32>
    %62 = vector.broadcast %61 : vector<1x256xf32> to vector<256x256xf32>
    %63 = arith.mulf %60, %62 : vector<256x256xf32>
    %c0_69 = arith.constant 0 : index
    %c0_70 = arith.constant 0 : index
    %64 = vector.load %arg7[%c0_69, %c0_70] : memref<1x256xf32, #tpu.memory_space<vmem>>, vector<1x256xf32>
    %65 = vector.broadcast %64 : vector<1x256xf32> to vector<256x256xf32>
    %66 = arith.addf %63, %65 : vector<256x256xf32>
    %67 = vector.shape_cast %66 : vector<256x256xf32> to vector<16x16x256xf32>
    %cst_71 = arith.constant dense<0.000000e+00> : vector<16x256xf32>
    %68 = vector.multi_reduction <add>, %67, %cst_71 [1] : vector<16x16x256xf32> to vector<16x256xf32>
    %69 = arith.truncf %68 : vector<16x256xf32> to vector<16x256xbf16>
    %c0_72 = arith.constant 0 : index
    %c0_73 = arith.constant 0 : index
    %70 = vector.load %arg8[%c0_72, %c0_73] : memref<256x16xbf16, #tpu.memory_space<vmem>>, vector<256x16xbf16>
    %cst_74 = arith.constant dense<0.000000e+00> : vector<16x16xf32>
    %71 = tpu.matmul %69, %70, %cst_74 {dimension_numbers = #tpu.dot_dimension_numbers<[1], [0], [0], [1], [0, 0, 1, 1], [], []>} : vector<16x256xbf16>, vector<256x16xbf16>, vector<16x16xf32> -> vector<16x16xf32>
    %72 = arith.truncf %71 : vector<16x16xf32> to vector<16x16xbf16>
    %c0_75 = arith.constant 0 : index
    %c0_76 = arith.constant 0 : index
    %73 = vector.load %arg9[%c0_75, %c0_76] : memref<16x4xbf16, #tpu.memory_space<vmem>>, vector<16x4xbf16>
    %cst_77 = arith.constant dense<0.000000e+00> : vector<16x4xf32>
    %74 = tpu.matmul %72, %73, %cst_77 {dimension_numbers = #tpu.dot_dimension_numbers<[1], [0], [0], [1], [0, 0, 1, 1], [], []>} : vector<16x16xbf16>, vector<16x4xbf16>, vector<16x4xf32> -> vector<16x4xf32>
    %cst_78 = arith.constant 0.000000e+00 : f32
    %75 = vector.broadcast %cst_78 : f32 to vector<16x4xf32>
    %76 = arith.maximumf %74, %75 : vector<16x4xf32>
    %77 = arith.truncf %76 : vector<16x4xf32> to vector<16x4xbf16>
    %c0_79 = arith.constant 0 : index
    %c0_80 = arith.constant 0 : index
    %78 = vector.load %arg10[%c0_79, %c0_80] : memref<4x256xbf16, #tpu.memory_space<vmem>>, vector<4x256xbf16>
    %cst_81 = arith.constant dense<0.000000e+00> : vector<16x256xf32>
    %79 = tpu.matmul %77, %78, %cst_81 {dimension_numbers = #tpu.dot_dimension_numbers<[1], [0], [0], [1], [0, 0, 1, 1], [], []>} : vector<16x4xbf16>, vector<4x256xbf16>, vector<16x256xf32> -> vector<16x256xf32>
    %80 = arith.negf %79 : vector<16x256xf32>
    %81 = math.exp %80 : vector<16x256xf32>
    %cst_82 = arith.constant 1.000000e+00 : f32
    %82 = vector.broadcast %cst_82 : f32 to vector<16x256xf32>
    %83 = arith.addf %82, %81 : vector<16x256xf32>
    %84 = arith.divf %82, %83 : vector<16x256xf32>
    %85 = vector.shape_cast %84 : vector<16x256xf32> to vector<16x1x256xf32>
    %86 = vector.broadcast %85 : vector<16x1x256xf32> to vector<16x16x256xf32>
    %87 = arith.mulf %67, %86 : vector<16x16x256xf32>
    %88 = vector.shape_cast %8 : vector<16x16x128xbf16> to vector<256x128xbf16>
    %c0_83 = arith.constant 0 : index
    %c0_84 = arith.constant 0 : index
    %89 = vector.load %arg11[%c0_83, %c0_84] : memref<128x256xbf16, #tpu.memory_space<vmem>>, vector<128x256xbf16>
    %cst_85 = arith.constant dense<0.000000e+00> : vector<256x256xf32>
    %90 = tpu.matmul %88, %89, %cst_85 {dimension_numbers = #tpu.dot_dimension_numbers<[1], [0], [0], [1], [0, 0, 1, 1], [], []>} : vector<256x128xbf16>, vector<128x256xbf16>, vector<256x256xf32> -> vector<256x256xf32>
    %c0_86 = arith.constant 0 : index
    %c0_87 = arith.constant 0 : index
    %91 = vector.load %arg12[%c0_86, %c0_87] : memref<1x256xf32, #tpu.memory_space<vmem>>, vector<1x256xf32>
    %92 = vector.broadcast %91 : vector<1x256xf32> to vector<256x256xf32>
    %93 = arith.mulf %90, %92 : vector<256x256xf32>
    %c0_88 = arith.constant 0 : index
    %c0_89 = arith.constant 0 : index
    %94 = vector.load %arg13[%c0_88, %c0_89] : memref<1x256xf32, #tpu.memory_space<vmem>>, vector<1x256xf32>
    %95 = vector.broadcast %94 : vector<1x256xf32> to vector<256x256xf32>
    %96 = arith.addf %93, %95 : vector<256x256xf32>
    %97 = vector.shape_cast %96 : vector<256x256xf32> to vector<16x16x256xf32>
    %98 = arith.addf %87, %97 : vector<16x16x256xf32>
    %cst_90 = arith.constant 0.000000e+00 : f32
    %99 = vector.broadcast %cst_90 : f32 to vector<16x16x256xf32>
    %100 = arith.maximumf %98, %99 : vector<16x16x256xf32>
    %c0_91 = arith.constant 0 : index
    %c0_92 = arith.constant 0 : index
    %c0_93 = arith.constant 0 : index
    %101 = vector.load %arg14[%c0_91, %c0_92, %c0_93] : memref<16x16x256xf32, #tpu.memory_space<vmem>>, vector<16x16x256xf32>
    tpu.vector_store %arg14[%c0_91, %c0_92, %c0_93], %100 {strides = array<i32>} : memref<16x16x256xf32, #tpu.memory_space<vmem>>, vector<16x16x256xf32>,
    return
  }
  func.func @transform_0(%arg0: i32) -> (i32, i32, i32) {
    %c0_i32 = arith.constant 0 : i32
    %c0_i32_0 = arith.constant 0 : i32
    %c0_i32_1 = arith.constant 0 : i32
    return %arg0, %c0_i32, %c0_i32_0 : i32, i32, i32
  }
  func.func @transform_1(%arg0: i32) -> (i32, i32, i32) {
    %c0_i32 = arith.constant 0 : i32
    %c0_i32_0 = arith.constant 0 : i32
    %c0_i32_1 = arith.constant 0 : i32
    %c0_i32_2 = arith.constant 0 : i32
    return %c0_i32, %c0_i32_0, %c0_i32_1 : i32, i32, i32
  }
  func.func @transform_2(%arg0: i32) -> (i32, i32) {
    %c0_i32 = arith.constant 0 : i32
    %c0_i32_0 = arith.constant 0 : i32
    %c0_i32_1 = arith.constant 0 : i32
    return %c0_i32, %c0_i32_0 : i32, i32
  }
  func.func @transform_3(%arg0: i32) -> (i32, i32) {
    %c0_i32 = arith.constant 0 : i32
    %c0_i32_0 = arith.constant 0 : i32
    %c0_i32_1 = arith.constant 0 : i32
    return %c0_i32, %c0_i32_0 : i32, i32
  }
  func.func @transform_4(%arg0: i32) -> (i32, i32, i32) {
    %c0_i32 = arith.constant 0 : i32
    %c0_i32_0 = arith.constant 0 : i32
    %c0_i32_1 = arith.constant 0 : i32
    %c0_i32_2 = arith.constant 0 : i32
    return %c0_i32, %c0_i32_0, %c0_i32_1 : i32, i32, i32
  }
  func.func @transform_5(%arg0: i32) -> (i32, i32) {
    %c0_i32 = arith.constant 0 : i32
    %c0_i32_0 = arith.constant 0 : i32
    %c0_i32_1 = arith.constant 0 : i32
    return %c0_i32, %c0_i32_0 : i32, i32
  }
  func.func @transform_6(%arg0: i32) -> (i32, i32) {
    %c0_i32 = arith.constant 0 : i32
    %c0_i32_0 = arith.constant 0 : i32
    %c0_i32_1 = arith.constant 0 : i32
    return %c0_i32, %c0_i32_0 : i32, i32
  }
  func.func @transform_7(%arg0: i32) -> (i32, i32) {
    %c0_i32 = arith.constant 0 : i32
    %c0_i32_0 = arith.constant 0 : i32
    %c0_i32_1 = arith.constant 0 : i32
    return %c0_i32, %c0_i32_0 : i32, i32
  }
  func.func @transform_8(%arg0: i32) -> (i32, i32) {
    %c0_i32 = arith.constant 0 : i32
    %c0_i32_0 = arith.constant 0 : i32
    %c0_i32_1 = arith.constant 0 : i32
    return %c0_i32, %c0_i32_0 : i32, i32
  }
  func.func @transform_9(%arg0: i32) -> (i32, i32) {
    %c0_i32 = arith.constant 0 : i32
    %c0_i32_0 = arith.constant 0 : i32
    %c0_i32_1 = arith.constant 0 : i32
    return %c0_i32, %c0_i32_0 : i32, i32
  }
  func.func @transform_10(%arg0: i32) -> (i32, i32) {
    %c0_i32 = arith.constant 0 : i32
    %c0_i32_0 = arith.constant 0 : i32
    %c0_i32_1 = arith.constant 0 : i32
    return %c0_i32, %c0_i32_0 : i32, i32
  }
  func.func @transform_11(%arg0: i32) -> (i32, i32) {
    %c0_i32 = arith.constant 0 : i32
    %c0_i32_0 = arith.constant 0 : i32
    %c0_i32_1 = arith.constant 0 : i32
    return %c0_i32, %c0_i32_0 : i32, i32
  }
  func.func @transform_12(%arg0: i32) -> (i32, i32) {
    %c0_i32 = arith.constant 0 : i32
    %c0_i32_0 = arith.constant 0 : i32
    %c0_i32_1 = arith.constant 0 : i32
    return %c0_i32, %c0_i32_0 : i32, i32
  }
  func.func @transform_13(%arg0: i32) -> (i32, i32, i32) {
    %c0_i32 = arith.constant 0 : i32
    %c0_i32_0 = arith.constant 0 : i32
    %c0_i32_1 = arith.constant 0 : i32
    return %arg0, %c0_i32, %c0_i32_0 : i32, i32, i32
  }
}

</mosaic_0001>

<llo_original>
// kernel: tpu_custom_call.1
$region0: #{tpu_custom_call.1}
  #allocation0 [shape = 'u32[]', space=smem, size = 0x4, offset = 0x4, fixed_abs, tag = 'smem constant byte address 0x4 - core index']
  #allocation1 [shape = 'u32[144,128]{1,0:T(1,128)}', space=vmem, size = 0x12000, scoped, tag = 'internal scratch']
  #allocation2 [shape = 'f32[16,18,128]{2,1,0:T(8,128)}', space=vmem, size = 0x30000, scoped, tag = 'scratch operand']
  #allocation3 [shape = 'f32[16,18,256]{2,1,0:T(8,128)}', space=vmem, size = 0x60000, scoped, tag = 'scratch operand']
  %s0 = inlined_call_operand.vmem [shape: bf16[16,16,128], index: 0, kind: input, shape index: {}]
  %s1 = inlined_call_operand.hbm [shape: bf16[3,128,256], index: 1, kind: input, shape index: {}]
  %s2 = inlined_call_operand.vmem [shape: f32[1,256], index: 2, kind: input, shape index: {}]
  %s3 = inlined_call_operand.vmem [shape: f32[1,256], index: 3, kind: input, shape index: {}]
  %s4 = inlined_call_operand.hbm [shape: bf16[3,256,256], index: 4, kind: input, shape index: {}]
  %s5 = inlined_call_operand.vmem [shape: f32[1,256], index: 5, kind: input, shape index: {}]
  %s6 = inlined_call_operand.vmem [shape: f32[1,256], index: 6, kind: input, shape index: {}]
  %s7 = inlined_call_operand.vmem [shape: bf16[256,16], index: 7, kind: input, shape index: {}]
  %s8 = inlined_call_operand.vmem [shape: bf16[16,4], index: 8, kind: input, shape index: {}]
  %s9 = inlined_call_operand.vmem [shape: bf16[4,256], index: 9, kind: input, shape index: {}]
  %s10 = inlined_call_operand.hbm [shape: bf16[128,256], index: 10, kind: input, shape index: {}]
  %s11 = inlined_call_operand.vmem [shape: f32[1,256], index: 11, kind: input, shape index: {}]
  %s12 = inlined_call_operand.vmem [shape: f32[1,256], index: 12, kind: input, shape index: {}]
  %s13 = inlined_call_operand.hbm [shape: f32[16,16,256], index: 13, kind: output, shape index: {}]
  %s14 = sld [smem:[#allocation0]]
  $region74: #{tpu_custom_call.1} parent=0
    _
  %s16 = ssub.s32 1, %s14
  %s17 = scalar_select 0, %s16, %s14
  $region1: #{tpu_custom_call.1} parent=0
    #allocation4 [shape = 'u8[196608]{0}', space=vmem, size = 0x30000, scoped, tag = 'input window, operand 1, single buffered']
    #allocation5 [shape = 's32[1]{0}', space=sflag, size = 0x4, scoped, tag = 'scoped memory for tpu_custom_call.1']
    #allocation6 [shape = 's32[1]{0}', space=sflag, size = 0x4, scoped, tag = 'scoped memory for tpu_custom_call.1']
    #allocation7 [shape = 'u8[393216]{0}', space=vmem, size = 0x60000, scoped, tag = 'input window, operand 4, single buffered']
    #allocation8 [shape = 's32[1]{0}', space=sflag, size = 0x4, scoped, tag = 'scoped memory for tpu_custom_call.1']
    #allocation9 [shape = 'u8[65536]{0}', space=vmem, size = 0x10000, scoped, tag = 'input window, operand 10, single buffered']
    #allocation10 [shape = 'u8[262144]{0}', space=vmem, size = 0x40000, scoped, tag = 'output window, operand 0, single buffered']
    %18 = vsyncpa [#allocation5], 0
    %19 = vsyncpa [#allocation8], 0
    %20 = vsyncpa [#allocation6], 0
    // Predicated region
    $region2: #{tpu_custom_call.1} parent=1 // pred_check
      _
    $region3: #{tpu_custom_call.1} parent=1 // pred_check_branch
      %22 = sbr.rel (0) target = $region5
    $region4: #{tpu_custom_call.1} parent=1 // pred_region
      _
    $region5: #{tpu_custom_call.1} parent=1 // pred_fallthru
      _
    // Predicated region
    $region6: #{tpu_custom_call.1} parent=1 // pred_check
      _
    $region7: #{tpu_custom_call.1} parent=1 // pred_check_branch
      %24 = sbr.rel (0) target = $region9
    $region8: #{tpu_custom_call.1} parent=1 // pred_region
      %s26 = ssub.s32 6144, 6144
      %27 = vsyncadd [#allocation5], %s26
      %s28 = sshll.u32 [#allocation4], 4
      %s29 = int_to_ptr.vmem [resolvable:$true] %s28
      %34 = dma.hbm_to_vmem [thread:$0]  %s1, 6144, %s29, [#allocation5], 128, 128, 8
    $region9: #{tpu_custom_call.1} parent=1 // pred_fallthru
      _
    // Predicated region
    $region10: #{tpu_custom_call.1} parent=1 // pred_check
      _
    $region11: #{tpu_custom_call.1} parent=1 // pred_check_branch
      %36 = sbr.rel (0) target = $region13
    $region12: #{tpu_custom_call.1} parent=1 // pred_region
      _
    $region13: #{tpu_custom_call.1} parent=1 // pred_fallthru
      _
    // Predicated region
    $region14: #{tpu_custom_call.1} parent=1 // pred_check
      _
    $region15: #{tpu_custom_call.1} parent=1 // pred_check_branch
      %38 = sbr.rel (0) target = $region17
    $region16: #{tpu_custom_call.1} parent=1 // pred_region
      _
    $region17: #{tpu_custom_call.1} parent=1 // pred_fallthru
      _
    // Predicated region
    $region18: #{tpu_custom_call.1} parent=1 // pred_check
      _
    $region19: #{tpu_custom_call.1} parent=1 // pred_check_branch
      %40 = sbr.rel (0) target = $region21
    $region20: #{tpu_custom_call.1} parent=1 // pred_region
      %s42 = ssub.s32 12288, 12288
      %43 = vsyncadd [#allocation8], %s42
      %s44 = sshll.u32 [#allocation7], 4
      %s45 = int_to_ptr.vmem [resolvable:$true] %s44
      %50 = dma.hbm_to_vmem [thread:$0]  %s4, 12288, %s45, [#allocation8], 128, 128, 8
    $region21: #{tpu_custom_call.1} parent=1 // pred_fallthru
      _
    // Predicated region
    $region22: #{tpu_custom_call.1} parent=1 // pred_check
      _
    $region23: #{tpu_custom_call.1} parent=1 // pred_check_branch
      %52 = sbr.rel (0) target = $region25
    $region24: #{tpu_custom_call.1} parent=1 // pred_region
      _
    $region25: #{tpu_custom_call.1} parent=1 // pred_fallthru
      _
    // Predicated region
    $region26: #{tpu_custom_call.1} parent=1 // pred_check
      _
    $region27: #{tpu_custom_call.1} parent=1 // pred_check_branch
      %54 = sbr.rel (0) target = $region29
    $region28: #{tpu_custom_call.1} parent=1 // pred_region
      _
    $region29: #{tpu_custom_call.1} parent=1 // pred_fallthru
      _
    // Predicated region
    $region30: #{tpu_custom_call.1} parent=1 // pred_check
      _
    $region31: #{tpu_custom_call.1} parent=1 // pred_check_branch
      %56 = sbr.rel (0) target = $region33
    $region32: #{tpu_custom_call.1} parent=1 // pred_region
      _
    $region33: #{tpu_custom_call.1} parent=1 // pred_fallthru
      _
    // Predicated region
    $region34: #{tpu_custom_call.1} parent=1 // pred_check
      _
    $region35: #{tpu_custom_call.1} parent=1 // pred_check_branch
      %58 = sbr.rel (0) target = $region37
    $region36: #{tpu_custom_call.1} parent=1 // pred_region
      _
    $region37: #{tpu_custom_call.1} parent=1 // pred_fallthru
      _
    // Predicated region
    $region38: #{tpu_custom_call.1} parent=1 // pred_check
      _
    $region39: #{tpu_custom_call.1} parent=1 // pred_check_branch
      %60 = sbr.rel (0) target = $region41
    $region40: #{tpu_custom_call.1} parent=1 // pred_region
      _
    $region41: #{tpu_custom_call.1} parent=1 // pred_fallthru
      _
    // Predicated region
    $region42: #{tpu_custom_call.1} parent=1 // pred_check
      _
    $region43: #{tpu_custom_call.1} parent=1 // pred_check_branch
      %62 = sbr.rel (0) target = $region45
    $region44: #{tpu_custom_call.1} parent=1 // pred_region
      %s64 = ssub.s32 2048, 2048
      %65 = vsyncadd [#allocation8], %s64
      %s66 = sshll.u32 [#allocation9], 4
      %s67 = int_to_ptr.vmem [resolvable:$true] %s66
      %72 = dma.hbm_to_vmem [thread:$0]  %s10, 2048, %s67, [#allocation8], 128, 128, 8
    $region45: #{tpu_custom_call.1} parent=1 // pred_fallthru
      _
    // Predicated region
    $region46: #{tpu_custom_call.1} parent=1 // pred_check
      _
    $region47: #{tpu_custom_call.1} parent=1 // pred_check_branch
      %74 = sbr.rel (0) target = $region49
    $region48: #{tpu_custom_call.1} parent=1 // pred_region
      _
    $region49: #{tpu_custom_call.1} parent=1 // pred_fallthru
      _
    // Predicated region
    $region50: #{tpu_custom_call.1} parent=1 // pred_check
      _
    $region51: #{tpu_custom_call.1} parent=1 // pred_check_branch
      %76 = sbr.rel (0) target = $region53
    $region52: #{tpu_custom_call.1} parent=1 // pred_region
      _
    $region53: #{tpu_custom_call.1} parent=1 // pred_fallthru
      _
    // Predicated region
    $region54: #{tpu_custom_call.1} parent=1 // pred_check
      _
    $region55: #{tpu_custom_call.1} parent=1 // pred_check_branch
      %78 = sbr.rel (0) target = $region57
    $region56: #{tpu_custom_call.1} parent=1 // pred_region
      %79 = dma.done [#allocation5], 6144
    $region57: #{tpu_custom_call.1} parent=1 // pred_fallthru
      _
    // Predicated region
    $region58: #{tpu_custom_call.1} parent=1 // pred_check
      _
    $region59: #{tpu_custom_call.1} parent=1 // pred_check_branch
      %81 = sbr.rel (0) target = $region61
    $region60: #{tpu_custom_call.1} parent=1 // pred_region
      %82 = dma.done [#allocation8], 12288
    $region61: #{tpu_custom_call.1} parent=1 // pred_fallthru
      _
    // Predicated region
    $region62: #{tpu_custom_call.1} parent=1 // pred_check
      _
    $region63: #{tpu_custom_call.1} parent=1 // pred_check_branch
      %84 = sbr.rel (0) target = $region65
    $region64: #{tpu_custom_call.1} parent=1 // pred_region
      %85 = dma.done [#allocation8], 2048
    $region65: #{tpu_custom_call.1} parent=1 // pred_fallthru
      _
    %87 = vst [vmem:[#allocation2] sm:$0x1] 0.0
    %88 = vst [vmem:[#allocation2 + $0x18] sm:$0x1] 0.0
    %89 = vst [vmem:[#allocation2 + $0x30] sm:$0x1] 0.0
    %90 = vst [vmem:[#allocation2 + $0x48] sm:$0x1] 0.0
    %91 = vst [vmem:[#allocation2 + $0x60] sm:$0x1] 0.0
    %92 = vst [vmem:[#allocation2 + $0x78] sm:$0x1] 0.0
    %93 = vst [vmem:[#allocation2 + $0x90] sm:$0x1] 0.0
    %94 = vst [vmem:[#allocation2 + $0xa8] sm:$0x1] 0.0
    %95 = vst [vmem:[#allocation2 + $0xc0] sm:$0x1] 0.0
    %96 = vst [vmem:[#allocation2 + $0xd8] sm:$0x1] 0.0
    %97 = vst [vmem:[#allocation2 + $0xf0] sm:$0x1] 0.0
    %98 = vst [vmem:[#allocation2 + $0x108] sm:$0x1] 0.0
    %99 = vst [vmem:[#allocation2 + $0x120] sm:$0x1] 0.0
    %100 = vst [vmem:[#allocation2 + $0x138] sm:$0x1] 0.0
    %101 = vst [vmem:[#allocation2 + $0x150] sm:$0x1] 0.0
    %102 = vst [vmem:[#allocation2 + $0x168] sm:$0x1] 0.0
    %103 = vst [vmem:[#allocation2 + $0x11] sm:$0x1] 0.0
    %104 = vst [vmem:[#allocation2 + $0x29] sm:$0x1] 0.0
    %105 = vst [vmem:[#allocation2 + $0x41] sm:$0x1] 0.0
    %106 = vst [vmem:[#allocation2 + $0x59] sm:$0x1] 0.0
    %107 = vst [vmem:[#allocation2 + $0x71] sm:$0x1] 0.0
    %108 = vst [vmem:[#allocation2 + $0x89] sm:$0x1] 0.0
    %109 = vst [vmem:[#allocation2 + $0xa1] sm:$0x1] 0.0
    %110 = vst [vmem:[#allocation2 + $0xb9] sm:$0x1] 0.0
    %111 = vst [vmem:[#allocation2 + $0xd1] sm:$0x1] 0.0
    %112 = vst [vmem:[#allocation2 + $0xe9] sm:$0x1] 0.0
    %113 = vst [vmem:[#allocation2 + $0x101] sm:$0x1] 0.0
    %114 = vst [vmem:[#allocation2 + $0x119] sm:$0x1] 0.0
    %115 = vst [vmem:[#allocation2 + $0x131] sm:$0x1] 0.0
    %116 = vst [vmem:[#allocation2 + $0x149] sm:$0x1] 0.0
    %117 = vst [vmem:[#allocation2 + $0x161] sm:$0x1] 0.0
    %118 = vst [vmem:[#allocation2 + $0x179] sm:$0x1] 0.0
    %v119 = vlaneseq
    %vm120 = vcmp.ge.s32.totalorder %v119, 0
    %vm121 = vcmp.lt.s32.totalorder %v119, 256
    %vm122 = vmand %vm120, %vm121
    %123 = vst.msk [vmem:[#allocation3] ss:$8 sm:$0x3] %vm122, 0.0
    %124 = vst.msk [vmem:[#allocation3] ss:$8 sm:$0x0] %vm122, 0.0
    %s125 = scalar_lea.vmem [#allocation3], 48
    %126 = vst.msk [vmem:[%s125] ss:$8 sm:$0x3] %vm122, 0.0
    %127 = vst.msk [vmem:[%s125] ss:$8 sm:$0x0] %vm122, 0.0
    %s128 = scalar_lea.vmem [#allocation3], 96
    %129 = vst.msk [vmem:[%s128] ss:$8 sm:$0x3] %vm122, 0.0
    %130 = vst.msk [vmem:[%s128] ss:$8 sm:$0x0] %vm122, 0.0
    %s131 = scalar_lea.vmem [#allocation3], 144
    %132 = vst.msk [vmem:[%s131] ss:$8 sm:$0x3] %vm122, 0.0
    %133 = vst.msk [vmem:[%s131] ss:$8 sm:$0x0] %vm122, 0.0
    %s134 = scalar_lea.vmem [#allocation3], 192
    %135 = vst.msk [vmem:[%s134] ss:$8 sm:$0x3] %vm122, 0.0
    %136 = vst.msk [vmem:[%s134] ss:$8 sm:$0x0] %vm122, 0.0
    %s137 = scalar_lea.vmem [#allocation3], 240
    %138 = vst.msk [vmem:[%s137] ss:$8 sm:$0x3] %vm122, 0.0
    %139 = vst.msk [vmem:[%s137] ss:$8 sm:$0x0] %vm122, 0.0
    %s140 = scalar_lea.vmem [#allocation3], 288
    %141 = vst.msk [vmem:[%s140] ss:$8 sm:$0x3] %vm122, 0.0
    %142 = vst.msk [vmem:[%s140] ss:$8 sm:$0x0] %vm122, 0.0
    %s143 = scalar_lea.vmem [#allocation3], 336
    %144 = vst.msk [vmem:[%s143] ss:$8 sm:$0x3] %vm122, 0.0
    %145 = vst.msk [vmem:[%s143] ss:$8 sm:$0x0] %vm122, 0.0
    %s146 = scalar_lea.vmem [#allocation3], 384
    %147 = vst.msk [vmem:[%s146] ss:$8 sm:$0x3] %vm122, 0.0
    %148 = vst.msk [vmem:[%s146] ss:$8 sm:$0x0] %vm122, 0.0
    %s149 = scalar_lea.vmem [#allocation3], 432
    %150 = vst.msk [vmem:[%s149] ss:$8 sm:$0x3] %vm122, 0.0
    %151 = vst.msk [vmem:[%s149] ss:$8 sm:$0x0] %vm122, 0.0
    %s152 = scalar_lea.vmem [#allocation3], 480
    %153 = vst.msk [vmem:[%s152] ss:$8 sm:$0x3] %vm122, 0.0
    %154 = vst.msk [vmem:[%s152] ss:$8 sm:$0x0] %vm122, 0.0
    %s155 = scalar_lea.vmem [#allocation3], 528
    %156 = vst.msk [vmem:[%s155] ss:$8 sm:$0x3] %vm122, 0.0
    %157 = vst.msk [vmem:[%s155] ss:$8 sm:$0x0] %vm122, 0.0
    %s158 = scalar_lea.vmem [#allocation3], 576
    %159 = vst.msk [vmem:[%s158] ss:$8 sm:$0x3] %vm122, 0.0
    %160 = vst.msk [vmem:[%s158] ss:$8 sm:$0x0] %vm122, 0.0
    %s161 = scalar_lea.vmem [#allocation3], 624
    %162 = vst.msk [vmem:[%s161] ss:$8 sm:$0x3] %vm122, 0.0
    %163 = vst.msk [vmem:[%s161] ss:$8 sm:$0x0] %vm122, 0.0
    %s164 = scalar_lea.vmem [#allocation3], 672
    %165 = vst.msk [vmem:[%s164] ss:$8 sm:$0x3] %vm122, 0.0
    %166 = vst.msk [vmem:[%s164] ss:$8 sm:$0x0] %vm122, 0.0
    %s167 = scalar_lea.vmem [#allocation3], 720
    %168 = vst.msk [vmem:[%s167] ss:$8 sm:$0x3] %vm122, 0.0
    %169 = vst.msk [vmem:[%s167] ss:$8 sm:$0x0] %vm122, 0.0
    %s170 = scalar_lea.vmem [#allocation3], 33
    %171 = vst.msk [vmem:[%s170] ss:$8 sm:$0x3] %vm122, 0.0
    %172 = vst.msk [vmem:[%s170] ss:$8 sm:$0x0] %vm122, 0.0
    %s173 = scalar_lea.vmem [#allocation3], 81
    %174 = vst.msk [vmem:[%s173] ss:$8 sm:$0x3] %vm122, 0.0
    %175 = vst.msk [vmem:[%s173] ss:$8 sm:$0x0] %vm122, 0.0
    %s176 = scalar_lea.vmem [#allocation3], 129
    %177 = vst.msk [vmem:[%s176] ss:$8 sm:$0x3] %vm122, 0.0
    %178 = vst.msk [vmem:[%s176] ss:$8 sm:$0x0] %vm122, 0.0
    %s179 = scalar_lea.vmem [#allocation3], 177
    %180 = vst.msk [vmem:[%s179] ss:$8 sm:$0x3] %vm122, 0.0
    %181 = vst.msk [vmem:[%s179] ss:$8 sm:$0x0] %vm122, 0.0
    %s182 = scalar_lea.vmem [#allocation3], 225
    %183 = vst.msk [vmem:[%s182] ss:$8 sm:$0x3] %vm122, 0.0
    %184 = vst.msk [vmem:[%s182] ss:$8 sm:$0x0] %vm122, 0.0
    %s185 = scalar_lea.vmem [#allocation3], 273
    %186 = vst.msk [vmem:[%s185] ss:$8 sm:$0x3] %vm122, 0.0
    %187 = vst.msk [vmem:[%s185] ss:$8 sm:$0x0] %vm122, 0.0
    %s188 = scalar_lea.vmem [#allocation3], 321
    %189 = vst.msk [vmem:[%s188] ss:$8 sm:$0x3] %vm122, 0.0
    %190 = vst.msk [vmem:[%s188] ss:$8 sm:$0x0] %vm122, 0.0
    %s191 = scalar_lea.vmem [#allocation3], 369
    %192 = vst.msk [vmem:[%s191] ss:$8 sm:$0x3] %vm122, 0.0
    %193 = vst.msk [vmem:[%s191] ss:$8 sm:$0x0] %vm122, 0.0
    %s194 = scalar_lea.vmem [#allocation3], 417
    %195 = vst.msk [vmem:[%s194] ss:$8 sm:$0x3] %vm122, 0.0
    %196 = vst.msk [vmem:[%s194] ss:$8 sm:$0x0] %vm122, 0.0
    %s197 = scalar_lea.vmem [#allocation3], 465
    %198 = vst.msk [vmem:[%s197] ss:$8 sm:$0x3] %vm122, 0.0
    %199 = vst.msk [vmem:[%s197] ss:$8 sm:$0x0] %vm122, 0.0
    %s200 = scalar_lea.vmem [#allocation3], 513
    %201 = vst.msk [vmem:[%s200] ss:$8 sm:$0x3] %vm122, 0.0
    %202 = vst.msk [vmem:[%s200] ss:$8 sm:$0x0] %vm122, 0.0
    %s203 = scalar_lea.vmem [#allocation3], 561
    %204 = vst.msk [vmem:[%s203] ss:$8 sm:$0x3] %vm122, 0.0
    %205 = vst.msk [vmem:[%s203] ss:$8 sm:$0x0] %vm122, 0.0
    %s206 = scalar_lea.vmem [#allocation3], 609
    %207 = vst.msk [vmem:[%s206] ss:$8 sm:$0x3] %vm122, 0.0
    %208 = vst.msk [vmem:[%s206] ss:$8 sm:$0x0] %vm122, 0.0
    %s209 = scalar_lea.vmem [#allocation3], 657
    %210 = vst.msk [vmem:[%s209] ss:$8 sm:$0x3] %vm122, 0.0
    %211 = vst.msk [vmem:[%s209] ss:$8 sm:$0x0] %vm122, 0.0
    %s212 = scalar_lea.vmem [#allocation3], 705
    %213 = vst.msk [vmem:[%s212] ss:$8 sm:$0x3] %vm122, 0.0
    %214 = vst.msk [vmem:[%s212] ss:$8 sm:$0x0] %vm122, 0.0
    %s215 = scalar_lea.vmem [#allocation3], 753
    %216 = vst.msk [vmem:[%s215] ss:$8 sm:$0x3] %vm122, 0.0
    %217 = vst.msk [vmem:[%s215] ss:$8 sm:$0x0] %vm122, 0.0
    %v218 = vld [vmem:[%s0] sm:$0xf]
    %v219 = vld [vmem:[%s0 + $0x4] sm:$0xf]
    %v220 = vld [vmem:[%s0 + $0x8] sm:$0xf]
    %v221 = vld [vmem:[%s0 + $0xc] sm:$0xf]
    %v222 = vld [vmem:[%s0 + $0x10] sm:$0xf]
    %v223 = vld [vmem:[%s0 + $0x14] sm:$0xf]
    %v224 = vld [vmem:[%s0 + $0x18] sm:$0xf]
    %v225 = vld [vmem:[%s0 + $0x1c] sm:$0xf]
    %v226 = vld [vmem:[%s0 + $0x20] sm:$0xf]
    %v227 = vld [vmem:[%s0 + $0x24] sm:$0xf]
    %v228 = vld [vmem:[%s0 + $0x28] sm:$0xf]
    %v229 = vld [vmem:[%s0 + $0x2c] sm:$0xf]
    %v230 = vld [vmem:[%s0 + $0x30] sm:$0xf]
    %v231 = vld [vmem:[%s0 + $0x34] sm:$0xf]
    %v232 = vld [vmem:[%s0 + $0x38] sm:$0xf]
    %v233 = vld [vmem:[%s0 + $0x3c] sm:$0xf]
    %v234 = vld [vmem:[%s0 + $0x40] sm:$0xf]
    %v235 = vld [vmem:[%s0 + $0x44] sm:$0xf]
    %v236 = vld [vmem:[%s0 + $0x48] sm:$0xf]
    %v237 = vld [vmem:[%s0 + $0x4c] sm:$0xf]
    %v238 = vld [vmem:[%s0 + $0x50] sm:$0xf]
    %v239 = vld [vmem:[%s0 + $0x54] sm:$0xf]
    %v240 = vld [vmem:[%s0 + $0x58] sm:$0xf]
    %v241 = vld [vmem:[%s0 + $0x5c] sm:$0xf]
    %v242 = vld [vmem:[%s0 + $0x60] sm:$0xf]
    %v243 = vld [vmem:[%s0 + $0x64] sm:$0xf]
    %v244 = vld [vmem:[%s0 + $0x68] sm:$0xf]
    %v245 = vld [vmem:[%s0 + $0x6c] sm:$0xf]
    %v246 = vld [vmem:[%s0 + $0x70] sm:$0xf]
    %v247 = vld [vmem:[%s0 + $0x74] sm:$0xf]
    %v248 = vld [vmem:[%s0 + $0x78] sm:$0xf]
    %v249 = vld [vmem:[%s0 + $0x7c] sm:$0xf]
    %v250 = vunpack.c.l.bf16 %v218
    %v251 = vunpack.c.l.bf16 %v219
    %v252 = vunpack.c.l.bf16 %v220
    %v253 = vunpack.c.l.bf16 %v221
    %v254 = vunpack.c.l.bf16 %v222
    %v255 = vunpack.c.l.bf16 %v223
    %v256 = vunpack.c.l.bf16 %v224
    %v257 = vunpack.c.l.bf16 %v225
    %v258 = vunpack.c.l.bf16 %v226
    %v259 = vunpack.c.l.bf16 %v227
    %v260 = vunpack.c.l.bf16 %v228
    %v261 = vunpack.c.l.bf16 %v229
    %v262 = vunpack.c.l.bf16 %v230
    %v263 = vunpack.c.l.bf16 %v231
    %v264 = vunpack.c.l.bf16 %v232
    %v265 = vunpack.c.l.bf16 %v233
    %v266 = vunpack.c.l.bf16 %v234
    %v267 = vunpack.c.l.bf16 %v235
    %v268 = vunpack.c.l.bf16 %v236
    %v269 = vunpack.c.l.bf16 %v237
    %v270 = vunpack.c.l.bf16 %v238
    %v271 = vunpack.c.l.bf16 %v239
    %v272 = vunpack.c.l.bf16 %v240
    %v273 = vunpack.c.l.bf16 %v241
    %v274 = vunpack.c.l.bf16 %v242
    %v275 = vunpack.c.l.bf16 %v243
    %v276 = vunpack.c.l.bf16 %v244
    %v277 = vunpack.c.l.bf16 %v245
    %v278 = vunpack.c.l.bf16 %v246
    %v279 = vunpack.c.l.bf16 %v247
    %v280 = vunpack.c.l.bf16 %v248
    %v281 = vunpack.c.l.bf16 %v249
    %282 = vst [vmem:[#allocation2 + $0x1] sm:$0xff] %v250
    %283 = vst [vmem:[#allocation2 + $0x9] sm:$0xff] %v251
    %284 = vst [vmem:[#allocation2 + $0x19] sm:$0xff] %v252
    %285 = vst [vmem:[#allocation2 + $0x21] sm:$0xff] %v253
    %286 = vst [vmem:[#allocation2 + $0x31] sm:$0xff] %v254
    %287 = vst [vmem:[#allocation2 + $0x39] sm:$0xff] %v255
    %288 = vst [vmem:[#allocation2 + $0x49] sm:$0xff] %v256
    %289 = vst [vmem:[#allocation2 + $0x51] sm:$0xff] %v257
    %290 = vst [vmem:[#allocation2 + $0x61] sm:$0xff] %v258
    %291 = vst [vmem:[#allocation2 + $0x69] sm:$0xff] %v259
    %292 = vst [vmem:[#allocation2 + $0x79] sm:$0xff] %v260
    %293 = vst [vmem:[#allocation2 + $0x81] sm:$0xff] %v261
    %294 = vst [vmem:[#allocation2 + $0x91] sm:$0xff] %v262
    %295 = vst [vmem:[#allocation2 + $0x99] sm:$0xff] %v263
    %296 = vst [vmem:[#allocation2 + $0xa9] sm:$0xff] %v264
    %297 = vst [vmem:[#allocation2 + $0xb1] sm:$0xff] %v265
    %298 = vst [vmem:[#allocation2 + $0xc1] sm:$0xff] %v266
    %299 = vst [vmem:[#allocation2 + $0xc9] sm:$0xff] %v267
    %300 = vst [vmem:[#allocation2 + $0xd9] sm:$0xff] %v268
    %301 = vst [vmem:[#allocation2 + $0xe1] sm:$0xff] %v269
    %302 = vst [vmem:[#allocation2 + $0xf1] sm:$0xff] %v270
    %303 = vst [vmem:[#allocation2 + $0xf9] sm:$0xff] %v271
    %304 = vst [vmem:[#allocation2 + $0x109] sm:$0xff] %v272
    %305 = vst [vmem:[#allocation2 + $0x111] sm:$0xff] %v273
    %306 = vst [vmem:[#allocation2 + $0x121] sm:$0xff] %v274
    %307 = vst [vmem:[#allocation2 + $0x129] sm:$0xff] %v275
    %308 = vst [vmem:[#allocation2 + $0x139] sm:$0xff] %v276
    %309 = vst [vmem:[#allocation2 + $0x141] sm:$0xff] %v277
    %310 = vst [vmem:[#allocation2 + $0x151] sm:$0xff] %v278
    %311 = vst [vmem:[#allocation2 + $0x159] sm:$0xff] %v279
    %312 = vst [vmem:[#allocation2 + $0x169] sm:$0xff] %v280
    %313 = vst [vmem:[#allocation2 + $0x171] sm:$0xff] %v281
    %v314 = vld [vmem:[#allocation2] sm:$0xff]
    %v315 = vld [vmem:[#allocation2 + $0x8] sm:$0xff]
    %v316 = vld [vmem:[#allocation2 + $0x18] sm:$0xff]
    %v317 = vld [vmem:[#allocation2 + $0x20] sm:$0xff]
    %v318 = vld [vmem:[#allocation2 + $0x30] sm:$0xff]
    %v319 = vld [vmem:[#allocation2 + $0x38] sm:$0xff]
    %v320 = vld [vmem:[#allocation2 + $0x48] sm:$0xff]
    %v321 = vld [vmem:[#allocation2 + $0x50] sm:$0xff]
    %v322 = vld [vmem:[#allocation2 + $0x60] sm:$0xff]
    %v323 = vld [vmem:[#allocation2 + $0x68] sm:$0xff]
    %v324 = vld [vmem:[#allocation2 + $0x78] sm:$0xff]
    %v325 = vld [vmem:[#allocation2 + $0x80] sm:$0xff]
    %v326 = vld [vmem:[#allocation2 + $0x90] sm:$0xff]
    %v327 = vld [vmem:[#allocation2 + $0x98] sm:$0xff]
    %v328 = vld [vmem:[#allocation2 + $0xa8] sm:$0xff]
    %v329 = vld [vmem:[#allocation2 + $0xb0] sm:$0xff]
    %v330 = vld [vmem:[#allocation2 + $0xc0] sm:$0xff]
    %v331 = vld [vmem:[#allocation2 + $0xc8] sm:$0xff]
    %v332 = vld [vmem:[#allocation2 + $0xd8] sm:$0xff]
    %v333 = vld [vmem:[#allocation2 + $0xe0] sm:$0xff]
    %v334 = vld [vmem:[#allocation2 + $0xf0] sm:$0xff]
    %v335 = vld [vmem:[#allocation2 + $0xf8] sm:$0xff]
    %v336 = vld [vmem:[#allocation2 + $0x108] sm:$0xff]
    %v337 = vld [vmem:[#allocation2 + $0x110] sm:$0xff]
    %v338 = vld [vmem:[#allocation2 + $0x120] sm:$0xff]
    %v339 = vld [vmem:[#allocation2 + $0x128] sm:$0xff]
    %v340 = vld [vmem:[#allocation2 + $0x138] sm:$0xff]
    %v341 = vld [vmem:[#allocation2 + $0x140] sm:$0xff]
    %v342 = vld [vmem:[#allocation2 + $0x150] sm:$0xff]
    %v343 = vld [vmem:[#allocation2 + $0x158] sm:$0xff]
    %v344 = vld [vmem:[#allocation2 + $0x168] sm:$0xff]
    %v345 = vld [vmem:[#allocation2 + $0x170] sm:$0xff]
    %v346 = vpack.c.bf16 %v315, %v314
    %v347 = vpack.c.bf16 %v317, %v316
    %v348 = vpack.c.bf16 %v319, %v318
    %v349 = vpack.c.bf16 %v321, %v320
    %v350 = vpack.c.bf16 %v323, %v322
    %v351 = vpack.c.bf16 %v325, %v324
    %v352 = vpack.c.bf16 %v327, %v326
    %v353 = vpack.c.bf16 %v329, %v328
    %v354 = vpack.c.bf16 %v331, %v330
    %v355 = vpack.c.bf16 %v333, %v332
    %v356 = vpack.c.bf16 %v335, %v334
    %v357 = vpack.c.bf16 %v337, %v336
    %v358 = vpack.c.bf16 %v339, %v338
    %v359 = vpack.c.bf16 %v341, %v340
    %v360 = vpack.c.bf16 %v343, %v342
    %v361 = vpack.c.bf16 %v345, %v344
    %v362 = vld [vmem:[#allocation4] sm:$0xff]
    %v363 = vld [vmem:[#allocation4 + $0x8] sm:$0xff]
    %v364 = vld [vmem:[#allocation4 + $0x10] sm:$0xff]
    %v365 = vld [vmem:[#allocation4 + $0x18] sm:$0xff]
    %v366 = vld [vmem:[#allocation4 + $0x20] sm:$0xff]
    %v367 = vld [vmem:[#allocation4 + $0x28] sm:$0xff]
    %v368 = vld [vmem:[#allocation4 + $0x30] sm:$0xff]
    %v369 = vld [vmem:[#allocation4 + $0x38] sm:$0xff]
    %v370 = vld [vmem:[#allocation4 + $0x40] sm:$0xff]
    %v371 = vld [vmem:[#allocation4 + $0x48] sm:$0xff]
    %v372 = vld [vmem:[#allocation4 + $0x50] sm:$0xff]
    %v373 = vld [vmem:[#allocation4 + $0x58] sm:$0xff]
    %v374 = vld [vmem:[#allocation4 + $0x60] sm:$0xff]
    %v375 = vld [vmem:[#allocation4 + $0x68] sm:$0xff]
    %v376 = vld [vmem:[#allocation4 + $0x70] sm:$0xff]
    %v377 = vld [vmem:[#allocation4 + $0x78] sm:$0xff]
    %v378 = vld [vmem:[#allocation2 + $0x1] sm:$0xff]
    %v379 = vld [vmem:[#allocation2 + $0x9] sm:$0xff]
    %v380 = vld [vmem:[#allocation2 + $0x19] sm:$0xff]
    %v381 = vld [vmem:[#allocation2 + $0x21] sm:$0xff]
    %v382 = vld [vmem:[#allocation2 + $0x31] sm:$0xff]
    %v383 = vld [vmem:[#allocation2 + $0x39] sm:$0xff]
    %v384 = vld [vmem:[#allocation2 + $0x49] sm:$0xff]
    %v385 = vld [vmem:[#allocation2 + $0x51] sm:$0xff]
    %v386 = vld [vmem:[#allocation2 + $0x61] sm:$0xff]
    %v387 = vld [vmem:[#allocation2 + $0x69] sm:$0xff]
    %v388 = vld [vmem:[#allocation2 + $0x79] sm:$0xff]
    %v389 = vld [vmem:[#allocation2 + $0x81] sm:$0xff]
    %v390 = vld [vmem:[#allocation2 + $0x91] sm:$0xff]
    %v391 = vld [vmem:[#allocation2 + $0x99] sm:$0xff]
    %v392 = vld [vmem:[#allocation2 + $0xa9] sm:$0xff]
    %v393 = vld [vmem:[#allocation2 + $0xb1] sm:$0xff]
    %v394 = vld [vmem:[#allocation2 + $0xc1] sm:$0xff]
    %v395 = vld [vmem:[#allocation2 + $0xc9] sm:$0xff]
    %v396 = vld [vmem:[#allocation2 + $0xd9] sm:$0xff]
    %v397 = vld [vmem:[#allocation2 + $0xe1] sm:$0xff]
    %v398 = vld [vmem:[#allocation2 + $0xf1] sm:$0xff]
    %v399 = vld [vmem:[#allocation2 + $0xf9] sm:$0xff]
    %v400 = vld [vmem:[#allocation2 + $0x109] sm:$0xff]
    %v401 = vld [vmem:[#allocation2 + $0x111] sm:$0xff]
    %v402 = vld [vmem:[#allocation2 + $0x121] sm:$0xff]
    %v403 = vld [vmem:[#allocation2 + $0x129] sm:$0xff]
    %v404 = vld [vmem:[#allocation2 + $0x139] sm:$0xff]
    %v405 = vld [vmem:[#allocation2 + $0x141] sm:$0xff]
    %v406 = vld [vmem:[#allocation2 + $0x151] sm:$0xff]
    %v407 = vld [vmem:[#allocation2 + $0x159] sm:$0xff]
    %v408 = vld [vmem:[#allocation2 + $0x169] sm:$0xff]
    %v409 = vld [vmem:[#allocation2 + $0x171] sm:$0xff]
    %v410 = vpack.c.bf16 %v379, %v378
    %v411 = vpack.c.bf16 %v381, %v380
    %v412 = vpack.c.bf16 %v383, %v382
    %v413 = vpack.c.bf16 %v385, %v384
    %v414 = vpack.c.bf16 %v387, %v386
    %v415 = vpack.c.bf16 %v389, %v388
    %v416 = vpack.c.bf16 %v391, %v390
    %v417 = vpack.c.bf16 %v393, %v392
    %v418 = vpack.c.bf16 %v395, %v394
    %v419 = vpack.c.bf16 %v397, %v396
    %v420 = vpack.c.bf16 %v399, %v398
    %v421 = vpack.c.bf16 %v401, %v400
    %v422 = vpack.c.bf16 %v403, %v402
    %v423 = vpack.c.bf16 %v405, %v404
    %v424 = vpack.c.bf16 %v407, %v406
    %v425 = vpack.c.bf16 %v409, %v408
    %s426 = scalar_lea.vmem [#allocation4], 128
    %v427 = vld [vmem:[%s426] sm:$0xff]
    %v428 = vld [vmem:[%s426 + $0x8] sm:$0xff]
    %v429 = vld [vmem:[%s426 + $0x10] sm:$0xff]
    %v430 = vld [vmem:[%s426 + $0x18] sm:$0xff]
    %v431 = vld [vmem:[%s426 + $0x20] sm:$0xff]
    %v432 = vld [vmem:[%s426 + $0x28] sm:$0xff]
    %v433 = vld [vmem:[%s426 + $0x30] sm:$0xff]
    %v434 = vld [vmem:[%s426 + $0x38] sm:$0xff]
    %v435 = vld [vmem:[%s426 + $0x40] sm:$0xff]
    %v436 = vld [vmem:[%s426 + $0x48] sm:$0xff]
    %v437 = vld [vmem:[%s426 + $0x50] sm:$0xff]
    %v438 = vld [vmem:[%s426 + $0x58] sm:$0xff]
    %v439 = vld [vmem:[%s426 + $0x60] sm:$0xff]
    %v440 = vld [vmem:[%s426 + $0x68] sm:$0xff]
    %v441 = vld [vmem:[%s426 + $0x70] sm:$0xff]
    %v442 = vld [vmem:[%s426 + $0x78] sm:$0xff]
    %v459 = vunpack.c.l.b16 %v427
    %v460 = vunpack.c.h.b16 %v427
    %v461 = vunpack.c.l.b16 %v428
    %v462 = vunpack.c.h.b16 %v428
    %v463 = vunpack.c.l.b16 %v429
    %v464 = vunpack.c.h.b16 %v429
    %v465 = vunpack.c.l.b16 %v430
    %v466 = vunpack.c.h.b16 %v430
    %v467 = vunpack.c.l.b16 %v431
    %v468 = vunpack.c.h.b16 %v431
    %v469 = vunpack.c.l.b16 %v432
    %v470 = vunpack.c.h.b16 %v432
    %v471 = vunpack.c.l.b16 %v433
    %v472 = vunpack.c.h.b16 %v433
    %v473 = vunpack.c.l.b16 %v434
    %v474 = vunpack.c.h.b16 %v434
    %v475 = vunpack.c.l.b16 %v435
    %v476 = vunpack.c.h.b16 %v435
    %v477 = vunpack.c.l.b16 %v436
    %v478 = vunpack.c.h.b16 %v436
    %v479 = vunpack.c.l.b16 %v437
    %v480 = vunpack.c.h.b16 %v437
    %v481 = vunpack.c.l.b16 %v438
    %v482 = vunpack.c.h.b16 %v438
    %v483 = vunpack.c.l.b16 %v439
    %v484 = vunpack.c.h.b16 %v439
    %v485 = vunpack.c.l.b16 %v440
    %v486 = vunpack.c.h.b16 %v440
    %v487 = vunpack.c.l.b16 %v441
    %v488 = vunpack.c.h.b16 %v441
    %v489 = vunpack.c.l.b16 %v442
    %v490 = vunpack.c.h.b16 %v442
    %v491 = vpack.c.b16 %v461, %v459
    %v492 = vpack.c.b16 %v462, %v460
    %v493 = vpack.c.b16 %v465, %v463
    %v494 = vpack.c.b16 %v466, %v464
    %v495 = vpack.c.b16 %v469, %v467
    %v496 = vpack.c.b16 %v470, %v468
    %v497 = vpack.c.b16 %v473, %v471
    %v498 = vpack.c.b16 %v474, %v472
    %v499 = vpack.c.b16 %v477, %v475
    %v500 = vpack.c.b16 %v478, %v476
    %v501 = vpack.c.b16 %v481, %v479
    %v502 = vpack.c.b16 %v482, %v480
    %v503 = vpack.c.b16 %v485, %v483
    %v504 = vpack.c.b16 %v486, %v484
    %v505 = vpack.c.b16 %v489, %v487
    %v506 = vpack.c.b16 %v490, %v488
    %523 = vmatprep.subr.bf16.mxu0 %v492
    %524 = vmatpush1.bf16.msra.mxu0 %v491
    %525 = vmatprep.subr.bf16.mxu0 %v494
    %526 = vmatpush1.bf16.msra.mxu0 %v493
    %527 = vmatprep.subr.bf16.mxu0 %v496
    %528 = vmatpush1.bf16.msra.mxu0 %v495
    %529 = vmatprep.subr.bf16.mxu0 %v498
    %530 = vmatpush1.bf16.msra.mxu0 %v497
    %531 = vmatprep.subr.bf16.mxu0 %v500
    %532 = vmatpush1.bf16.msra.mxu0 %v499
    %533 = vmatprep.subr.bf16.mxu0 %v502
    %534 = vmatpush1.bf16.msra.mxu0 %v501
    %535 = vmatprep.subr.bf16.mxu0 %v504
    %536 = vmatpush1.bf16.msra.mxu0 %v503
    %537 = vmatprep.subr.bf16.mxu0 %v506
    %538 = vmatpush1.bf16.msra.mxu0 %v505
    %539 = vmatprep.subr.bf16.mxu0 0
    %540 = vmatpush1.bf16.msra.mxu0 0
    %541 = vmatprep.subr.bf16.mxu0 0
    %542 = vmatpush1.bf16.msra.mxu0 0
    %543 = vmatprep.subr.bf16.mxu0 0
    %544 = vmatpush1.bf16.msra.mxu0 0
    %545 = vmatprep.subr.bf16.mxu0 0
    %546 = vmatpush1.bf16.msra.mxu0 0
    %547 = vmatprep.subr.bf16.mxu0 0
    %548 = vmatpush1.bf16.msra.mxu0 0
    %549 = vmatprep.subr.bf16.mxu0 0
    %550 = vmatpush1.bf16.msra.mxu0 0
    %551 = vmatprep.subr.bf16.mxu0 0
    %552 = vmatpush1.bf16.msra.mxu0 0
    %553 = vmatprep.subr.bf16.mxu0 0
    %554 = vmatpush1.bf16.msra.mxu0 0
    %555 = vmatprep.mubr.bf16.mxu0 0
    %556 = vmatmul.mubr.bf16.gmra.mrb[0].mxu0 %v410
    %v557 = vpop.f32.mrb[0].mxu0
    %v558 = vadd.f32 0.0, %v557
    %v559 = vpop.f32.mrb[0].mxu0
    %v560 = vadd.f32 0.0, %v559
    %v561 = vpop.f32.mrb[0].mxu0
    %v562 = vadd.f32 0.0, %v561
    %v563 = vpop.f32.mrb[0].mxu0
    %v564 = vadd.f32 0.0, %v563
    %565 = vmatprep.mubr.bf16.mxu0 0
    %566 = vmatmul.mubr.bf16.gmra.mrb[0].mxu0 %v411
    %v567 = vpop.f32.mrb[0].mxu0
    %v568 = vadd.f32 0.0, %v567
    %v569 = vpop.f32.mrb[0].mxu0
    %v570 = vadd.f32 0.0, %v569
    %v571 = vpop.f32.mrb[0].mxu0
    %v572 = vadd.f32 0.0, %v571
    %v573 = vpop.f32.mrb[0].mxu0
    %v574 = vadd.f32 0.0, %v573
    %575 = vmatprep.mubr.bf16.mxu0 0
    %576 = vmatmul.mubr.bf16.gmra.mrb[0].mxu0 %v412
    %v577 = vpop.f32.mrb[0].mxu0
    %v578 = vadd.f32 0.0, %v577
    %v579 = vpop.f32.mrb[0].mxu0
    %v580 = vadd.f32 0.0, %v579
    %v581 = vpop.f32.mrb[0].mxu0
    %v582 = vadd.f32 0.0, %v581
    %v583 = vpop.f32.mrb[0].mxu0
    %v584 = vadd.f32 0.0, %v583
    %585 = vmatprep.mubr.bf16.mxu0 0
    %586 = vmatmul.mubr.bf16.gmra.mrb[0].mxu0 %v413
    %v587 = vpop.f32.mrb[0].mxu0
    %v588 = vadd.f32 0.0, %v587
    %v589 = vpop.f32.mrb[0].mxu0
    %v590 = vadd.f32 0.0, %v589
    %v591 = vpop.f32.mrb[0].mxu0
    %v592 = vadd.f32 0.0, %v591
    %v593 = vpop.f32.mrb[0].mxu0
    %v594 = vadd.f32 0.0, %v593
    %595 = vmatprep.mubr.bf16.mxu0 0
    %596 = vmatmul.mubr.bf16.gmra.mrb[0].mxu0 %v414
    %v597 = vpop.f32.mrb[0].mxu0
    %v598 = vadd.f32 0.0, %v597
    %v599 = vpop.f32.mrb[0].mxu0
    %v600 = vadd.f32 0.0, %v599
    %v601 = vpop.f32.mrb[0].mxu0
    %v602 = vadd.f32 0.0, %v601
    %v603 = vpop.f32.mrb[0].mxu0
    %v604 = vadd.f32 0.0, %v603
    %605 = vmatprep.mubr.bf16.mxu0 0
    %606 = vmatmul.mubr.bf16.gmra.mrb[0].mxu0 %v415
    %v607 = vpop.f32.mrb[0].mxu0
    %v608 = vadd.f32 0.0, %v607
    %v609 = vpop.f32.mrb[0].mxu0
    %v610 = vadd.f32 0.0, %v609
    %v611 = vpop.f32.mrb[0].mxu0
    %v612 = vadd.f32 0.0, %v611
    %v613 = vpop.f32.mrb[0].mxu0
    %v614 = vadd.f32 0.0, %v613
    %615 = vmatprep.mubr.bf16.mxu0 0
    %616 = vmatmul.mubr.bf16.gmra.mrb[0].mxu0 %v416
    %v617 = vpop.f32.mrb[0].mxu0
    %v618 = vadd.f32 0.0, %v617
    %v619 = vpop.f32.mrb[0].mxu0
    %v620 = vadd.f32 0.0, %v619
    %v621 = vpop.f32.mrb[0].mxu0
    %v622 = vadd.f32 0.0, %v621
    %v623 = vpop.f32.mrb[0].mxu0
    %v624 = vadd.f32 0.0, %v623
    %625 = vmatprep.mubr.bf16.mxu0 0
    %626 = vmatmul.mubr.bf16.gmra.mrb[0].mxu0 %v417
    %v627 = vpop.f32.mrb[0].mxu0
    %v628 = vadd.f32 0.0, %v627
    %v629 = vpop.f32.mrb[0].mxu0
    %v630 = vadd.f32 0.0, %v629
    %v631 = vpop.f32.mrb[0].mxu0
    %v632 = vadd.f32 0.0, %v631
    %v633 = vpop.f32.mrb[0].mxu0
    %v634 = vadd.f32 0.0, %v633
    %635 = vmatprep.mubr.bf16.mxu0 0
    %636 = vmatmul.mubr.bf16.gmra.mrb[0].mxu0 %v418
    %v637 = vpop.f32.mrb[0].mxu0
    %v638 = vadd.f32 0.0, %v637
    %v639 = vpop.f32.mrb[0].mxu0
    %v640 = vadd.f32 0.0, %v639
    %v641 = vpop.f32.mrb[0].mxu0
    %v642 = vadd.f32 0.0, %v641
    %v643 = vpop.f32.mrb[0].mxu0
    %v644 = vadd.f32 0.0, %v643
    %645 = vmatprep.mubr.bf16.mxu0 0
    %646 = vmatmul.mubr.bf16.gmra.mrb[0].mxu0 %v419
    %v647 = vpop.f32.mrb[0].mxu0
    %v648 = vadd.f32 0.0, %v647
    %v649 = vpop.f32.mrb[0].mxu0
    %v650 = vadd.f32 0.0, %v649
    %v651 = vpop.f32.mrb[0].mxu0
    %v652 = vadd.f32 0.0, %v651
    %v653 = vpop.f32.mrb[0].mxu0
    %v654 = vadd.f32 0.0, %v653
    %655 = vmatprep.mubr.bf16.mxu0 0
    %656 = vmatmul.mubr.bf16.gmra.mrb[0].mxu0 %v420
    %v657 = vpop.f32.mrb[0].mxu0
    %v658 = vadd.f32 0.0, %v657
    %v659 = vpop.f32.mrb[0].mxu0
    %v660 = vadd.f32 0.0, %v659
    %v661 = vpop.f32.mrb[0].mxu0
    %v662 = vadd.f32 0.0, %v661
    %v663 = vpop.f32.mrb[0].mxu0
    %v664 = vadd.f32 0.0, %v663
    %665 = vmatprep.mubr.bf16.mxu0 0
    %666 = vmatmul.mubr.bf16.gmra.mrb[0].mxu0 %v421
    %v667 = vpop.f32.mrb[0].mxu0
    %v668 = vadd.f32 0.0, %v667
    %v669 = vpop.f32.mrb[0].mxu0
    %v670 = vadd.f32 0.0, %v669
    %v671 = vpop.f32.mrb[0].mxu0
    %v672 = vadd.f32 0.0, %v671
    %v673 = vpop.f32.mrb[0].mxu0
    %v674 = vadd.f32 0.0, %v673
    %675 = vmatprep.mubr.bf16.mxu0 0
    %676 = vmatmul.mubr.bf16.gmra.mrb[0].mxu0 %v422
    %v677 = vpop.f32.mrb[0].mxu0
    %v678 = vadd.f32 0.0, %v677
    %v679 = vpop.f32.mrb[0].mxu0
    %v680 = vadd.f32 0.0, %v679
    %v681 = vpop.f32.mrb[0].mxu0
    %v682 = vadd.f32 0.0, %v681
    %v683 = vpop.f32.mrb[0].mxu0
    %v684 = vadd.f32 0.0, %v683
    %685 = vmatprep.mubr.bf16.mxu0 0
    %686 = vmatmul.mubr.bf16.gmra.mrb[0].mxu0 %v423
    %v687 = vpop.f32.mrb[0].mxu0
    %v688 = vadd.f32 0.0, %v687
    %v689 = vpop.f32.mrb[0].mxu0
    %v690 = vadd.f32 0.0, %v689
    %v691 = vpop.f32.mrb[0].mxu0
    %v692 = vadd.f32 0.0, %v691
    %v693 = vpop.f32.mrb[0].mxu0
    %v694 = vadd.f32 0.0, %v693
    %695 = vmatprep.mubr.bf16.mxu0 0
    %696 = vmatmul.mubr.bf16.gmra.mrb[0].mxu0 %v424
    %v697 = vpop.f32.mrb[0].mxu0
    %v698 = vadd.f32 0.0, %v697
    %v699 = vpop.f32.mrb[0].mxu0
    %v700 = vadd.f32 0.0, %v699
    %v701 = vpop.f32.mrb[0].mxu0
    %v702 = vadd.f32 0.0, %v701
    %v703 = vpop.f32.mrb[0].mxu0
    %v704 = vadd.f32 0.0, %v703
    %705 = vmatprep.mubr.bf16.mxu0 0
    %706 = vmatmul.mubr.bf16.gmra.mrb[0].mxu0 %v425
    %v707 = vpop.f32.mrb[0].mxu0
    %v708 = vadd.f32 0.0, %v707
    %v709 = vpop.f32.mrb[0].mxu0
    %v710 = vadd.f32 0.0, %v709
    %v711 = vpop.f32.mrb[0].mxu0
    %v712 = vadd.f32 0.0, %v711
    %v713 = vpop.f32.mrb[0].mxu0
    %v714 = vadd.f32 0.0, %v713
    %715 = vdwg.mxu0
    %v732 = vunpack.c.l.b16 %v362
    %v733 = vunpack.c.h.b16 %v362
    %v734 = vunpack.c.l.b16 %v363
    %v735 = vunpack.c.h.b16 %v363
    %v736 = vunpack.c.l.b16 %v364
    %v737 = vunpack.c.h.b16 %v364
    %v738 = vunpack.c.l.b16 %v365
    %v739 = vunpack.c.h.b16 %v365
    %v740 = vunpack.c.l.b16 %v366
    %v741 = vunpack.c.h.b16 %v366
    %v742 = vunpack.c.l.b16 %v367
    %v743 = vunpack.c.h.b16 %v367
    %v744 = vunpack.c.l.b16 %v368
    %v745 = vunpack.c.h.b16 %v368
    %v746 = vunpack.c.l.b16 %v369
    %v747 = vunpack.c.h.b16 %v369
    %v748 = vunpack.c.l.b16 %v370
    %v749 = vunpack.c.h.b16 %v370
    %v750 = vunpack.c.l.b16 %v371
    %v751 = vunpack.c.h.b16 %v371
    %v752 = vunpack.c.l.b16 %v372
    %v753 = vunpack.c.h.b16 %v372
    %v754 = vunpack.c.l.b16 %v373
    %v755 = vunpack.c.h.b16 %v373
    %v756 = vunpack.c.l.b16 %v374
    %v757 = vunpack.c.h.b16 %v374
    %v758 = vunpack.c.l.b16 %v375
    %v759 = vunpack.c.h.b16 %v375
    %v760 = vunpack.c.l.b16 %v376
    %v761 = vunpack.c.h.b16 %v376
    %v762 = vunpack.c.l.b16 %v377
    %v763 = vunpack.c.h.b16 %v377
    %v764 = vpack.c.b16 %v734, %v732
    %v765 = vpack.c.b16 %v735, %v733
    %v766 = vpack.c.b16 %v738, %v736
    %v767 = vpack.c.b16 %v739, %v737
    %v768 = vpack.c.b16 %v742, %v740
    %v769 = vpack.c.b16 %v743, %v741
    %v770 = vpack.c.b16 %v746, %v744
    %v771 = vpack.c.b16 %v747, %v745
    %v772 = vpack.c.b16 %v750, %v748
    %v773 = vpack.c.b16 %v751, %v749
    %v774 = vpack.c.b16 %v754, %v752
    %v775 = vpack.c.b16 %v755, %v753
    %v776 = vpack.c.b16 %v758, %v756
    %v777 = vpack.c.b16 %v759, %v757
    %v778 = vpack.c.b16 %v762, %v760
    %v779 = vpack.c.b16 %v763, %v761
    %796 = vmatprep.subr.bf16.mxu0 %v765
    %797 = vmatpush1.bf16.msra.mxu0 %v764
    %798 = vmatprep.subr.bf16.mxu0 %v767
    %799 = vmatpush1.bf16.msra.mxu0 %v766
    %800 = vmatprep.subr.bf16.mxu0 %v769
    %801 = vmatpush1.bf16.msra.mxu0 %v768
    %802 = vmatprep.subr.bf16.mxu0 %v771
    %803 = vmatpush1.bf16.msra.mxu0 %v770
    %804 = vmatprep.subr.bf16.mxu0 %v773
    %805 = vmatpush1.bf16.msra.mxu0 %v772
    %806 = vmatprep.subr.bf16.mxu0 %v775
    %807 = vmatpush1.bf16.msra.mxu0 %v774
    %808 = vmatprep.subr.bf16.mxu0 %v777
    %809 = vmatpush1.bf16.msra.mxu0 %v776
    %810 = vmatprep.subr.bf16.mxu0 %v779
    %811 = vmatpush1.bf16.msra.mxu0 %v778
    %812 = vmatprep.subr.bf16.mxu0 0
    %813 = vmatpush1.bf16.msra.mxu0 0
    %814 = vmatprep.subr.bf16.mxu0 0
    %815 = vmatpush1.bf16.msra.mxu0 0
    %816 = vmatprep.subr.bf16.mxu0 0
    %817 = vmatpush1.bf16.msra.mxu0 0
    %818 = vmatprep.subr.bf16.mxu0 0
    %819 = vmatpush1.bf16.msra.mxu0 0
    %820 = vmatprep.subr.bf16.mxu0 0
    %821 = vmatpush1.bf16.msra.mxu0 0
    %822 = vmatprep.subr.bf16.mxu0 0
    %823 = vmatpush1.bf16.msra.mxu0 0
    %824 = vmatprep.subr.bf16.mxu0 0
    %825 = vmatpush1.bf16.msra.mxu0 0
    %826 = vmatprep.subr.bf16.mxu0 0
    %827 = vmatpush1.bf16.msra.mxu0 0
    %828 = vmatprep.mubr.bf16.mxu0 0
    %829 = vmatmul.mubr.bf16.gmra.mrb[0].mxu0 %v346
    %v830 = vpop.f32.mrb[0].mxu0
    %v831 = vadd.f32 %v558, %v830
    %v832 = vpop.f32.mrb[0].mxu0
    %v833 = vadd.f32 %v560, %v832
    %v834 = vpop.f32.mrb[0].mxu0
    %v835 = vadd.f32 %v562, %v834
    %v836 = vpop.f32.mrb[0].mxu0
    %v837 = vadd.f32 %v564, %v836
    %838 = vmatprep.mubr.bf16.mxu0 0
    %839 = vmatmul.mubr.bf16.gmra.mrb[0].mxu0 %v347
    %v840 = vpop.f32.mrb[0].mxu0
    %v841 = vadd.f32 %v568, %v840
    %v842 = vpop.f32.mrb[0].mxu0
    %v843 = vadd.f32 %v570, %v842
    %v844 = vpop.f32.mrb[0].mxu0
    %v845 = vadd.f32 %v572, %v844
    %v846 = vpop.f32.mrb[0].mxu0
    %v847 = vadd.f32 %v574, %v846
    %848 = vmatprep.mubr.bf16.mxu0 0
    %849 = vmatmul.mubr.bf16.gmra.mrb[0].mxu0 %v348
    %v850 = vpop.f32.mrb[0].mxu0
    %v851 = vadd.f32 %v578, %v850
    %v852 = vpop.f32.mrb[0].mxu0
    %v853 = vadd.f32 %v580, %v852
    %v854 = vpop.f32.mrb[0].mxu0
    %v855 = vadd.f32 %v582, %v854
    %v856 = vpop.f32.mrb[0].mxu0
    %v857 = vadd.f32 %v584, %v856
    %858 = vmatprep.mubr.bf16.mxu0 0
    %859 = vmatmul.mubr.bf16.gmra.mrb[0].mxu0 %v349
    %v860 = vpop.f32.mrb[0].mxu0
    %v861 = vadd.f32 %v588, %v860
    %v862 = vpop.f32.mrb[0].mxu0
    %v863 = vadd.f32 %v590, %v862
    %v864 = vpop.f32.mrb[0].mxu0
    %v865 = vadd.f32 %v592, %v864
    %v866 = vpop.f32.mrb[0].mxu0
    %v867 = vadd.f32 %v594, %v866
    %868 = vmatprep.mubr.bf16.mxu0 0
    %869 = vmatmul.mubr.bf16.gmra.mrb[0].mxu0 %v350
    %v870 = vpop.f32.mrb[0].mxu0
    %v871 = vadd.f32 %v598, %v870
    %v872 = vpop.f32.mrb[0].mxu0
    %v873 = vadd.f32 %v600, %v872
    %v874 = vpop.f32.mrb[0].mxu0
    %v875 = vadd.f32 %v602, %v874
    %v876 = vpop.f32.mrb[0].mxu0
    %v877 = vadd.f32 %v604, %v876
    %878 = vmatprep.mubr.bf16.mxu0 0
    %879 = vmatmul.mubr.bf16.gmra.mrb[0].mxu0 %v351
    %v880 = vpop.f32.mrb[0].mxu0
    %v881 = vadd.f32 %v608, %v880
    %v882 = vpop.f32.mrb[0].mxu0
    %v883 = vadd.f32 %v610, %v882
    %v884 = vpop.f32.mrb[0].mxu0
    %v885 = vadd.f32 %v612, %v884
    %v886 = vpop.f32.mrb[0].mxu0
    %v887 = vadd.f32 %v614, %v886
    %888 = vmatprep.mubr.bf16.mxu0 0
    %889 = vmatmul.mubr.bf16.gmra.mrb[0].mxu0 %v352
    %v890 = vpop.f32.mrb[0].mxu0
    %v891 = vadd.f32 %v618, %v890
    %v892 = vpop.f32.mrb[0].mxu0
    %v893 = vadd.f32 %v620, %v892
    %v894 = vpop.f32.mrb[0].mxu0
    %v895 = vadd.f32 %v622, %v894
    %v896 = vpop.f32.mrb[0].mxu0
    %v897 = vadd.f32 %v624, %v896
    %898 = vmatprep.mubr.bf16.mxu0 0
    %899 = vmatmul.mubr.bf16.gmra.mrb[0].mxu0 %v353
    %v900 = vpop.f32.mrb[0].mxu0
    %v901 = vadd.f32 %v628, %v900
    %v902 = vpop.f32.mrb[0].mxu0
    %v903 = vadd.f32 %v630, %v902
    %v904 = vpop.f32.mrb[0].mxu0
    %v905 = vadd.f32 %v632, %v904
    %v906 = vpop.f32.mrb[0].mxu0
    %v907 = vadd.f32 %v634, %v906
    %908 = vmatprep.mubr.bf16.mxu0 0
    %909 = vmatmul.mubr.bf16.gmra.mrb[0].mxu0 %v354
    %v910 = vpop.f32.mrb[0].mxu0
    %v911 = vadd.f32 %v638, %v910
    %v912 = vpop.f32.mrb[0].mxu0
    %v913 = vadd.f32 %v640, %v912
    %v914 = vpop.f32.mrb[0].mxu0
    %v915 = vadd.f32 %v642, %v914
    %v916 = vpop.f32.mrb[0].mxu0
    %v917 = vadd.f32 %v644, %v916
    %918 = vmatprep.mubr.bf16.mxu0 0
    %919 = vmatmul.mubr.bf16.gmra.mrb[0].mxu0 %v355
    %v920 = vpop.f32.mrb[0].mxu0
    %v921 = vadd.f32 %v648, %v920
    %v922 = vpop.f32.mrb[0].mxu0
    %v923 = vadd.f32 %v650, %v922
    %v924 = vpop.f32.mrb[0].mxu0
    %v925 = vadd.f32 %v652, %v924
    %v926 = vpop.f32.mrb[0].mxu0
    %v927 = vadd.f32 %v654, %v926
    %928 = vmatprep.mubr.bf16.mxu0 0
    %929 = vmatmul.mubr.bf16.gmra.mrb[0].mxu0 %v356
    %v930 = vpop.f32.mrb[0].mxu0
    %v931 = vadd.f32 %v658, %v930
    %v932 = vpop.f32.mrb[0].mxu0
    %v933 = vadd.f32 %v660, %v932
    %v934 = vpop.f32.mrb[0].mxu0
    %v935 = vadd.f32 %v662, %v934
    %v936 = vpop.f32.mrb[0].mxu0
    %v937 = vadd.f32 %v664, %v936
    %938 = vmatprep.mubr.bf16.mxu0 0
    %939 = vmatmul.mubr.bf16.gmra.mrb[0].mxu0 %v357
    %v940 = vpop.f32.mrb[0].mxu0
    %v941 = vadd.f32 %v668, %v940
    %v942 = vpop.f32.mrb[0].mxu0
    %v943 = vadd.f32 %v670, %v942
    %v944 = vpop.f32.mrb[0].mxu0
    %v945 = vadd.f32 %v672, %v944
    %v946 = vpop.f32.mrb[0].mxu0
    %v947 = vadd.f32 %v674, %v946
    %948 = vmatprep.mubr.bf16.mxu0 0
    %949 = vmatmul.mubr.bf16.gmra.mrb[0].mxu0 %v358
    %v950 = vpop.f32.mrb[0].mxu0
    %v951 = vadd.f32 %v678, %v950
    %v952 = vpop.f32.mrb[0].mxu0
    %v953 = vadd.f32 %v680, %v952
    %v954 = vpop.f32.mrb[0].mxu0
    %v955 = vadd.f32 %v682, %v954
    %v956 = vpop.f32.mrb[0].mxu0
    %v957 = vadd.f32 %v684, %v956
    %958 = vmatprep.mubr.bf16.mxu0 0
    %959 = vmatmul.mubr.bf16.gmra.mrb[0].mxu0 %v359
    %v960 = vpop.f32.mrb[0].mxu0
    %v961 = vadd.f32 %v688, %v960
    %v962 = vpop.f32.mrb[0].mxu0
    %v963 = vadd.f32 %v690, %v962
    %v964 = vpop.f32.mrb[0].mxu0
    %v965 = vadd.f32 %v692, %v964
    %v966 = vpop.f32.mrb[0].mxu0
    %v967 = vadd.f32 %v694, %v966
    %968 = vmatprep.mubr.bf16.mxu0 0
    %969 = vmatmul.mubr.bf16.gmra.mrb[0].mxu0 %v360
    %v970 = vpop.f32.mrb[0].mxu0
    %v971 = vadd.f32 %v698, %v970
    %v972 = vpop.f32.mrb[0].mxu0
    %v973 = vadd.f32 %v700, %v972
    %v974 = vpop.f32.mrb[0].mxu0
    %v975 = vadd.f32 %v702, %v974
    %v976 = vpop.f32.mrb[0].mxu0
    %v977 = vadd.f32 %v704, %v976
    %978 = vmatprep.mubr.bf16.mxu0 0
    %979 = vmatmul.mubr.bf16.gmra.mrb[0].mxu0 %v361
    %v980 = vpop.f32.mrb[0].mxu0
    %v981 = vadd.f32 %v708, %v980
    %v982 = vpop.f32.mrb[0].mxu0
    %v983 = vadd.f32 %v710, %v982
    %v984 = vpop.f32.mrb[0].mxu0
    %v985 = vadd.f32 %v712, %v984
    %v986 = vpop.f32.mrb[0].mxu0
    %v987 = vadd.f32 %v714, %v986
    %988 = vdwg.mxu0
    %v989 = vld [vmem:[#allocation2 + $0x2] sm:$0xff]
    %v990 = vld [vmem:[#allocation2 + $0xa] sm:$0xff]
    %v991 = vld [vmem:[#allocation2 + $0x1a] sm:$0xff]
    %v992 = vld [vmem:[#allocation2 + $0x22] sm:$0xff]
    %v993 = vld [vmem:[#allocation2 + $0x32] sm:$0xff]
    %v994 = vld [vmem:[#allocation2 + $0x3a] sm:$0xff]
    %v995 = vld [vmem:[#allocation2 + $0x4a] sm:$0xff]
    %v996 = vld [vmem:[#allocation2 + $0x52] sm:$0xff]
    %v997 = vld [vmem:[#allocation2 + $0x62] sm:$0xff]
    %v998 = vld [vmem:[#allocation2 + $0x6a] sm:$0xff]
    %v999 = vld [vmem:[#allocation2 + $0x7a] sm:$0xff]
    %v1000 = vld [vmem:[#allocation2 + $0x82] sm:$0xff]
    %v1001 = vld [vmem:[#allocation2 + $0x92] sm:$0xff]
    %v1002 = vld [vmem:[#allocation2 + $0x9a] sm:$0xff]
    %v1003 = vld [vmem:[#allocation2 + $0xaa] sm:$0xff]
    %v1004 = vld [vmem:[#allocation2 + $0xb2] sm:$0xff]
    %v1005 = vld [vmem:[#allocation2 + $0xc2] sm:$0xff]
    %v1006 = vld [vmem:[#allocation2 + $0xca] sm:$0xff]
    %v1007 = vld [vmem:[#allocation2 + $0xda] sm:$0xff]
    %v1008 = vld [vmem:[#allocation2 + $0xe2] sm:$0xff]
    %v1009 = vld [vmem:[#allocation2 + $0xf2] sm:$0xff]
    %v1010 = vld [vmem:[#allocation2 + $0xfa] sm:$0xff]
    %v1011 = vld [vmem:[#allocation2 + $0x10a] sm:$0xff]
    %v1012 = vld [vmem:[#allocation2 + $0x112] sm:$0xff]
    %v1013 = vld [vmem:[#allocation2 + $0x122] sm:$0xff]
    %v1014 = vld [vmem:[#allocation2 + $0x12a] sm:$0xff]
    %v1015 = vld [vmem:[#allocation2 + $0x13a] sm:$0xff]
    %v1016 = vld [vmem:[#allocation2 + $0x142] sm:$0xff]
    %v1017 = vld [vmem:[#allocation2 + $0x152] sm:$0xff]
    %v1018 = vld [vmem:[#allocation2 + $0x15a] sm:$0xff]
    %v1019 = vld [vmem:[#allocation2 + $0x16a] sm:$0xff]
    %v1020 = vld [vmem:[#allocation2 + $0x172] sm:$0xff]
    %v1021 = vpack.c.bf16 %v990, %v989
    %v1022 = vpack.c.bf16 %v992, %v991
    %v1023 = vpack.c.bf16 %v994, %v993
    %v1024 = vpack.c.bf16 %v996, %v995
    %v1025 = vpack.c.bf16 %v998, %v997
    %v1026 = vpack.c.bf16 %v1000, %v999
    %v1027 = vpack.c.bf16 %v1002, %v1001
    %v1028 = vpack.c.bf16 %v1004, %v1003
    %v1029 = vpack.c.bf16 %v1006, %v1005
    %v1030 = vpack.c.bf16 %v1008, %v1007
    %v1031 = vpack.c.bf16 %v1010, %v1009
    %v1032 = vpack.c.bf16 %v1012, %v1011
    %v1033 = vpack.c.bf16 %v1014, %v1013
    %v1034 = vpack.c.bf16 %v1016, %v1015
    %v1035 = vpack.c.bf16 %v1018, %v1017
    %v1036 = vpack.c.bf16 %v1020, %v1019
    %s1037 = scalar_lea.vmem [#allocation4], 256
    %v1038 = vld [vmem:[%s1037] sm:$0xff]
    %v1039 = vld [vmem:[%s1037 + $0x8] sm:$0xff]
    %v1040 = vld [vmem:[%s1037 + $0x10] sm:$0xff]
    %v1041 = vld [vmem:[%s1037 + $0x18] sm:$0xff]
    %v1042 = vld [vmem:[%s1037 + $0x20] sm:$0xff]
    %v1043 = vld [vmem:[%s1037 + $0x28] sm:$0xff]
    %v1044 = vld [vmem:[%s1037 + $0x30] sm:$0xff]
    %v1045 = vld [vmem:[%s1037 + $0x38] sm:$0xff]
    %v1046 = vld [vmem:[%s1037 + $0x40] sm:$0xff]
    %v1047 = vld [vmem:[%s1037 + $0x48] sm:$0xff]
    %v1048 = vld [vmem:[%s1037 + $0x50] sm:$0xff]
    %v1049 = vld [vmem:[%s1037 + $0x58] sm:$0xff]
    %v1050 = vld [vmem:[%s1037 + $0x60] sm:$0xff]
    %v1051 = vld [vmem:[%s1037 + $0x68] sm:$0xff]
    %v1052 = vld [vmem:[%s1037 + $0x70] sm:$0xff]
    %v1053 = vld [vmem:[%s1037 + $0x78] sm:$0xff]
    %v1070 = vunpack.c.l.b16 %v1038
    %v1071 = vunpack.c.h.b16 %v1038
    %v1072 = vunpack.c.l.b16 %v1039
    %v1073 = vunpack.c.h.b16 %v1039
    %v1074 = vunpack.c.l.b16 %v1040
    %v1075 = vunpack.c.h.b16 %v1040
    %v1076 = vunpack.c.l.b16 %v1041
    %v1077 = vunpack.c.h.b16 %v1041
    %v1078 = vunpack.c.l.b16 %v1042
    %v1079 = vunpack.c.h.b16 %v1042
    %v1080 = vunpack.c.l.b16 %v1043
    %v1081 = vunpack.c.h.b16 %v1043
    %v1082 = vunpack.c.l.b16 %v1044
    %v1083 = vunpack.c.h.b16 %v1044
    %v1084 = vunpack.c.l.b16 %v1045
    %v1085 = vunpack.c.h.b16 %v1045
    %v1086 = vunpack.c.l.b16 %v1046
    %v1087 = vunpack.c.h.b16 %v1046
    %v1088 = vunpack.c.l.b16 %v1047
    %v1089 = vunpack.c.h.b16 %v1047
    %v1090 = vunpack.c.l.b16 %v1048
    %v1091 = vunpack.c.h.b16 %v1048
    %v1092 = vunpack.c.l.b16 %v1049
    %v1093 = vunpack.c.h.b16 %v1049
    %v1094 = vunpack.c.l.b16 %v1050
    %v1095 = vunpack.c.h.b16 %v1050
    %v1096 = vunpack.c.l.b16 %v1051
    %v1097 = vunpack.c.h.b16 %v1051
    %v1098 = vunpack.c.l.b16 %v1052
    %v1099 = vunpack.c.h.b16 %v1052
    %v1100 = vunpack.c.l.b16 %v1053
    %v1101 = vunpack.c.h.b16 %v1053
    %v1102 = vpack.c.b16 %v1072, %v1070
    %v1103 = vpack.c.b16 %v1073, %v1071
    %v1104 = vpack.c.b16 %v1076, %v1074
    %v1105 = vpack.c.b16 %v1077, %v1075
    %v1106 = vpack.c.b16 %v1080, %v1078
    %v1107 = vpack.c.b16 %v1081, %v1079
    %v1108 = vpack.c.b16 %v1084, %v1082
    %v1109 = vpack.c.b16 %v1085, %v1083
    %v1110 = vpack.c.b16 %v1088, %v1086
    %v1111 = vpack.c.b16 %v1089, %v1087
    %v1112 = vpack.c.b16 %v1092, %v1090
    %v1113 = vpack.c.b16 %v1093, %v1091
    %v1114 = vpack.c.b16 %v1096, %v1094
    %v1115 = vpack.c.b16 %v1097, %v1095
    %v1116 = vpack.c.b16 %v1100, %v1098
    %v1117 = vpack.c.b16 %v1101, %v1099
    %1134 = vmatprep.subr.bf16.mxu0 %v1103
    %1135 = vmatpush1.bf16.msra.mxu0 %v1102
    %1136 = vmatprep.subr.bf16.mxu0 %v1105
    %1137 = vmatpush1.bf16.msra.mxu0 %v1104
    %1138 = vmatprep.subr.bf16.mxu0 %v1107
    %1139 = vmatpush1.bf16.msra.mxu0 %v1106
    %1140 = vmatprep.subr.bf16.mxu0 %v1109
    %1141 = vmatpush1.bf16.msra.mxu0 %v1108
    %1142 = vmatprep.subr.bf16.mxu0 %v1111
    %1143 = vmatpush1.bf16.msra.mxu0 %v1110
    %1144 = vmatprep.subr.bf16.mxu0 %v1113
    %1145 = vmatpush1.bf16.msra.mxu0 %v1112
    %1146 = vmatprep.subr.bf16.mxu0 %v1115
    %1147 = vmatpush1.bf16.msra.mxu0 %v1114
    %1148 = vmatprep.subr.bf16.mxu0 %v1117
    %1149 = vmatpush1.bf16.msra.mxu0 %v1116
    %1150 = vmatprep.subr.bf16.mxu0 0
    %1151 = vmatpush1.bf16.msra.mxu0 0
    %1152 = vmatprep.subr.bf16.mxu0 0
    %1153 = vmatpush1.bf16.msra.mxu0 0
    %1154 = vmatprep.subr.bf16.mxu0 0
    %1155 = vmatpush1.bf16.msra.mxu0 0
    %1156 = vmatprep.subr.bf16.mxu0 0
    %1157 = vmatpush1.bf16.msra.mxu0 0
    %1158 = vmatprep.subr.bf16.mxu0 0
    %1159 = vmatpush1.bf16.msra.mxu0 0
    %1160 = vmatprep.subr.bf16.mxu0 0
    %1161 = vmatpush1.bf16.msra.mxu0 0
    %1162 = vmatprep.subr.bf16.mxu0 0
    %1163 = vmatpush1.bf16.msra.mxu0 0
    %1164 = vmatprep.subr.bf16.mxu0 0
    %1165 = vmatpush1.bf16.msra.mxu0 0
    %1166 = vmatprep.mubr.bf16.mxu0 0
    %1167 = vmatmul.mubr.bf16.gmra.mrb[0].mxu0 %v1021
    %v1168 = vpop.f32.mrb[0].mxu0
    %v1169 = vadd.f32 0.0, %v1168
    %v1170 = vpop.f32.mrb[0].mxu0
    %v1171 = vadd.f32 0.0, %v1170
    %v1172 = vpop.f32.mrb[0].mxu0
    %v1173 = vadd.f32 0.0, %v1172
    %v1174 = vpop.f32.mrb[0].mxu0
    %v1175 = vadd.f32 0.0, %v1174
    %1176 = vmatprep.mubr.bf16.mxu0 0
    %1177 = vmatmul.mubr.bf16.gmra.mrb[0].mxu0 %v1022
    %v1178 = vpop.f32.mrb[0].mxu0
    %v1179 = vadd.f32 0.0, %v1178
    %v1180 = vpop.f32.mrb[0].mxu0
    %v1181 = vadd.f32 0.0, %v1180
    %v1182 = vpop.f32.mrb[0].mxu0
    %v1183 = vadd.f32 0.0, %v1182
    %v1184 = vpop.f32.mrb[0].mxu0
    %v1185 = vadd.f32 0.0, %v1184
    %1186 = vmatprep.mubr.bf16.mxu0 0
    %1187 = vmatmul.mubr.bf16.gmra.mrb[0].mxu0 %v1023
    %v1188 = vpop.f32.mrb[0].mxu0
    %v1189 = vadd.f32 0.0, %v1188
    %v1190 = vpop.f32.mrb[0].mxu0
    %v1191 = vadd.f32 0.0, %v1190
    %v1192 = vpop.f32.mrb[0].mxu0
    %v1193 = vadd.f32 0.0, %v1192
    %v1194 = vpop.f32.mrb[0].mxu0
    %v1195 = vadd.f32 0.0, %v1194
    %1196 = vmatprep.mubr.bf16.mxu0 0
    %1197 = vmatmul.mubr.bf16.gmra.mrb[0].mxu0 %v1024
    %v1198 = vpop.f32.mrb[0].mxu0
    %v1199 = vadd.f32 0.0, %v1198
    %v1200 = vpop.f32.mrb[0].mxu0
    %v1201 = vadd.f32 0.0, %v1200
    %v1202 = vpop.f32.mrb[0].mxu0
    %v1203 = vadd.f32 0.0, %v1202
    %v1204 = vpop.f32.mrb[0].mxu0
    %v1205 = vadd.f32 0.0, %v1204
    %1206 = vmatprep.mubr.bf16.mxu0 0
    %1207 = vmatmul.mubr.bf16.gmra.mrb[0].mxu0 %v1025
    %v1208 = vpop.f32.mrb[0].mxu0
    %v1209 = vadd.f32 0.0, %v1208
    %v1210 = vpop.f32.mrb[0].mxu0
    %v1211 = vadd.f32 0.0, %v1210
    %v1212 = vpop.f32.mrb[0].mxu0
    %v1213 = vadd.f32 0.0, %v1212
    %v1214 = vpop.f32.mrb[0].mxu0
    %v1215 = vadd.f32 0.0, %v1214
    %1216 = vmatprep.mubr.bf16.mxu0 0
    %1217 = vmatmul.mubr.bf16.gmra.mrb[0].mxu0 %v1026
    %v1218 = vpop.f32.mrb[0].mxu0
    %v1219 = vadd.f32 0.0, %v1218
    %v1220 = vpop.f32.mrb[0].mxu0
    %v1221 = vadd.f32 0.0, %v1220
    %v1222 = vpop.f32.mrb[0].mxu0
    %v1223 = vadd.f32 0.0, %v1222
    %v1224 = vpop.f32.mrb[0].mxu0
    %v1225 = vadd.f32 0.0, %v1224
    %1226 = vmatprep.mubr.bf16.mxu0 0
    %1227 = vmatmul.mubr.bf16.gmra.mrb[0].mxu0 %v1027
    %v1228 = vpop.f32.mrb[0].mxu0
    %v1229 = vadd.f32 0.0, %v1228
    %v1230 = vpop.f32.mrb[0].mxu0
    %v1231 = vadd.f32 0.0, %v1230
    %v1232 = vpop.f32.mrb[0].mxu0
    %v1233 = vadd.f32 0.0, %v1232
    %v1234 = vpop.f32.mrb[0].mxu0
    %v1235 = vadd.f32 0.0, %v1234
    %1236 = vmatprep.mubr.bf16.mxu0 0
    %1237 = vmatmul.mubr.bf16.gmra.mrb[0].mxu0 %v1028
    %v1238 = vpop.f32.mrb[0].mxu0
    %v1239 = vadd.f32 0.0, %v1238
    %v1240 = vpop.f32.mrb[0].mxu0
    %v1241 = vadd.f32 0.0, %v1240
    %v1242 = vpop.f32.mrb[0].mxu0
    %v1243 = vadd.f32 0.0, %v1242
    %v1244 = vpop.f32.mrb[0].mxu0
    %v1245 = vadd.f32 0.0, %v1244
    %1246 = vmatprep.mubr.bf16.mxu0 0
    %1247 = vmatmul.mubr.bf16.gmra.mrb[0].mxu0 %v1029
    %v1248 = vpop.f32.mrb[0].mxu0
    %v1249 = vadd.f32 0.0, %v1248
    %v1250 = vpop.f32.mrb[0].mxu0
    %v1251 = vadd.f32 0.0, %v1250
    %v1252 = vpop.f32.mrb[0].mxu0
    %v1253 = vadd.f32 0.0, %v1252
    %v1254 = vpop.f32.mrb[0].mxu0
    %v1255 = vadd.f32 0.0, %v1254
    %1256 = vmatprep.mubr.bf16.mxu0 0
    %1257 = vmatmul.mubr.bf16.gmra.mrb[0].mxu0 %v1030
    %v1258 = vpop.f32.mrb[0].mxu0
    %v1259 = vadd.f32 0.0, %v1258
    %v1260 = vpop.f32.mrb[0].mxu0
    %v1261 = vadd.f32 0.0, %v1260
    %v1262 = vpop.f32.mrb[0].mxu0
    %v1263 = vadd.f32 0.0, %v1262
    %v1264 = vpop.f32.mrb[0].mxu0
    %v1265 = vadd.f32 0.0, %v1264
    %1266 = vmatprep.mubr.bf16.mxu0 0
    %1267 = vmatmul.mubr.bf16.gmra.mrb[0].mxu0 %v1031
    %v1268 = vpop.f32.mrb[0].mxu0
    %v1269 = vadd.f32 0.0, %v1268
    %v1270 = vpop.f32.mrb[0].mxu0
    %v1271 = vadd.f32 0.0, %v1270
    %v1272 = vpop.f32.mrb[0].mxu0
    %v1273 = vadd.f32 0.0, %v1272
    %v1274 = vpop.f32.mrb[0].mxu0
    %v1275 = vadd.f32 0.0, %v1274
    %1276 = vmatprep.mubr.bf16.mxu0 0
    %1277 = vmatmul.mubr.bf16.gmra.mrb[0].mxu0 %v1032
    %v1278 = vpop.f32.mrb[0].mxu0
    %v1279 = vadd.f32 0.0, %v1278
    %v1280 = vpop.f32.mrb[0].mxu0
    %v1281 = vadd.f32 0.0, %v1280
    %v1282 = vpop.f32.mrb[0].mxu0
    %v1283 = vadd.f32 0.0, %v1282
    %v1284 = vpop.f32.mrb[0].mxu0
    %v1285 = vadd.f32 0.0, %v1284
    %1286 = vmatprep.mubr.bf16.mxu0 0
    %1287 = vmatmul.mubr.bf16.gmra.mrb[0].mxu0 %v1033
    %v1288 = vpop.f32.mrb[0].mxu0
    %v1289 = vadd.f32 0.0, %v1288
    %v1290 = vpop.f32.mrb[0].mxu0
    %v1291 = vadd.f32 0.0, %v1290
    %v1292 = vpop.f32.mrb[0].mxu0
    %v1293 = vadd.f32 0.0, %v1292
    %v1294 = vpop.f32.mrb[0].mxu0
    %v1295 = vadd.f32 0.0, %v1294
    %1296 = vmatprep.mubr.bf16.mxu0 0
    %1297 = vmatmul.mubr.bf16.gmra.mrb[0].mxu0 %v1034
    %v1298 = vpop.f32.mrb[0].mxu0
    %v1299 = vadd.f32 0.0, %v1298
    %v1300 = vpop.f32.mrb[0].mxu0
    %v1301 = vadd.f32 0.0, %v1300
    %v1302 = vpop.f32.mrb[0].mxu0
    %v1303 = vadd.f32 0.0, %v1302
    %v1304 = vpop.f32.mrb[0].mxu0
    %v1305 = vadd.f32 0.0, %v1304
    %1306 = vmatprep.mubr.bf16.mxu0 0
    %1307 = vmatmul.mubr.bf16.gmra.mrb[0].mxu0 %v1035
    %v1308 = vpop.f32.mrb[0].mxu0
    %v1309 = vadd.f32 0.0, %v1308
    %v1310 = vpop.f32.mrb[0].mxu0
    %v1311 = vadd.f32 0.0, %v1310
    %v1312 = vpop.f32.mrb[0].mxu0
    %v1313 = vadd.f32 0.0, %v1312
    %v1314 = vpop.f32.mrb[0].mxu0
    %v1315 = vadd.f32 0.0, %v1314
    %1316 = vmatprep.mubr.bf16.mxu0 0
    %1317 = vmatmul.mubr.bf16.gmra.mrb[0].mxu0 %v1036
    %v1318 = vpop.f32.mrb[0].mxu0
    %v1319 = vadd.f32 0.0, %v1318
    %v1320 = vpop.f32.mrb[0].mxu0
    %v1321 = vadd.f32 0.0, %v1320
    %v1322 = vpop.f32.mrb[0].mxu0
    %v1323 = vadd.f32 0.0, %v1322
    %v1324 = vpop.f32.mrb[0].mxu0
    %v1325 = vadd.f32 0.0, %v1324
    %1326 = vdwg.mxu0
    %v1327 = vadd.f32 %v831, %v1169
    %v1328 = vadd.f32 %v833, %v1171
    %v1329 = vadd.f32 %v835, %v1173
    %v1330 = vadd.f32 %v837, %v1175
    %v1331 = vadd.f32 %v841, %v1179
    %v1332 = vadd.f32 %v843, %v1181
    %v1333 = vadd.f32 %v845, %v1183
    %v1334 = vadd.f32 %v847, %v1185
    %v1335 = vadd.f32 %v851, %v1189
    %v1336 = vadd.f32 %v853, %v1191
    %v1337 = vadd.f32 %v855, %v1193
    %v1338 = vadd.f32 %v857, %v1195
    %v1339 = vadd.f32 %v861, %v1199
    %v1340 = vadd.f32 %v863, %v1201
    %v1341 = vadd.f32 %v865, %v1203
    %v1342 = vadd.f32 %v867, %v1205
    %v1343 = vadd.f32 %v871, %v1209
    %v1344 = vadd.f32 %v873, %v1211
    %v1345 = vadd.f32 %v875, %v1213
    %v1346 = vadd.f32 %v877, %v1215
    %v1347 = vadd.f32 %v881, %v1219
    %v1348 = vadd.f32 %v883, %v1221
    %v1349 = vadd.f32 %v885, %v1223
    %v1350 = vadd.f32 %v887, %v1225
    %v1351 = vadd.f32 %v891, %v1229
    %v1352 = vadd.f32 %v893, %v1231
    %v1353 = vadd.f32 %v895, %v1233
    %v1354 = vadd.f32 %v897, %v1235
    %v1355 = vadd.f32 %v901, %v1239
    %v1356 = vadd.f32 %v903, %v1241
    %v1357 = vadd.f32 %v905, %v1243
    %v1358 = vadd.f32 %v907, %v1245
    %v1359 = vadd.f32 %v911, %v1249
    %v1360 = vadd.f32 %v913, %v1251
    %v1361 = vadd.f32 %v915, %v1253
    %v1362 = vadd.f32 %v917, %v1255
    %v1363 = vadd.f32 %v921, %v1259
    %v1364 = vadd.f32 %v923, %v1261
    %v1365 = vadd.f32 %v925, %v1263
    %v1366 = vadd.f32 %v927, %v1265
    %v1367 = vadd.f32 %v931, %v1269
    %v1368 = vadd.f32 %v933, %v1271
    %v1369 = vadd.f32 %v935, %v1273
    %v1370 = vadd.f32 %v937, %v1275
    %v1371 = vadd.f32 %v941, %v1279
    %v1372 = vadd.f32 %v943, %v1281
    %v1373 = vadd.f32 %v945, %v1283
    %v1374 = vadd.f32 %v947, %v1285
    %v1375 = vadd.f32 %v951, %v1289
    %v1376 = vadd.f32 %v953, %v1291
    %v1377 = vadd.f32 %v955, %v1293
    %v1378 = vadd.f32 %v957, %v1295
    %v1379 = vadd.f32 %v961, %v1299
    %v1380 = vadd.f32 %v963, %v1301
    %v1381 = vadd.f32 %v965, %v1303
    %v1382 = vadd.f32 %v967, %v1305
    %v1383 = vadd.f32 %v971, %v1309
    %v1384 = vadd.f32 %v973, %v1311
    %v1385 = vadd.f32 %v975, %v1313
    %v1386 = vadd.f32 %v977, %v1315
    %v1387 = vadd.f32 %v981, %v1319
    %v1388 = vadd.f32 %v983, %v1321
    %v1389 = vadd.f32 %v985, %v1323
    %v1390 = vadd.f32 %v987, %v1325
    %v1391 = vld [vmem:[%s2] sm:$0x3]
    %v1393 = vlaneseq
    %v1394 = vshrl.u32 %v1393, 7
    %v1395 = vsub.s32 0, %v1394
    %v1396 = vrot.slane %v1391, %v1395
    %v1397 = vlaneseq
    %v1398 = vshrl.u32 %v1397, 7
    %v1399 = vsub.s32 1, %v1398
    %v1400 = vrot.slane %v1391, %v1399
    %v1403 = vmul.f32 %v1327, %v1396
    %v1404 = vmul.f32 %v1328, %v1400
    %v1405 = vmul.f32 %v1329, %v1396
    %v1406 = vmul.f32 %v1330, %v1400
    %v1407 = vmul.f32 %v1331, %v1396
    %v1408 = vmul.f32 %v1332, %v1400
    %v1409 = vmul.f32 %v1333, %v1396
    %v1410 = vmul.f32 %v1334, %v1400
    %v1411 = vmul.f32 %v1335, %v1396
    %v1412 = vmul.f32 %v1336, %v1400
    %v1413 = vmul.f32 %v1337, %v1396
    %v1414 = vmul.f32 %v1338, %v1400
    %v1415 = vmul.f32 %v1339, %v1396
    %v1416 = vmul.f32 %v1340, %v1400
    %v1417 = vmul.f32 %v1341, %v1396
    %v1418 = vmul.f32 %v1342, %v1400
    %v1419 = vmul.f32 %v1343, %v1396
    %v1420 = vmul.f32 %v1344, %v1400
    %v1421 = vmul.f32 %v1345, %v1396
    %v1422 = vmul.f32 %v1346, %v1400
    %v1423 = vmul.f32 %v1347, %v1396
    %v1424 = vmul.f32 %v1348, %v1400
    %v1425 = vmul.f32 %v1349, %v1396
    %v1426 = vmul.f32 %v1350, %v1400
    %v1427 = vmul.f32 %v1351, %v1396
    %v1428 = vmul.f32 %v1352, %v1400
    %v1429 = vmul.f32 %v1353, %v1396
    %v1430 = vmul.f32 %v1354, %v1400
    %v1431 = vmul.f32 %v1355, %v1396
    %v1432 = vmul.f32 %v1356, %v1400
    %v1433 = vmul.f32 %v1357, %v1396
    %v1434 = vmul.f32 %v1358, %v1400
    %v1435 = vmul.f32 %v1359, %v1396
    %v1436 = vmul.f32 %v1360, %v1400
    %v1437 = vmul.f32 %v1361, %v1396
    %v1438 = vmul.f32 %v1362, %v1400
    %v1439 = vmul.f32 %v1363, %v1396
    %v1440 = vmul.f32 %v1364, %v1400
    %v1441 = vmul.f32 %v1365, %v1396
    %v1442 = vmul.f32 %v1366, %v1400
    %v1443 = vmul.f32 %v1367, %v1396
    %v1444 = vmul.f32 %v1368, %v1400
    %v1445 = vmul.f32 %v1369, %v1396
    %v1446 = vmul.f32 %v1370, %v1400
    %v1447 = vmul.f32 %v1371, %v1396
    %v1448 = vmul.f32 %v1372, %v1400
    %v1449 = vmul.f32 %v1373, %v1396
    %v1450 = vmul.f32 %v1374, %v1400
    %v1451 = vmul.f32 %v1375, %v1396
    %v1452 = vmul.f32 %v1376, %v1400
    %v1453 = vmul.f32 %v1377, %v1396
    %v1454 = vmul.f32 %v1378, %v1400
    %v1455 = vmul.f32 %v1379, %v1396
    %v1456 = vmul.f32 %v1380, %v1400
    %v1457 = vmul.f32 %v1381, %v1396
    %v1458 = vmul.f32 %v1382, %v1400
    %v1459 = vmul.f32 %v1383, %v1396
    %v1460 = vmul.f32 %v1384, %v1400
    %v1461 = vmul.f32 %v1385, %v1396
    %v1462 = vmul.f32 %v1386, %v1400
    %v1463 = vmul.f32 %v1387, %v1396
    %v1464 = vmul.f32 %v1388, %v1400
    %v1465 = vmul.f32 %v1389, %v1396
    %v1466 = vmul.f32 %v1390, %v1400
    %v1467 = vld [vmem:[%s3] sm:$0x3]
    %v1469 = vlaneseq
    %v1470 = vshrl.u32 %v1469, 7
    %v1471 = vsub.s32 0, %v1470
    %v1472 = vrot.slane %v1467, %v1471
    %v1473 = vlaneseq
    %v1474 = vshrl.u32 %v1473, 7
    %v1475 = vsub.s32 1, %v1474
    %v1476 = vrot.slane %v1467, %v1475
    %v1479 = vadd.f32 %v1403, %v1472
    %v1480 = vadd.f32 %v1404, %v1476
    %v1481 = vadd.f32 %v1405, %v1472
    %v1482 = vadd.f32 %v1406, %v1476
    %v1483 = vadd.f32 %v1407, %v1472
    %v1484 = vadd.f32 %v1408, %v1476
    %v1485 = vadd.f32 %v1409, %v1472
    %v1486 = vadd.f32 %v1410, %v1476
    %v1487 = vadd.f32 %v1411, %v1472
    %v1488 = vadd.f32 %v1412, %v1476
    %v1489 = vadd.f32 %v1413, %v1472
    %v1490 = vadd.f32 %v1414, %v1476
    %v1491 = vadd.f32 %v1415, %v1472
    %v1492 = vadd.f32 %v1416, %v1476
    %v1493 = vadd.f32 %v1417, %v1472
    %v1494 = vadd.f32 %v1418, %v1476
    %v1495 = vadd.f32 %v1419, %v1472
    %v1496 = vadd.f32 %v1420, %v1476
    %v1497 = vadd.f32 %v1421, %v1472
    %v1498 = vadd.f32 %v1422, %v1476
    %v1499 = vadd.f32 %v1423, %v1472
    %v1500 = vadd.f32 %v1424, %v1476
    %v1501 = vadd.f32 %v1425, %v1472
    %v1502 = vadd.f32 %v1426, %v1476
    %v1503 = vadd.f32 %v1427, %v1472
    %v1504 = vadd.f32 %v1428, %v1476
    %v1505 = vadd.f32 %v1429, %v1472
    %v1506 = vadd.f32 %v1430, %v1476
    %v1507 = vadd.f32 %v1431, %v1472
    %v1508 = vadd.f32 %v1432, %v1476
    %v1509 = vadd.f32 %v1433, %v1472
    %v1510 = vadd.f32 %v1434, %v1476
    %v1511 = vadd.f32 %v1435, %v1472
    %v1512 = vadd.f32 %v1436, %v1476
    %v1513 = vadd.f32 %v1437, %v1472
    %v1514 = vadd.f32 %v1438, %v1476
    %v1515 = vadd.f32 %v1439, %v1472
    %v1516 = vadd.f32 %v1440, %v1476
    %v1517 = vadd.f32 %v1441, %v1472
    %v1518 = vadd.f32 %v1442, %v1476
    %v1519 = vadd.f32 %v1443, %v1472
    %v1520 = vadd.f32 %v1444, %v1476
    %v1521 = vadd.f32 %v1445, %v1472
    %v1522 = vadd.f32 %v1446, %v1476
    %v1523 = vadd.f32 %v1447, %v1472
    %v1524 = vadd.f32 %v1448, %v1476
    %v1525 = vadd.f32 %v1449, %v1472
    %v1526 = vadd.f32 %v1450, %v1476
    %v1527 = vadd.f32 %v1451, %v1472
    %v1528 = vadd.f32 %v1452, %v1476
    %v1529 = vadd.f32 %v1453, %v1472
    %v1530 = vadd.f32 %v1454, %v1476
    %v1531 = vadd.f32 %v1455, %v1472
    %v1532 = vadd.f32 %v1456, %v1476
    %v1533 = vadd.f32 %v1457, %v1472
    %v1534 = vadd.f32 %v1458, %v1476
    %v1535 = vadd.f32 %v1459, %v1472
    %v1536 = vadd.f32 %v1460, %v1476
    %v1537 = vadd.f32 %v1461, %v1472
    %v1538 = vadd.f32 %v1462, %v1476
    %v1539 = vadd.f32 %v1463, %v1472
    %v1540 = vadd.f32 %v1464, %v1476
    %v1541 = vadd.f32 %v1465, %v1472
    %v1542 = vadd.f32 %v1466, %v1476
    %v1543 = vmax.f32 %v1479, 0.0
    %v1544 = vmax.f32 %v1480, 0.0
    %v1545 = vmax.f32 %v1481, 0.0
    %v1546 = vmax.f32 %v1482, 0.0
    %v1547 = vmax.f32 %v1483, 0.0
    %v1548 = vmax.f32 %v1484, 0.0
    %v1549 = vmax.f32 %v1485, 0.0
    %v1550 = vmax.f32 %v1486, 0.0
    %v1551 = vmax.f32 %v1487, 0.0
    %v1552 = vmax.f32 %v1488, 0.0
    %v1553 = vmax.f32 %v1489, 0.0
    %v1554 = vmax.f32 %v1490, 0.0
    %v1555 = vmax.f32 %v1491, 0.0
    %v1556 = vmax.f32 %v1492, 0.0
    %v1557 = vmax.f32 %v1493, 0.0
    %v1558 = vmax.f32 %v1494, 0.0
    %v1559 = vmax.f32 %v1495, 0.0
    %v1560 = vmax.f32 %v1496, 0.0
    %v1561 = vmax.f32 %v1497, 0.0
    %v1562 = vmax.f32 %v1498, 0.0
    %v1563 = vmax.f32 %v1499, 0.0
    %v1564 = vmax.f32 %v1500, 0.0
    %v1565 = vmax.f32 %v1501, 0.0
    %v1566 = vmax.f32 %v1502, 0.0
    %v1567 = vmax.f32 %v1503, 0.0
    %v1568 = vmax.f32 %v1504, 0.0
    %v1569 = vmax.f32 %v1505, 0.0
    %v1570 = vmax.f32 %v1506, 0.0
    %v1571 = vmax.f32 %v1507, 0.0
    %v1572 = vmax.f32 %v1508, 0.0
    %v1573 = vmax.f32 %v1509, 0.0
    %v1574 = vmax.f32 %v1510, 0.0
    %v1575 = vmax.f32 %v1511, 0.0
    %v1576 = vmax.f32 %v1512, 0.0
    %v1577 = vmax.f32 %v1513, 0.0
    %v1578 = vmax.f32 %v1514, 0.0
    %v1579 = vmax.f32 %v1515, 0.0
    %v1580 = vmax.f32 %v1516, 0.0
    %v1581 = vmax.f32 %v1517, 0.0
    %v1582 = vmax.f32 %v1518, 0.0
    %v1583 = vmax.f32 %v1519, 0.0
    %v1584 = vmax.f32 %v1520, 0.0
    %v1585 = vmax.f32 %v1521, 0.0
    %v1586 = vmax.f32 %v1522, 0.0
    %v1587 = vmax.f32 %v1523, 0.0
    %v1588 = vmax.f32 %v1524, 0.0
    %v1589 = vmax.f32 %v1525, 0.0
    %v1590 = vmax.f32 %v1526, 0.0
    %v1591 = vmax.f32 %v1527, 0.0
    %v1592 = vmax.f32 %v1528, 0.0
    %v1593 = vmax.f32 %v1529, 0.0
    %v1594 = vmax.f32 %v1530, 0.0
    %v1595 = vmax.f32 %v1531, 0.0
    %v1596 = vmax.f32 %v1532, 0.0
    %v1597 = vmax.f32 %v1533, 0.0
    %v1598 = vmax.f32 %v1534, 0.0
    %v1599 = vmax.f32 %v1535, 0.0
    %v1600 = vmax.f32 %v1536, 0.0
    %v1601 = vmax.f32 %v1537, 0.0
    %v1602 = vmax.f32 %v1538, 0.0
    %v1603 = vmax.f32 %v1539, 0.0
    %v1604 = vmax.f32 %v1540, 0.0
    %v1605 = vmax.f32 %v1541, 0.0
    %v1606 = vmax.f32 %v1542, 0.0
    %vm1671 = vcmask 1040384
    %v1672 = vrot.slane %v1543, 7
    %v1673 = vrot.slane %v1544, 7
    %v1674 = vrot.slane %v1545, 7
    %v1675 = vsel %vm1671, %v1672, %v1674
    %v1676 = vrot.slane %v1546, 7
    %v1677 = vsel %vm1671, %v1673, %v1676
    %v1678 = vrot.slane %v1547, 7
    %v1679 = vrot.slane %v1548, 7
    %v1680 = vrot.slane %v1549, 7
    %v1681 = vsel %vm1671, %v1678, %v1680
    %v1682 = vrot.slane %v1550, 7
    %v1683 = vsel %vm1671, %v1679, %v1682
    %v1684 = vrot.slane %v1551, 7
    %v1685 = vrot.slane %v1552, 7
    %v1686 = vrot.slane %v1553, 7
    %v1687 = vsel %vm1671, %v1684, %v1686
    %v1688 = vrot.slane %v1554, 7
    %v1689 = vsel %vm1671, %v1685, %v1688
    %v1690 = vrot.slane %v1555, 7
    %v1691 = vrot.slane %v1556, 7
    %v1692 = vrot.slane %v1557, 7
    %v1693 = vsel %vm1671, %v1690, %v1692
    %v1694 = vrot.slane %v1558, 7
    %v1695 = vsel %vm1671, %v1691, %v1694
    %v1696 = vrot.slane %v1559, 7
    %v1697 = vrot.slane %v1560, 7
    %v1698 = vrot.slane %v1561, 7
    %v1699 = vsel %vm1671, %v1696, %v1698
    %v1700 = vrot.slane %v1562, 7
    %v1701 = vsel %vm1671, %v1697, %v1700
    %v1702 = vrot.slane %v1563, 7
    %v1703 = vrot.slane %v1564, 7
    %v1704 = vrot.slane %v1565, 7
    %v1705 = vsel %vm1671, %v1702, %v1704
    %v1706 = vrot.slane %v1566, 7
    %v1707 = vsel %vm1671, %v1703, %v1706
    %v1708 = vrot.slane %v1567, 7
    %v1709 = vrot.slane %v1568, 7
    %v1710 = vrot.slane %v1569, 7
    %v1711 = vsel %vm1671, %v1708, %v1710
    %v1712 = vrot.slane %v1570, 7
    %v1713 = vsel %vm1671, %v1709, %v1712
    %v1714 = vrot.slane %v1571, 7
    %v1715 = vrot.slane %v1572, 7
    %v1716 = vrot.slane %v1573, 7
    %v1717 = vsel %vm1671, %v1714, %v1716
    %v1718 = vrot.slane %v1574, 7
    %v1719 = vsel %vm1671, %v1715, %v1718
    %v1720 = vrot.slane %v1575, 7
    %v1721 = vrot.slane %v1576, 7
    %v1722 = vrot.slane %v1577, 7
    %v1723 = vsel %vm1671, %v1720, %v1722
    %v1724 = vrot.slane %v1578, 7
    %v1725 = vsel %vm1671, %v1721, %v1724
    %v1726 = vrot.slane %v1579, 7
    %v1727 = vrot.slane %v1580, 7
    %v1728 = vrot.slane %v1581, 7
    %v1729 = vsel %vm1671, %v1726, %v1728
    %v1730 = vrot.slane %v1582, 7
    %v1731 = vsel %vm1671, %v1727, %v1730
    %v1732 = vrot.slane %v1583, 7
    %v1733 = vrot.slane %v1584, 7
    %v1734 = vrot.slane %v1585, 7
    %v1735 = vsel %vm1671, %v1732, %v1734
    %v1736 = vrot.slane %v1586, 7
    %v1737 = vsel %vm1671, %v1733, %v1736
    %v1738 = vrot.slane %v1587, 7
    %v1739 = vrot.slane %v1588, 7
    %v1740 = vrot.slane %v1589, 7
    %v1741 = vsel %vm1671, %v1738, %v1740
    %v1742 = vrot.slane %v1590, 7
    %v1743 = vsel %vm1671, %v1739, %v1742
    %v1744 = vrot.slane %v1591, 7
    %v1745 = vrot.slane %v1592, 7
    %v1746 = vrot.slane %v1593, 7
    %v1747 = vsel %vm1671, %v1744, %v1746
    %v1748 = vrot.slane %v1594, 7
    %v1749 = vsel %vm1671, %v1745, %v1748
    %v1750 = vrot.slane %v1595, 7
    %v1751 = vrot.slane %v1596, 7
    %v1752 = vrot.slane %v1597, 7
    %v1753 = vsel %vm1671, %v1750, %v1752
    %v1754 = vrot.slane %v1598, 7
    %v1755 = vsel %vm1671, %v1751, %v1754
    %v1756 = vrot.slane %v1599, 7
    %v1757 = vrot.slane %v1600, 7
    %v1758 = vrot.slane %v1601, 7
    %v1759 = vsel %vm1671, %v1756, %v1758
    %v1760 = vrot.slane %v1602, 7
    %v1761 = vsel %vm1671, %v1757, %v1760
    %v1762 = vrot.slane %v1603, 7
    %v1763 = vrot.slane %v1604, 7
    %v1764 = vrot.slane %v1605, 7
    %v1765 = vsel %vm1671, %v1762, %v1764
    %v1766 = vrot.slane %v1606, 7
    %v1767 = vsel %vm1671, %v1763, %v1766
    %1864 = vst [vmem:[#allocation3] sm:$0xfe] %v1672
    %1865 = vst [vmem:[#allocation3 + $0x8] sm:$0xfe] %v1673
    %1866 = vst [vmem:[#allocation3 + $0x10] sm:$0xff] %v1675
    %1867 = vst [vmem:[#allocation3 + $0x18] sm:$0xff] %v1677
    %1868 = vst [vmem:[#allocation3 + $0x20] sm:$0x1] %v1674
    %1869 = vst [vmem:[#allocation3 + $0x28] sm:$0x1] %v1676
    %1870 = vst [vmem:[#allocation3 + $0x30] sm:$0xfe] %v1678
    %1871 = vst [vmem:[#allocation3 + $0x38] sm:$0xfe] %v1679
    %1872 = vst [vmem:[#allocation3 + $0x40] sm:$0xff] %v1681
    %1873 = vst [vmem:[#allocation3 + $0x48] sm:$0xff] %v1683
    %1874 = vst [vmem:[#allocation3 + $0x50] sm:$0x1] %v1680
    %1875 = vst [vmem:[#allocation3 + $0x58] sm:$0x1] %v1682
    %1876 = vst [vmem:[#allocation3 + $0x60] sm:$0xfe] %v1684
    %1877 = vst [vmem:[#allocation3 + $0x68] sm:$0xfe] %v1685
    %1878 = vst [vmem:[#allocation3 + $0x70] sm:$0xff] %v1687
    %1879 = vst [vmem:[#allocation3 + $0x78] sm:$0xff] %v1689
    %1880 = vst [vmem:[#allocation3 + $0x80] sm:$0x1] %v1686
    %1881 = vst [vmem:[#allocation3 + $0x88] sm:$0x1] %v1688
    %1882 = vst [vmem:[#allocation3 + $0x90] sm:$0xfe] %v1690
    %1883 = vst [vmem:[#allocation3 + $0x98] sm:$0xfe] %v1691
    %1884 = vst [vmem:[#allocation3 + $0xa0] sm:$0xff] %v1693
    %1885 = vst [vmem:[#allocation3 + $0xa8] sm:$0xff] %v1695
    %1886 = vst [vmem:[#allocation3 + $0xb0] sm:$0x1] %v1692
    %1887 = vst [vmem:[#allocation3 + $0xb8] sm:$0x1] %v1694
    %1888 = vst [vmem:[#allocation3 + $0xc0] sm:$0xfe] %v1696
    %1889 = vst [vmem:[#allocation3 + $0xc8] sm:$0xfe] %v1697
    %1890 = vst [vmem:[#allocation3 + $0xd0] sm:$0xff] %v1699
    %1891 = vst [vmem:[#allocation3 + $0xd8] sm:$0xff] %v1701
    %1892 = vst [vmem:[#allocation3 + $0xe0] sm:$0x1] %v1698
    %1893 = vst [vmem:[#allocation3 + $0xe8] sm:$0x1] %v1700
    %1894 = vst [vmem:[#allocation3 + $0xf0] sm:$0xfe] %v1702
    %1895 = vst [vmem:[#allocation3 + $0xf8] sm:$0xfe] %v1703
    %1896 = vst [vmem:[#allocation3 + $0x100] sm:$0xff] %v1705
    %1897 = vst [vmem:[#allocation3 + $0x108] sm:$0xff] %v1707
    %1898 = vst [vmem:[#allocation3 + $0x110] sm:$0x1] %v1704
    %1899 = vst [vmem:[#allocation3 + $0x118] sm:$0x1] %v1706
    %1900 = vst [vmem:[#allocation3 + $0x120] sm:$0xfe] %v1708
    %1901 = vst [vmem:[#allocation3 + $0x128] sm:$0xfe] %v1709
    %1902 = vst [vmem:[#allocation3 + $0x130] sm:$0xff] %v1711
    %1903 = vst [vmem:[#allocation3 + $0x138] sm:$0xff] %v1713
    %1904 = vst [vmem:[#allocation3 + $0x140] sm:$0x1] %v1710
    %1905 = vst [vmem:[#allocation3 + $0x148] sm:$0x1] %v1712
    %1906 = vst [vmem:[#allocation3 + $0x150] sm:$0xfe] %v1714
    %1907 = vst [vmem:[#allocation3 + $0x158] sm:$0xfe] %v1715
    %1908 = vst [vmem:[#allocation3 + $0x160] sm:$0xff] %v1717
    %1909 = vst [vmem:[#allocation3 + $0x168] sm:$0xff] %v1719
    %1910 = vst [vmem:[#allocation3 + $0x170] sm:$0x1] %v1716
    %1911 = vst [vmem:[#allocation3 + $0x178] sm:$0x1] %v1718
    %1912 = vst [vmem:[#allocation3 + $0x180] sm:$0xfe] %v1720
    %1913 = vst [vmem:[#allocation3 + $0x188] sm:$0xfe] %v1721
    %1914 = vst [vmem:[#allocation3 + $0x190] sm:$0xff] %v1723
    %1915 = vst [vmem:[#allocation3 + $0x198] sm:$0xff] %v1725
    %1916 = vst [vmem:[#allocation3 + $0x1a0] sm:$0x1] %v1722
    %1917 = vst [vmem:[#allocation3 + $0x1a8] sm:$0x1] %v1724
    %1918 = vst [vmem:[#allocation3 + $0x1b0] sm:$0xfe] %v1726
    %1919 = vst [vmem:[#allocation3 + $0x1b8] sm:$0xfe] %v1727
    %1920 = vst [vmem:[#allocation3 + $0x1c0] sm:$0xff] %v1729
    %1921 = vst [vmem:[#allocation3 + $0x1c8] sm:$0xff] %v1731
    %1922 = vst [vmem:[#allocation3 + $0x1d0] sm:$0x1] %v1728
    %1923 = vst [vmem:[#allocation3 + $0x1d8] sm:$0x1] %v1730
    %1924 = vst [vmem:[#allocation3 + $0x1e0] sm:$0xfe] %v1732
    %1925 = vst [vmem:[#allocation3 + $0x1e8] sm:$0xfe] %v1733
    %1926 = vst [vmem:[#allocation3 + $0x1f0] sm:$0xff] %v1735
    %1927 = vst [vmem:[#allocation3 + $0x1f8] sm:$0xff] %v1737
    %1928 = vst [vmem:[#allocation3 + $0x200] sm:$0x1] %v1734
    %1929 = vst [vmem:[#allocation3 + $0x208] sm:$0x1] %v1736
    %1930 = vst [vmem:[#allocation3 + $0x210] sm:$0xfe] %v1738
    %1931 = vst [vmem:[#allocation3 + $0x218] sm:$0xfe] %v1739
    %1932 = vst [vmem:[#allocation3 + $0x220] sm:$0xff] %v1741
    %1933 = vst [vmem:[#allocation3 + $0x228] sm:$0xff] %v1743
    %1934 = vst [vmem:[#allocation3 + $0x230] sm:$0x1] %v1740
    %1935 = vst [vmem:[#allocation3 + $0x238] sm:$0x1] %v1742
    %1936 = vst [vmem:[#allocation3 + $0x240] sm:$0xfe] %v1744
    %1937 = vst [vmem:[#allocation3 + $0x248] sm:$0xfe] %v1745
    %1938 = vst [vmem:[#allocation3 + $0x250] sm:$0xff] %v1747
    %1939 = vst [vmem:[#allocation3 + $0x258] sm:$0xff] %v1749
    %1940 = vst [vmem:[#allocation3 + $0x260] sm:$0x1] %v1746
    %1941 = vst [vmem:[#allocation3 + $0x268] sm:$0x1] %v1748
    %1942 = vst [vmem:[#allocation3 + $0x270] sm:$0xfe] %v1750
    %1943 = vst [vmem:[#allocation3 + $0x278] sm:$0xfe] %v1751
    %1944 = vst [vmem:[#allocation3 + $0x280] sm:$0xff] %v1753
    %1945 = vst [vmem:[#allocation3 + $0x288] sm:$0xff] %v1755
    %1946 = vst [vmem:[#allocation3 + $0x290] sm:$0x1] %v1752
    %1947 = vst [vmem:[#allocation3 + $0x298] sm:$0x1] %v1754
    %1948 = vst [vmem:[#allocation3 + $0x2a0] sm:$0xfe] %v1756
    %1949 = vst [vmem:[#allocation3 + $0x2a8] sm:$0xfe] %v1757
    %1950 = vst [vmem:[#allocation3 + $0x2b0] sm:$0xff] %v1759
    %1951 = vst [vmem:[#allocation3 + $0x2b8] sm:$0xff] %v1761
    %1952 = vst [vmem:[#allocation3 + $0x2c0] sm:$0x1] %v1758
    %1953 = vst [vmem:[#allocation3 + $0x2c8] sm:$0x1] %v1760
    %1954 = vst [vmem:[#allocation3 + $0x2d0] sm:$0xfe] %v1762
    %1955 = vst [vmem:[#allocation3 + $0x2d8] sm:$0xfe] %v1763
    %1956 = vst [vmem:[#allocation3 + $0x2e0] sm:$0xff] %v1765
    %1957 = vst [vmem:[#allocation3 + $0x2e8] sm:$0xff] %v1767
    %1958 = vst [vmem:[#allocation3 + $0x2f0] sm:$0x1] %v1764
    %1959 = vst [vmem:[#allocation3 + $0x2f8] sm:$0x1] %v1766
    %v1960 = vld [vmem:[#allocation3] sm:$0xff]
    %v1961 = vld [vmem:[#allocation3 + $0x8] sm:$0xff]
    %v1962 = vld [vmem:[#allocation3 + $0x10] sm:$0xff]
    %v1963 = vld [vmem:[#allocation3 + $0x18] sm:$0xff]
    %v1964 = vld [vmem:[#allocation3 + $0x30] sm:$0xff]
    %v1965 = vld [vmem:[#allocation3 + $0x38] sm:$0xff]
    %v1966 = vld [vmem:[#allocation3 + $0x40] sm:$0xff]
    %v1967 = vld [vmem:[#allocation3 + $0x48] sm:$0xff]
    %v1968 = vld [vmem:[#allocation3 + $0x60] sm:$0xff]
    %v1969 = vld [vmem:[#allocation3 + $0x68] sm:$0xff]
    %v1970 = vld [vmem:[#allocation3 + $0x70] sm:$0xff]
    %v1971 = vld [vmem:[#allocation3 + $0x78] sm:$0xff]
    %v1972 = vld [vmem:[#allocation3 + $0x90] sm:$0xff]
    %v1973 = vld [vmem:[#allocation3 + $0x98] sm:$0xff]
    %v1974 = vld [vmem:[#allocation3 + $0xa0] sm:$0xff]
    %v1975 = vld [vmem:[#allocation3 + $0xa8] sm:$0xff]
    %v1976 = vld [vmem:[#allocation3 + $0xc0] sm:$0xff]
    %v1977 = vld [vmem:[#allocation3 + $0xc8] sm:$0xff]
    %v1978 = vld [vmem:[#allocation3 + $0xd0] sm:$0xff]
    %v1979 = vld [vmem:[#allocation3 + $0xd8] sm:$0xff]
    %v1980 = vld [vmem:[#allocation3 + $0xf0] sm:$0xff]
    %v1981 = vld [vmem:[#allocation3 + $0xf8] sm:$0xff]
    %v1982 = vld [vmem:[#allocation3 + $0x100] sm:$0xff]
    %v1983 = vld [vmem:[#allocation3 + $0x108] sm:$0xff]
    %v1984 = vld [vmem:[#allocation3 + $0x120] sm:$0xff]
    %v1985 = vld [vmem:[#allocation3 + $0x128] sm:$0xff]
    %v1986 = vld [vmem:[#allocation3 + $0x130] sm:$0xff]
    %v1987 = vld [vmem:[#allocation3 + $0x138] sm:$0xff]
    %v1988 = vld [vmem:[#allocation3 + $0x150] sm:$0xff]
    %v1989 = vld [vmem:[#allocation3 + $0x158] sm:$0xff]
    %v1990 = vld [vmem:[#allocation3 + $0x160] sm:$0xff]
    %v1991 = vld [vmem:[#allocation3 + $0x168] sm:$0xff]
    %v1992 = vld [vmem:[#allocation3 + $0x180] sm:$0xff]
    %v1993 = vld [vmem:[#allocation3 + $0x188] sm:$0xff]
    %v1994 = vld [vmem:[#allocation3 + $0x190] sm:$0xff]
    %v1995 = vld [vmem:[#allocation3 + $0x198] sm:$0xff]
    %v1996 = vld [vmem:[#allocation3 + $0x1b0] sm:$0xff]
    %v1997 = vld [vmem:[#allocation3 + $0x1b8] sm:$0xff]
    %v1998 = vld [vmem:[#allocation3 + $0x1c0] sm:$0xff]
    %v1999 = vld [vmem:[#allocation3 + $0x1c8] sm:$0xff]
    %v2000 = vld [vmem:[#allocation3 + $0x1e0] sm:$0xff]
    %v2001 = vld [vmem:[#allocation3 + $0x1e8] sm:$0xff]
    %v2002 = vld [vmem:[#allocation3 + $0x1f0] sm:$0xff]
    %v2003 = vld [vmem:[#allocation3 + $0x1f8] sm:$0xff]
    %v2004 = vld [vmem:[#allocation3 + $0x210] sm:$0xff]
    %v2005 = vld [vmem:[#allocation3 + $0x218] sm:$0xff]
    %v2006 = vld [vmem:[#allocation3 + $0x220] sm:$0xff]
    %v2007 = vld [vmem:[#allocation3 + $0x228] sm:$0xff]
    %v2008 = vld [vmem:[#allocation3 + $0x240] sm:$0xff]
    %v2009 = vld [vmem:[#allocation3 + $0x248] sm:$0xff]
    %v2010 = vld [vmem:[#allocation3 + $0x250] sm:$0xff]
    %v2011 = vld [vmem:[#allocation3 + $0x258] sm:$0xff]
    %v2012 = vld [vmem:[#allocation3 + $0x270] sm:$0xff]
    %v2013 = vld [vmem:[#allocation3 + $0x278] sm:$0xff]
    %v2014 = vld [vmem:[#allocation3 + $0x280] sm:$0xff]
    %v2015 = vld [vmem:[#allocation3 + $0x288] sm:$0xff]
    %v2016 = vld [vmem:[#allocation3 + $0x2a0] sm:$0xff]
    %v2017 = vld [vmem:[#allocation3 + $0x2a8] sm:$0xff]
    %v2018 = vld [vmem:[#allocation3 + $0x2b0] sm:$0xff]
    %v2019 = vld [vmem:[#allocation3 + $0x2b8] sm:$0xff]
    %v2020 = vld [vmem:[#allocation3 + $0x2d0] sm:$0xff]
    %v2021 = vld [vmem:[#allocation3 + $0x2d8] sm:$0xff]
    %v2022 = vld [vmem:[#allocation3 + $0x2e0] sm:$0xff]
    %v2023 = vld [vmem:[#allocation3 + $0x2e8] sm:$0xff]
    %v2024 = vpack.c.bf16 %v1962, %v1960
    %v2025 = vpack.c.bf16 %v1963, %v1961
    %v2026 = vpack.c.bf16 %v1966, %v1964
    %v2027 = vpack.c.bf16 %v1967, %v1965
    %v2028 = vpack.c.bf16 %v1970, %v1968
    %v2029 = vpack.c.bf16 %v1971, %v1969
    %v2030 = vpack.c.bf16 %v1974, %v1972
    %v2031 = vpack.c.bf16 %v1975, %v1973
    %v2032 = vpack.c.bf16 %v1978, %v1976
    %v2033 = vpack.c.bf16 %v1979, %v1977
    %v2034 = vpack.c.bf16 %v1982, %v1980
    %v2035 = vpack.c.bf16 %v1983, %v1981
    %v2036 = vpack.c.bf16 %v1986, %v1984
    %v2037 = vpack.c.bf16 %v1987, %v1985
    %v2038 = vpack.c.bf16 %v1990, %v1988
    %v2039 = vpack.c.bf16 %v1991, %v1989
    %v2040 = vpack.c.bf16 %v1994, %v1992
    %v2041 = vpack.c.bf16 %v1995, %v1993
    %v2042 = vpack.c.bf16 %v1998, %v1996
    %v2043 = vpack.c.bf16 %v1999, %v1997
    %v2044 = vpack.c.bf16 %v2002, %v2000
    %v2045 = vpack.c.bf16 %v2003, %v2001
    %v2046 = vpack.c.bf16 %v2006, %v2004
    %v2047 = vpack.c.bf16 %v2007, %v2005
    %v2048 = vpack.c.bf16 %v2010, %v2008
    %v2049 = vpack.c.bf16 %v2011, %v2009
    %v2050 = vpack.c.bf16 %v2014, %v2012
    %v2051 = vpack.c.bf16 %v2015, %v2013
    %v2052 = vpack.c.bf16 %v2018, %v2016
    %v2053 = vpack.c.bf16 %v2019, %v2017
    %v2054 = vpack.c.bf16 %v2022, %v2020
    %v2055 = vpack.c.bf16 %v2023, %v2021
    %v2056 = vld [vmem:[#allocation7] sm:$0xff]
    %v2057 = vld [vmem:[#allocation7 + $0x8] sm:$0xff]
    %v2058 = vld [vmem:[#allocation7 + $0x10] sm:$0xff]
    %v2059 = vld [vmem:[#allocation7 + $0x18] sm:$0xff]
    %v2060 = vld [vmem:[#allocation7 + $0x20] sm:$0xff]
    %v2061 = vld [vmem:[#allocation7 + $0x28] sm:$0xff]
    %v2062 = vld [vmem:[#allocation7 + $0x30] sm:$0xff]
    %v2063 = vld [vmem:[#allocation7 + $0x38] sm:$0xff]
    %v2064 = vld [vmem:[#allocation7 + $0x40] sm:$0xff]
    %v2065 = vld [vmem:[#allocation7 + $0x48] sm:$0xff]
    %v2066 = vld [vmem:[#allocation7 + $0x50] sm:$0xff]
    %v2067 = vld [vmem:[#allocation7 + $0x58] sm:$0xff]
    %v2068 = vld [vmem:[#allocation7 + $0x60] sm:$0xff]
    %v2069 = vld [vmem:[#allocation7 + $0x68] sm:$0xff]
    %v2070 = vld [vmem:[#allocation7 + $0x70] sm:$0xff]
    %v2071 = vld [vmem:[#allocation7 + $0x78] sm:$0xff]
    %v2072 = vld [vmem:[#allocation7 + $0x80] sm:$0xff]
    %v2073 = vld [vmem:[#allocation7 + $0x88] sm:$0xff]
    %v2074 = vld [vmem:[#allocation7 + $0x90] sm:$0xff]
    %v2075 = vld [vmem:[#allocation7 + $0x98] sm:$0xff]
    %v2076 = vld [vmem:[#allocation7 + $0xa0] sm:$0xff]
    %v2077 = vld [vmem:[#allocation7 + $0xa8] sm:$0xff]
    %v2078 = vld [vmem:[#allocation7 + $0xb0] sm:$0xff]
    %v2079 = vld [vmem:[#allocation7 + $0xb8] sm:$0xff]
    %v2080 = vld [vmem:[#allocation7 + $0xc0] sm:$0xff]
    %v2081 = vld [vmem:[#allocation7 + $0xc8] sm:$0xff]
    %v2082 = vld [vmem:[#allocation7 + $0xd0] sm:$0xff]
    %v2083 = vld [vmem:[#allocation7 + $0xd8] sm:$0xff]
    %v2084 = vld [vmem:[#allocation7 + $0xe0] sm:$0xff]
    %v2085 = vld [vmem:[#allocation7 + $0xe8] sm:$0xff]
    %v2086 = vld [vmem:[#allocation7 + $0xf0] sm:$0xff]
    %v2087 = vld [vmem:[#allocation7 + $0xf8] sm:$0xff]
    %v2088 = vld [vmem:[#allocation3] sm:$0xfe]
    %v2089 = vld [vmem:[#allocation3 + $0x8] sm:$0xfe]
    %v2090 = vld [vmem:[#allocation3 + $0x20] sm:$0x1]
    %v2091 = vld [vmem:[#allocation3 + $0x28] sm:$0x1]
    %v2092 = vld [vmem:[#allocation3 + $0x30] sm:$0xfe]
    %v2093 = vld [vmem:[#allocation3 + $0x38] sm:$0xfe]
    %v2094 = vld [vmem:[#allocation3 + $0x50] sm:$0x1]
    %v2095 = vld [vmem:[#allocation3 + $0x58] sm:$0x1]
    %v2096 = vld [vmem:[#allocation3 + $0x60] sm:$0xfe]
    %v2097 = vld [vmem:[#allocation3 + $0x68] sm:$0xfe]
    %v2098 = vld [vmem:[#allocation3 + $0x80] sm:$0x1]
    %v2099 = vld [vmem:[#allocation3 + $0x88] sm:$0x1]
    %v2100 = vld [vmem:[#allocation3 + $0x90] sm:$0xfe]
    %v2101 = vld [vmem:[#allocation3 + $0x98] sm:$0xfe]
    %v2102 = vld [vmem:[#allocation3 + $0xb0] sm:$0x1]
    %v2103 = vld [vmem:[#allocation3 + $0xb8] sm:$0x1]
    %v2104 = vld [vmem:[#allocation3 + $0xc0] sm:$0xfe]
    %v2105 = vld [vmem:[#allocation3 + $0xc8] sm:$0xfe]
    %v2106 = vld [vmem:[#allocation3 + $0xe0] sm:$0x1]
    %v2107 = vld [vmem:[#allocation3 + $0xe8] sm:$0x1]
    %v2108 = vld [vmem:[#allocation3 + $0xf0] sm:$0xfe]
    %v2109 = vld [vmem:[#allocation3 + $0xf8] sm:$0xfe]
    %v2110 = vld [vmem:[#allocation3 + $0x110] sm:$0x1]
    %v2111 = vld [vmem:[#allocation3 + $0x118] sm:$0x1]
    %v2112 = vld [vmem:[#allocation3 + $0x120] sm:$0xfe]
    %v2113 = vld [vmem:[#allocation3 + $0x128] sm:$0xfe]
    %v2114 = vld [vmem:[#allocation3 + $0x140] sm:$0x1]
    %v2115 = vld [vmem:[#allocation3 + $0x148] sm:$0x1]
    %v2116 = vld [vmem:[#allocation3 + $0x150] sm:$0xfe]
    %v2117 = vld [vmem:[#allocation3 + $0x158] sm:$0xfe]
    %v2118 = vld [vmem:[#allocation3 + $0x170] sm:$0x1]
    %v2119 = vld [vmem:[#allocation3 + $0x178] sm:$0x1]
    %v2120 = vld [vmem:[#allocation3 + $0x180] sm:$0xfe]
    %v2121 = vld [vmem:[#allocation3 + $0x188] sm:$0xfe]
    %v2122 = vld [vmem:[#allocation3 + $0x1a0] sm:$0x1]
    %v2123 = vld [vmem:[#allocation3 + $0x1a8] sm:$0x1]
    %v2124 = vld [vmem:[#allocation3 + $0x1b0] sm:$0xfe]
    %v2125 = vld [vmem:[#allocation3 + $0x1b8] sm:$0xfe]
    %v2126 = vld [vmem:[#allocation3 + $0x1d0] sm:$0x1]
    %v2127 = vld [vmem:[#allocation3 + $0x1d8] sm:$0x1]
    %v2128 = vld [vmem:[#allocation3 + $0x1e0] sm:$0xfe]
    %v2129 = vld [vmem:[#allocation3 + $0x1e8] sm:$0xfe]
    %v2130 = vld [vmem:[#allocation3 + $0x200] sm:$0x1]
    %v2131 = vld [vmem:[#allocation3 + $0x208] sm:$0x1]
    %v2132 = vld [vmem:[#allocation3 + $0x210] sm:$0xfe]
    %v2133 = vld [vmem:[#allocation3 + $0x218] sm:$0xfe]
    %v2134 = vld [vmem:[#allocation3 + $0x230] sm:$0x1]
    %v2135 = vld [vmem:[#allocation3 + $0x238] sm:$0x1]
    %v2136 = vld [vmem:[#allocation3 + $0x240] sm:$0xfe]
    %v2137 = vld [vmem:[#allocation3 + $0x248] sm:$0xfe]
    %v2138 = vld [vmem:[#allocation3 + $0x260] sm:$0x1]
    %v2139 = vld [vmem:[#allocation3 + $0x268] sm:$0x1]
    %v2140 = vld [vmem:[#allocation3 + $0x270] sm:$0xfe]
    %v2141 = vld [vmem:[#allocation3 + $0x278] sm:$0xfe]
    %v2142 = vld [vmem:[#allocation3 + $0x290] sm:$0x1]
    %v2143 = vld [vmem:[#allocation3 + $0x298] sm:$0x1]
    %v2144 = vld [vmem:[#allocation3 + $0x2a0] sm:$0xfe]
    %v2145 = vld [vmem:[#allocation3 + $0x2a8] sm:$0xfe]
    %v2146 = vld [vmem:[#allocation3 + $0x2c0] sm:$0x1]
    %v2147 = vld [vmem:[#allocation3 + $0x2c8] sm:$0x1]
    %v2148 = vld [vmem:[#allocation3 + $0x2d0] sm:$0xfe]
    %v2149 = vld [vmem:[#allocation3 + $0x2d8] sm:$0xfe]
    %v2150 = vld [vmem:[#allocation3 + $0x2f0] sm:$0x1]
    %v2151 = vld [vmem:[#allocation3 + $0x2f8] sm:$0x1]
    %vm2248 = vcmask 1046528
    %v2249 = vrot.slane %v2088, 1
    %v2250 = vrot.slane %v1962, 1
    %v2251 = vsel %vm2248, %v2249, %v2250
    %v2252 = vrot.slane %v2089, 1
    %v2253 = vrot.slane %v1963, 1
    %v2254 = vsel %vm2248, %v2252, %v2253
    %v2255 = vrot.slane %v2090, 1
    %v2256 = vsel %vm2248, %v2250, %v2255
    %v2257 = vrot.slane %v2091, 1
    %v2258 = vsel %vm2248, %v2253, %v2257
    %v2259 = vrot.slane %v2092, 1
    %v2260 = vrot.slane %v1966, 1
    %v2261 = vsel %vm2248, %v2259, %v2260
    %v2262 = vrot.slane %v2093, 1
    %v2263 = vrot.slane %v1967, 1
    %v2264 = vsel %vm2248, %v2262, %v2263
    %v2265 = vrot.slane %v2094, 1
    %v2266 = vsel %vm2248, %v2260, %v2265
    %v2267 = vrot.slane %v2095, 1
    %v2268 = vsel %vm2248, %v2263, %v2267
    %v2269 = vrot.slane %v2096, 1
    %v2270 = vrot.slane %v1970, 1
    %v2271 = vsel %vm2248, %v2269, %v2270
    %v2272 = vrot.slane %v2097, 1
    %v2273 = vrot.slane %v1971, 1
    %v2274 = vsel %vm2248, %v2272, %v2273
    %v2275 = vrot.slane %v2098, 1
    %v2276 = vsel %vm2248, %v2270, %v2275
    %v2277 = vrot.slane %v2099, 1
    %v2278 = vsel %vm2248, %v2273, %v2277
    %v2279 = vrot.slane %v2100, 1
    %v2280 = vrot.slane %v1974, 1
    %v2281 = vsel %vm2248, %v2279, %v2280
    %v2282 = vrot.slane %v2101, 1
    %v2283 = vrot.slane %v1975, 1
    %v2284 = vsel %vm2248, %v2282, %v2283
    %v2285 = vrot.slane %v2102, 1
    %v2286 = vsel %vm2248, %v2280, %v2285
    %v2287 = vrot.slane %v2103, 1
    %v2288 = vsel %vm2248, %v2283, %v2287
    %v2289 = vrot.slane %v2104, 1
    %v2290 = vrot.slane %v1978, 1
    %v2291 = vsel %vm2248, %v2289, %v2290
    %v2292 = vrot.slane %v2105, 1
    %v2293 = vrot.slane %v1979, 1
    %v2294 = vsel %vm2248, %v2292, %v2293
    %v2295 = vrot.slane %v2106, 1
    %v2296 = vsel %vm2248, %v2290, %v2295
    %v2297 = vrot.slane %v2107, 1
    %v2298 = vsel %vm2248, %v2293, %v2297
    %v2299 = vrot.slane %v2108, 1
    %v2300 = vrot.slane %v1982, 1
    %v2301 = vsel %vm2248, %v2299, %v2300
    %v2302 = vrot.slane %v2109, 1
    %v2303 = vrot.slane %v1983, 1
    %v2304 = vsel %vm2248, %v2302, %v2303
    %v2305 = vrot.slane %v2110, 1
    %v2306 = vsel %vm2248, %v2300, %v2305
    %v2307 = vrot.slane %v2111, 1
    %v2308 = vsel %vm2248, %v2303, %v2307
    %v2309 = vrot.slane %v2112, 1
    %v2310 = vrot.slane %v1986, 1
    %v2311 = vsel %vm2248, %v2309, %v2310
    %v2312 = vrot.slane %v2113, 1
    %v2313 = vrot.slane %v1987, 1
    %v2314 = vsel %vm2248, %v2312, %v2313
    %v2315 = vrot.slane %v2114, 1
    %v2316 = vsel %vm2248, %v2310, %v2315
    %v2317 = vrot.slane %v2115, 1
    %v2318 = vsel %vm2248, %v2313, %v2317
    %v2319 = vrot.slane %v2116, 1
    %v2320 = vrot.slane %v1990, 1
    %v2321 = vsel %vm2248, %v2319, %v2320
    %v2322 = vrot.slane %v2117, 1
    %v2323 = vrot.slane %v1991, 1
    %v2324 = vsel %vm2248, %v2322, %v2323
    %v2325 = vrot.slane %v2118, 1
    %v2326 = vsel %vm2248, %v2320, %v2325
    %v2327 = vrot.slane %v2119, 1
    %v2328 = vsel %vm2248, %v2323, %v2327
    %v2329 = vrot.slane %v2120, 1
    %v2330 = vrot.slane %v1994, 1
    %v2331 = vsel %vm2248, %v2329, %v2330
    %v2332 = vrot.slane %v2121, 1
    %v2333 = vrot.slane %v1995, 1
    %v2334 = vsel %vm2248, %v2332, %v2333
    %v2335 = vrot.slane %v2122, 1
    %v2336 = vsel %vm2248, %v2330, %v2335
    %v2337 = vrot.slane %v2123, 1
    %v2338 = vsel %vm2248, %v2333, %v2337
    %v2339 = vrot.slane %v2124, 1
    %v2340 = vrot.slane %v1998, 1
    %v2341 = vsel %vm2248, %v2339, %v2340
    %v2342 = vrot.slane %v2125, 1
    %v2343 = vrot.slane %v1999, 1
    %v2344 = vsel %vm2248, %v2342, %v2343
    %v2345 = vrot.slane %v2126, 1
    %v2346 = vsel %vm2248, %v2340, %v2345
    %v2347 = vrot.slane %v2127, 1
    %v2348 = vsel %vm2248, %v2343, %v2347
    %v2349 = vrot.slane %v2128, 1
    %v2350 = vrot.slane %v2002, 1
    %v2351 = vsel %vm2248, %v2349, %v2350
    %v2352 = vrot.slane %v2129, 1
    %v2353 = vrot.slane %v2003, 1
    %v2354 = vsel %vm2248, %v2352, %v2353
    %v2355 = vrot.slane %v2130, 1
    %v2356 = vsel %vm2248, %v2350, %v2355
    %v2357 = vrot.slane %v2131, 1
    %v2358 = vsel %vm2248, %v2353, %v2357
    %v2359 = vrot.slane %v2132, 1
    %v2360 = vrot.slane %v2006, 1
    %v2361 = vsel %vm2248, %v2359, %v2360
    %v2362 = vrot.slane %v2133, 1
    %v2363 = vrot.slane %v2007, 1
    %v2364 = vsel %vm2248, %v2362, %v2363
    %v2365 = vrot.slane %v2134, 1
    %v2366 = vsel %vm2248, %v2360, %v2365
    %v2367 = vrot.slane %v2135, 1
    %v2368 = vsel %vm2248, %v2363, %v2367
    %v2369 = vrot.slane %v2136, 1
    %v2370 = vrot.slane %v2010, 1
    %v2371 = vsel %vm2248, %v2369, %v2370
    %v2372 = vrot.slane %v2137, 1
    %v2373 = vrot.slane %v2011, 1
    %v2374 = vsel %vm2248, %v2372, %v2373
    %v2375 = vrot.slane %v2138, 1
    %v2376 = vsel %vm2248, %v2370, %v2375
    %v2377 = vrot.slane %v2139, 1
    %v2378 = vsel %vm2248, %v2373, %v2377
    %v2379 = vrot.slane %v2140, 1
    %v2380 = vrot.slane %v2014, 1
    %v2381 = vsel %vm2248, %v2379, %v2380
    %v2382 = vrot.slane %v2141, 1
    %v2383 = vrot.slane %v2015, 1
    %v2384 = vsel %vm2248, %v2382, %v2383
    %v2385 = vrot.slane %v2142, 1
    %v2386 = vsel %vm2248, %v2380, %v2385
    %v2387 = vrot.slane %v2143, 1
    %v2388 = vsel %vm2248, %v2383, %v2387
    %v2389 = vrot.slane %v2144, 1
    %v2390 = vrot.slane %v2018, 1
    %v2391 = vsel %vm2248, %v2389, %v2390
    %v2392 = vrot.slane %v2145, 1
    %v2393 = vrot.slane %v2019, 1
    %v2394 = vsel %vm2248, %v2392, %v2393
    %v2395 = vrot.slane %v2146, 1
    %v2396 = vsel %vm2248, %v2390, %v2395
    %v2397 = vrot.slane %v2147, 1
    %v2398 = vsel %vm2248, %v2393, %v2397
    %v2399 = vrot.slane %v2148, 1
    %v2400 = vrot.slane %v2022, 1
    %v2401 = vsel %vm2248, %v2399, %v2400
    %v2402 = vrot.slane %v2149, 1
    %v2403 = vrot.slane %v2023, 1
    %v2404 = vsel %vm2248, %v2402, %v2403
    %v2405 = vrot.slane %v2150, 1
    %v2406 = vsel %vm2248, %v2400, %v2405
    %v2407 = vrot.slane %v2151, 1
    %v2408 = vsel %vm2248, %v2403, %v2407
    %v2473 = vpack.c.bf16 %v2256, %v2251
    %v2474 = vpack.c.bf16 %v2258, %v2254
    %v2475 = vpack.c.bf16 %v2266, %v2261
    %v2476 = vpack.c.bf16 %v2268, %v2264
    %v2477 = vpack.c.bf16 %v2276, %v2271
    %v2478 = vpack.c.bf16 %v2278, %v2274
    %v2479 = vpack.c.bf16 %v2286, %v2281
    %v2480 = vpack.c.bf16 %v2288, %v2284
    %v2481 = vpack.c.bf16 %v2296, %v2291
    %v2482 = vpack.c.bf16 %v2298, %v2294
    %v2483 = vpack.c.bf16 %v2306, %v2301
    %v2484 = vpack.c.bf16 %v2308, %v2304
    %v2485 = vpack.c.bf16 %v2316, %v2311
    %v2486 = vpack.c.bf16 %v2318, %v2314
    %v2487 = vpack.c.bf16 %v2326, %v2321
    %v2488 = vpack.c.bf16 %v2328, %v2324
    %v2489 = vpack.c.bf16 %v2336, %v2331
    %v2490 = vpack.c.bf16 %v2338, %v2334
    %v2491 = vpack.c.bf16 %v2346, %v2341
    %v2492 = vpack.c.bf16 %v2348, %v2344
    %v2493 = vpack.c.bf16 %v2356, %v2351
    %v2494 = vpack.c.bf16 %v2358, %v2354
    %v2495 = vpack.c.bf16 %v2366, %v2361
    %v2496 = vpack.c.bf16 %v2368, %v2364
    %v2497 = vpack.c.bf16 %v2376, %v2371
    %v2498 = vpack.c.bf16 %v2378, %v2374
    %v2499 = vpack.c.bf16 %v2386, %v2381
    %v2500 = vpack.c.bf16 %v2388, %v2384
    %v2501 = vpack.c.bf16 %v2396, %v2391
    %v2502 = vpack.c.bf16 %v2398, %v2394
    %v2503 = vpack.c.bf16 %v2406, %v2401
    %v2504 = vpack.c.bf16 %v2408, %v2404
    %s2505 = scalar_lea.vmem [#allocation7], 256
    %v2506 = vld [vmem:[%s2505] sm:$0xff]
    %v2507 = vld [vmem:[%s2505 + $0x8] sm:$0xff]
    %v2508 = vld [vmem:[%s2505 + $0x10] sm:$0xff]
    %v2509 = vld [vmem:[%s2505 + $0x18] sm:$0xff]
    %v2510 = vld [vmem:[%s2505 + $0x20] sm:$0xff]
    %v2511 = vld [vmem:[%s2505 + $0x28] sm:$0xff]
    %v2512 = vld [vmem:[%s2505 + $0x30] sm:$0xff]
    %v2513 = vld [vmem:[%s2505 + $0x38] sm:$0xff]
    %v2514 = vld [vmem:[%s2505 + $0x40] sm:$0xff]
    %v2515 = vld [vmem:[%s2505 + $0x48] sm:$0xff]
    %v2516 = vld [vmem:[%s2505 + $0x50] sm:$0xff]
    %v2517 = vld [vmem:[%s2505 + $0x58] sm:$0xff]
    %v2518 = vld [vmem:[%s2505 + $0x60] sm:$0xff]
    %v2519 = vld [vmem:[%s2505 + $0x68] sm:$0xff]
    %v2520 = vld [vmem:[%s2505 + $0x70] sm:$0xff]
    %v2521 = vld [vmem:[%s2505 + $0x78] sm:$0xff]
    %v2522 = vld [vmem:[%s2505 + $0x80] sm:$0xff]
    %v2523 = vld [vmem:[%s2505 + $0x88] sm:$0xff]
    %v2524 = vld [vmem:[%s2505 + $0x90] sm:$0xff]
    %v2525 = vld [vmem:[%s2505 + $0x98] sm:$0xff]
    %v2526 = vld [vmem:[%s2505 + $0xa0] sm:$0xff]
    %v2527 = vld [vmem:[%s2505 + $0xa8] sm:$0xff]
    %v2528 = vld [vmem:[%s2505 + $0xb0] sm:$0xff]
    %v2529 = vld [vmem:[%s2505 + $0xb8] sm:$0xff]
    %v2530 = vld [vmem:[%s2505 + $0xc0] sm:$0xff]
    %v2531 = vld [vmem:[%s2505 + $0xc8] sm:$0xff]
    %v2532 = vld [vmem:[%s2505 + $0xd0] sm:$0xff]
    %v2533 = vld [vmem:[%s2505 + $0xd8] sm:$0xff]
    %v2534 = vld [vmem:[%s2505 + $0xe0] sm:$0xff]
    %v2535 = vld [vmem:[%s2505 + $0xe8] sm:$0xff]
    %v2536 = vld [vmem:[%s2505 + $0xf0] sm:$0xff]
    %v2537 = vld [vmem:[%s2505 + $0xf8] sm:$0xff]
    %v2570 = vunpack.c.l.b16 %v2506
    %v2571 = vunpack.c.h.b16 %v2506
    %v2572 = vunpack.c.l.b16 %v2507
    %v2573 = vunpack.c.h.b16 %v2507
    %v2574 = vunpack.c.l.b16 %v2508
    %v2575 = vunpack.c.h.b16 %v2508
    %v2576 = vunpack.c.l.b16 %v2509
    %v2577 = vunpack.c.h.b16 %v2509
    %v2578 = vunpack.c.l.b16 %v2510
    %v2579 = vunpack.c.h.b16 %v2510
    %v2580 = vunpack.c.l.b16 %v2511
    %v2581 = vunpack.c.h.b16 %v2511
    %v2582 = vunpack.c.l.b16 %v2512
    %v2583 = vunpack.c.h.b16 %v2512
    %v2584 = vunpack.c.l.b16 %v2513
    %v2585 = vunpack.c.h.b16 %v2513
    %v2586 = vunpack.c.l.b16 %v2514
    %v2587 = vunpack.c.h.b16 %v2514
    %v2588 = vunpack.c.l.b16 %v2515
    %v2589 = vunpack.c.h.b16 %v2515
    %v2590 = vunpack.c.l.b16 %v2516
    %v2591 = vunpack.c.h.b16 %v2516
    %v2592 = vunpack.c.l.b16 %v2517
    %v2593 = vunpack.c.h.b16 %v2517
    %v2594 = vunpack.c.l.b16 %v2518
    %v2595 = vunpack.c.h.b16 %v2518
    %v2596 = vunpack.c.l.b16 %v2519
    %v2597 = vunpack.c.h.b16 %v2519
    %v2598 = vunpack.c.l.b16 %v2520
    %v2599 = vunpack.c.h.b16 %v2520
    %v2600 = vunpack.c.l.b16 %v2521
    %v2601 = vunpack.c.h.b16 %v2521
    %v2602 = vunpack.c.l.b16 %v2522
    %v2603 = vunpack.c.h.b16 %v2522
    %v2604 = vunpack.c.l.b16 %v2523
    %v2605 = vunpack.c.h.b16 %v2523
    %v2606 = vunpack.c.l.b16 %v2524
    %v2607 = vunpack.c.h.b16 %v2524
    %v2608 = vunpack.c.l.b16 %v2525
    %v2609 = vunpack.c.h.b16 %v2525
    %v2610 = vunpack.c.l.b16 %v2526
    %v2611 = vunpack.c.h.b16 %v2526
    %v2612 = vunpack.c.l.b16 %v2527
    %v2613 = vunpack.c.h.b16 %v2527
    %v2614 = vunpack.c.l.b16 %v2528
    %v2615 = vunpack.c.h.b16 %v2528
    %v2616 = vunpack.c.l.b16 %v2529
    %v2617 = vunpack.c.h.b16 %v2529
    %v2618 = vunpack.c.l.b16 %v2530
    %v2619 = vunpack.c.h.b16 %v2530
    %v2620 = vunpack.c.l.b16 %v2531
    %v2621 = vunpack.c.h.b16 %v2531
    %v2622 = vunpack.c.l.b16 %v2532
    %v2623 = vunpack.c.h.b16 %v2532
    %v2624 = vunpack.c.l.b16 %v2533
    %v2625 = vunpack.c.h.b16 %v2533
    %v2626 = vunpack.c.l.b16 %v2534
    %v2627 = vunpack.c.h.b16 %v2534
    %v2628 = vunpack.c.l.b16 %v2535
    %v2629 = vunpack.c.h.b16 %v2535
    %v2630 = vunpack.c.l.b16 %v2536
    %v2631 = vunpack.c.h.b16 %v2536
    %v2632 = vunpack.c.l.b16 %v2537
    %v2633 = vunpack.c.h.b16 %v2537
    %v2634 = vpack.c.b16 %v2572, %v2570
    %v2635 = vpack.c.b16 %v2573, %v2571
    %v2636 = vpack.c.b16 %v2576, %v2574
    %v2637 = vpack.c.b16 %v2577, %v2575
    %v2638 = vpack.c.b16 %v2580, %v2578
    %v2639 = vpack.c.b16 %v2581, %v2579
    %v2640 = vpack.c.b16 %v2584, %v2582
    %v2641 = vpack.c.b16 %v2585, %v2583
    %v2642 = vpack.c.b16 %v2588, %v2586
    %v2643 = vpack.c.b16 %v2589, %v2587
    %v2644 = vpack.c.b16 %v2592, %v2590
    %v2645 = vpack.c.b16 %v2593, %v2591
    %v2646 = vpack.c.b16 %v2596, %v2594
    %v2647 = vpack.c.b16 %v2597, %v2595
    %v2648 = vpack.c.b16 %v2600, %v2598
    %v2649 = vpack.c.b16 %v2601, %v2599
    %v2650 = vpack.c.b16 %v2604, %v2602
    %v2651 = vpack.c.b16 %v2605, %v2603
    %v2652 = vpack.c.b16 %v2608, %v2606
    %v2653 = vpack.c.b16 %v2609, %v2607
    %v2654 = vpack.c.b16 %v2612, %v2610
    %v2655 = vpack.c.b16 %v2613, %v2611
    %v2656 = vpack.c.b16 %v2616, %v2614
    %v2657 = vpack.c.b16 %v2617, %v2615
    %v2658 = vpack.c.b16 %v2620, %v2618
    %v2659 = vpack.c.b16 %v2621, %v2619
    %v2660 = vpack.c.b16 %v2624, %v2622
    %v2661 = vpack.c.b16 %v2625, %v2623
    %v2662 = vpack.c.b16 %v2628, %v2626
    %v2663 = vpack.c.b16 %v2629, %v2627
    %v2664 = vpack.c.b16 %v2632, %v2630
    %v2665 = vpack.c.b16 %v2633, %v2631
    %2698 = vmatprep.subr.bf16.mxu0 %v2635
    %2699 = vmatpush1.bf16.msra.mxu0 %v2634
    %2700 = vmatprep.subr.bf16.mxu0 %v2637
    %2701 = vmatpush1.bf16.msra.mxu0 %v2636
    %2702 = vmatprep.subr.bf16.mxu0 %v2639
    %2703 = vmatpush1.bf16.msra.mxu0 %v2638
    %2704 = vmatprep.subr.bf16.mxu0 %v2641
    %2705 = vmatpush1.bf16.msra.mxu0 %v2640
    %2706 = vmatprep.subr.bf16.mxu0 %v2643
    %2707 = vmatpush1.bf16.msra.mxu0 %v2642
    %2708 = vmatprep.subr.bf16.mxu0 %v2645
    %2709 = vmatpush1.bf16.msra.mxu0 %v2644
    %2710 = vmatprep.subr.bf16.mxu0 %v2647
    %2711 = vmatpush1.bf16.msra.mxu0 %v2646
    %2712 = vmatprep.subr.bf16.mxu0 %v2649
    %2713 = vmatpush1.bf16.msra.mxu0 %v2648
    %2714 = vmatprep.subr.bf16.mxu0 %v2651
    %2715 = vmatpush1.bf16.msra.mxu0 %v2650
    %2716 = vmatprep.subr.bf16.mxu0 %v2653
    %2717 = vmatpush1.bf16.msra.mxu0 %v2652
    %2718 = vmatprep.subr.bf16.mxu0 %v2655
    %2719 = vmatpush1.bf16.msra.mxu0 %v2654
    %2720 = vmatprep.subr.bf16.mxu0 %v2657
    %2721 = vmatpush1.bf16.msra.mxu0 %v2656
    %2722 = vmatprep.subr.bf16.mxu0 %v2659
    %2723 = vmatpush1.bf16.msra.mxu0 %v2658
    %2724 = vmatprep.subr.bf16.mxu0 %v2661
    %2725 = vmatpush1.bf16.msra.mxu0 %v2660
    %2726 = vmatprep.subr.bf16.mxu0 %v2663
    %2727 = vmatpush1.bf16.msra.mxu0 %v2662
    %2728 = vmatprep.subr.bf16.mxu0 %v2665
    %2729 = vmatpush1.bf16.msra.mxu0 %v2664
    %2730 = vmatprep.mubr.bf16.mxu0 %v2474
    %2731 = vmatmul.mubr.bf16.gmra.mrb[0].mxu0 %v2473
    %v2732 = vpop.f32.mrb[0].mxu0
    %v2733 = vadd.f32 0.0, %v2732
    %v2734 = vpop.f32.mrb[0].mxu0
    %v2735 = vadd.f32 0.0, %v2734
    %v2736 = vpop.f32.mrb[0].mxu0
    %v2737 = vadd.f32 0.0, %v2736
    %v2738 = vpop.f32.mrb[0].mxu0
    %v2739 = vadd.f32 0.0, %v2738
    %2740 = vmatprep.mubr.bf16.mxu0 %v2476
    %2741 = vmatmul.mubr.bf16.gmra.mrb[0].mxu0 %v2475
    %v2742 = vpop.f32.mrb[0].mxu0
    %v2743 = vadd.f32 0.0, %v2742
    %v2744 = vpop.f32.mrb[0].mxu0
    %v2745 = vadd.f32 0.0, %v2744
    %v2746 = vpop.f32.mrb[0].mxu0
    %v2747 = vadd.f32 0.0, %v2746
    %v2748 = vpop.f32.mrb[0].mxu0
    %v2749 = vadd.f32 0.0, %v2748
    %2750 = vmatprep.mubr.bf16.mxu0 %v2478
    %2751 = vmatmul.mubr.bf16.gmra.mrb[0].mxu0 %v2477
    %v2752 = vpop.f32.mrb[0].mxu0
    %v2753 = vadd.f32 0.0, %v2752
    %v2754 = vpop.f32.mrb[0].mxu0
    %v2755 = vadd.f32 0.0, %v2754
    %v2756 = vpop.f32.mrb[0].mxu0
    %v2757 = vadd.f32 0.0, %v2756
    %v2758 = vpop.f32.mrb[0].mxu0
    %v2759 = vadd.f32 0.0, %v2758
    %2760 = vmatprep.mubr.bf16.mxu0 %v2480
    %2761 = vmatmul.mubr.bf16.gmra.mrb[0].mxu0 %v2479
    %v2762 = vpop.f32.mrb[0].mxu0
    %v2763 = vadd.f32 0.0, %v2762
    %v2764 = vpop.f32.mrb[0].mxu0
    %v2765 = vadd.f32 0.0, %v2764
    %v2766 = vpop.f32.mrb[0].mxu0
    %v2767 = vadd.f32 0.0, %v2766
    %v2768 = vpop.f32.mrb[0].mxu0
    %v2769 = vadd.f32 0.0, %v2768
    %2770 = vmatprep.mubr.bf16.mxu0 %v2482
    %2771 = vmatmul.mubr.bf16.gmra.mrb[0].mxu0 %v2481
    %v2772 = vpop.f32.mrb[0].mxu0
    %v2773 = vadd.f32 0.0, %v2772
    %v2774 = vpop.f32.mrb[0].mxu0
    %v2775 = vadd.f32 0.0, %v2774
    %v2776 = vpop.f32.mrb[0].mxu0
    %v2777 = vadd.f32 0.0, %v2776
    %v2778 = vpop.f32.mrb[0].mxu0
    %v2779 = vadd.f32 0.0, %v2778
    %2780 = vmatprep.mubr.bf16.mxu0 %v2484
    %2781 = vmatmul.mubr.bf16.gmra.mrb[0].mxu0 %v2483
    %v2782 = vpop.f32.mrb[0].mxu0
    %v2783 = vadd.f32 0.0, %v2782
    %v2784 = vpop.f32.mrb[0].mxu0
    %v2785 = vadd.f32 0.0, %v2784
    %v2786 = vpop.f32.mrb[0].mxu0
    %v2787 = vadd.f32 0.0, %v2786
    %v2788 = vpop.f32.mrb[0].mxu0
    %v2789 = vadd.f32 0.0, %v2788
    %2790 = vmatprep.mubr.bf16.mxu0 %v2486
    %2791 = vmatmul.mubr.bf16.gmra.mrb[0].mxu0 %v2485
    %v2792 = vpop.f32.mrb[0].mxu0
    %v2793 = vadd.f32 0.0, %v2792
    %v2794 = vpop.f32.mrb[0].mxu0
    %v2795 = vadd.f32 0.0, %v2794
    %v2796 = vpop.f32.mrb[0].mxu0
    %v2797 = vadd.f32 0.0, %v2796
    %v2798 = vpop.f32.mrb[0].mxu0
    %v2799 = vadd.f32 0.0, %v2798
    %2800 = vmatprep.mubr.bf16.mxu0 %v2488
    %2801 = vmatmul.mubr.bf16.gmra.mrb[0].mxu0 %v2487
    %v2802 = vpop.f32.mrb[0].mxu0
    %v2803 = vadd.f32 0.0, %v2802
    %v2804 = vpop.f32.mrb[0].mxu0
    %v2805 = vadd.f32 0.0, %v2804
    %v2806 = vpop.f32.mrb[0].mxu0
    %v2807 = vadd.f32 0.0, %v2806
    %v2808 = vpop.f32.mrb[0].mxu0
    %v2809 = vadd.f32 0.0, %v2808
    %2810 = vmatprep.mubr.bf16.mxu0 %v2490
    %2811 = vmatmul.mubr.bf16.gmra.mrb[0].mxu0 %v2489
    %v2812 = vpop.f32.mrb[0].mxu0
    %v2813 = vadd.f32 0.0, %v2812
    %v2814 = vpop.f32.mrb[0].mxu0
    %v2815 = vadd.f32 0.0, %v2814
    %v2816 = vpop.f32.mrb[0].mxu0
    %v2817 = vadd.f32 0.0, %v2816
    %v2818 = vpop.f32.mrb[0].mxu0
    %v2819 = vadd.f32 0.0, %v2818
    %2820 = vmatprep.mubr.bf16.mxu0 %v2492
    %2821 = vmatmul.mubr.bf16.gmra.mrb[0].mxu0 %v2491
    %v2822 = vpop.f32.mrb[0].mxu0
    %v2823 = vadd.f32 0.0, %v2822
    %v2824 = vpop.f32.mrb[0].mxu0
    %v2825 = vadd.f32 0.0, %v2824
    %v2826 = vpop.f32.mrb[0].mxu0
    %v2827 = vadd.f32 0.0, %v2826
    %v2828 = vpop.f32.mrb[0].mxu0
    %v2829 = vadd.f32 0.0, %v2828
    %2830 = vmatprep.mubr.bf16.mxu0 %v2494
    %2831 = vmatmul.mubr.bf16.gmra.mrb[0].mxu0 %v2493
    %v2832 = vpop.f32.mrb[0].mxu0
    %v2833 = vadd.f32 0.0, %v2832
    %v2834 = vpop.f32.mrb[0].mxu0
    %v2835 = vadd.f32 0.0, %v2834
    %v2836 = vpop.f32.mrb[0].mxu0
    %v2837 = vadd.f32 0.0, %v2836
    %v2838 = vpop.f32.mrb[0].mxu0
    %v2839 = vadd.f32 0.0, %v2838
    %2840 = vmatprep.mubr.bf16.mxu0 %v2496
    %2841 = vmatmul.mubr.bf16.gmra.mrb[0].mxu0 %v2495
    %v2842 = vpop.f32.mrb[0].mxu0
    %v2843 = vadd.f32 0.0, %v2842
    %v2844 = vpop.f32.mrb[0].mxu0
    %v2845 = vadd.f32 0.0, %v2844
    %v2846 = vpop.f32.mrb[0].mxu0
    %v2847 = vadd.f32 0.0, %v2846
    %v2848 = vpop.f32.mrb[0].mxu0
    %v2849 = vadd.f32 0.0, %v2848
    %2850 = vmatprep.mubr.bf16.mxu0 %v2498
    %2851 = vmatmul.mubr.bf16.gmra.mrb[0].mxu0 %v2497
    %v2852 = vpop.f32.mrb[0].mxu0
    %v2853 = vadd.f32 0.0, %v2852
    %v2854 = vpop.f32.mrb[0].mxu0
    %v2855 = vadd.f32 0.0, %v2854
    %v2856 = vpop.f32.mrb[0].mxu0
    %v2857 = vadd.f32 0.0, %v2856
    %v2858 = vpop.f32.mrb[0].mxu0
    %v2859 = vadd.f32 0.0, %v2858
    %2860 = vmatprep.mubr.bf16.mxu0 %v2500
    %2861 = vmatmul.mubr.bf16.gmra.mrb[0].mxu0 %v2499
    %v2862 = vpop.f32.mrb[0].mxu0
    %v2863 = vadd.f32 0.0, %v2862
    %v2864 = vpop.f32.mrb[0].mxu0
    %v2865 = vadd.f32 0.0, %v2864
    %v2866 = vpop.f32.mrb[0].mxu0
    %v2867 = vadd.f32 0.0, %v2866
    %v2868 = vpop.f32.mrb[0].mxu0
    %v2869 = vadd.f32 0.0, %v2868
    %2870 = vmatprep.mubr.bf16.mxu0 %v2502
    %2871 = vmatmul.mubr.bf16.gmra.mrb[0].mxu0 %v2501
    %v2872 = vpop.f32.mrb[0].mxu0
    %v2873 = vadd.f32 0.0, %v2872
    %v2874 = vpop.f32.mrb[0].mxu0
    %v2875 = vadd.f32 0.0, %v2874
    %v2876 = vpop.f32.mrb[0].mxu0
    %v2877 = vadd.f32 0.0, %v2876
    %v2878 = vpop.f32.mrb[0].mxu0
    %v2879 = vadd.f32 0.0, %v2878
    %2880 = vmatprep.mubr.bf16.mxu0 %v2504
    %2881 = vmatmul.mubr.bf16.gmra.mrb[0].mxu0 %v2503
    %v2882 = vpop.f32.mrb[0].mxu0
    %v2883 = vadd.f32 0.0, %v2882
    %v2884 = vpop.f32.mrb[0].mxu0
    %v2885 = vadd.f32 0.0, %v2884
    %v2886 = vpop.f32.mrb[0].mxu0
    %v2887 = vadd.f32 0.0, %v2886
    %v2888 = vpop.f32.mrb[0].mxu0
    %v2889 = vadd.f32 0.0, %v2888
    %2890 = vdwg.mxu0
    %v2923 = vunpack.c.l.b16 %v2056
    %v2924 = vunpack.c.h.b16 %v2056
    %v2925 = vunpack.c.l.b16 %v2057
    %v2926 = vunpack.c.h.b16 %v2057
    %v2927 = vunpack.c.l.b16 %v2058
    %v2928 = vunpack.c.h.b16 %v2058
    %v2929 = vunpack.c.l.b16 %v2059
    %v2930 = vunpack.c.h.b16 %v2059
    %v2931 = vunpack.c.l.b16 %v2060
    %v2932 = vunpack.c.h.b16 %v2060
    %v2933 = vunpack.c.l.b16 %v2061
    %v2934 = vunpack.c.h.b16 %v2061
    %v2935 = vunpack.c.l.b16 %v2062
    %v2936 = vunpack.c.h.b16 %v2062
    %v2937 = vunpack.c.l.b16 %v2063
    %v2938 = vunpack.c.h.b16 %v2063
    %v2939 = vunpack.c.l.b16 %v2064
    %v2940 = vunpack.c.h.b16 %v2064
    %v2941 = vunpack.c.l.b16 %v2065
    %v2942 = vunpack.c.h.b16 %v2065
    %v2943 = vunpack.c.l.b16 %v2066
    %v2944 = vunpack.c.h.b16 %v2066
    %v2945 = vunpack.c.l.b16 %v2067
    %v2946 = vunpack.c.h.b16 %v2067
    %v2947 = vunpack.c.l.b16 %v2068
    %v2948 = vunpack.c.h.b16 %v2068
    %v2949 = vunpack.c.l.b16 %v2069
    %v2950 = vunpack.c.h.b16 %v2069
    %v2951 = vunpack.c.l.b16 %v2070
    %v2952 = vunpack.c.h.b16 %v2070
    %v2953 = vunpack.c.l.b16 %v2071
    %v2954 = vunpack.c.h.b16 %v2071
    %v2955 = vunpack.c.l.b16 %v2072
    %v2956 = vunpack.c.h.b16 %v2072
    %v2957 = vunpack.c.l.b16 %v2073
    %v2958 = vunpack.c.h.b16 %v2073
    %v2959 = vunpack.c.l.b16 %v2074
    %v2960 = vunpack.c.h.b16 %v2074
    %v2961 = vunpack.c.l.b16 %v2075
    %v2962 = vunpack.c.h.b16 %v2075
    %v2963 = vunpack.c.l.b16 %v2076
    %v2964 = vunpack.c.h.b16 %v2076
    %v2965 = vunpack.c.l.b16 %v2077
    %v2966 = vunpack.c.h.b16 %v2077
    %v2967 = vunpack.c.l.b16 %v2078
    %v2968 = vunpack.c.h.b16 %v2078
    %v2969 = vunpack.c.l.b16 %v2079
    %v2970 = vunpack.c.h.b16 %v2079
    %v2971 = vunpack.c.l.b16 %v2080
    %v2972 = vunpack.c.h.b16 %v2080
    %v2973 = vunpack.c.l.b16 %v2081
    %v2974 = vunpack.c.h.b16 %v2081
    %v2975 = vunpack.c.l.b16 %v2082
    %v2976 = vunpack.c.h.b16 %v2082
    %v2977 = vunpack.c.l.b16 %v2083
    %v2978 = vunpack.c.h.b16 %v2083
    %v2979 = vunpack.c.l.b16 %v2084
    %v2980 = vunpack.c.h.b16 %v2084
    %v2981 = vunpack.c.l.b16 %v2085
    %v2982 = vunpack.c.h.b16 %v2085
    %v2983 = vunpack.c.l.b16 %v2086
    %v2984 = vunpack.c.h.b16 %v2086
    %v2985 = vunpack.c.l.b16 %v2087
    %v2986 = vunpack.c.h.b16 %v2087
    %v2987 = vpack.c.b16 %v2925, %v2923
    %v2988 = vpack.c.b16 %v2926, %v2924
    %v2989 = vpack.c.b16 %v2929, %v2927
    %v2990 = vpack.c.b16 %v2930, %v2928
    %v2991 = vpack.c.b16 %v2933, %v2931
    %v2992 = vpack.c.b16 %v2934, %v2932
    %v2993 = vpack.c.b16 %v2937, %v2935
    %v2994 = vpack.c.b16 %v2938, %v2936
    %v2995 = vpack.c.b16 %v2941, %v2939
    %v2996 = vpack.c.b16 %v2942, %v2940
    %v2997 = vpack.c.b16 %v2945, %v2943
    %v2998 = vpack.c.b16 %v2946, %v2944
    %v2999 = vpack.c.b16 %v2949, %v2947
    %v3000 = vpack.c.b16 %v2950, %v2948
    %v3001 = vpack.c.b16 %v2953, %v2951
    %v3002 = vpack.c.b16 %v2954, %v2952
    %v3003 = vpack.c.b16 %v2957, %v2955
    %v3004 = vpack.c.b16 %v2958, %v2956
    %v3005 = vpack.c.b16 %v2961, %v2959
    %v3006 = vpack.c.b16 %v2962, %v2960
    %v3007 = vpack.c.b16 %v2965, %v2963
    %v3008 = vpack.c.b16 %v2966, %v2964
    %v3009 = vpack.c.b16 %v2969, %v2967
    %v3010 = vpack.c.b16 %v2970, %v2968
    %v3011 = vpack.c.b16 %v2973, %v2971
    %v3012 = vpack.c.b16 %v2974, %v2972
    %v3013 = vpack.c.b16 %v2977, %v2975
    %v3014 = vpack.c.b16 %v2978, %v2976
    %v3015 = vpack.c.b16 %v2981, %v2979
    %v3016 = vpack.c.b16 %v2982, %v2980
    %v3017 = vpack.c.b16 %v2985, %v2983
    %v3018 = vpack.c.b16 %v2986, %v2984
    %3051 = vmatprep.subr.bf16.mxu0 %v2988
    %3052 = vmatpush1.bf16.msra.mxu0 %v2987
    %3053 = vmatprep.subr.bf16.mxu0 %v2990
    %3054 = vmatpush1.bf16.msra.mxu0 %v2989
    %3055 = vmatprep.subr.bf16.mxu0 %v2992
    %3056 = vmatpush1.bf16.msra.mxu0 %v2991
    %3057 = vmatprep.subr.bf16.mxu0 %v2994
    %3058 = vmatpush1.bf16.msra.mxu0 %v2993
    %3059 = vmatprep.subr.bf16.mxu0 %v2996
    %3060 = vmatpush1.bf16.msra.mxu0 %v2995
    %3061 = vmatprep.subr.bf16.mxu0 %v2998
    %3062 = vmatpush1.bf16.msra.mxu0 %v2997
    %3063 = vmatprep.subr.bf16.mxu0 %v3000
    %3064 = vmatpush1.bf16.msra.mxu0 %v2999
    %3065 = vmatprep.subr.bf16.mxu0 %v3002
    %3066 = vmatpush1.bf16.msra.mxu0 %v3001
    %3067 = vmatprep.subr.bf16.mxu0 %v3004
    %3068 = vmatpush1.bf16.msra.mxu0 %v3003
    %3069 = vmatprep.subr.bf16.mxu0 %v3006
    %3070 = vmatpush1.bf16.msra.mxu0 %v3005
    %3071 = vmatprep.subr.bf16.mxu0 %v3008
    %3072 = vmatpush1.bf16.msra.mxu0 %v3007
    %3073 = vmatprep.subr.bf16.mxu0 %v3010
    %3074 = vmatpush1.bf16.msra.mxu0 %v3009
    %3075 = vmatprep.subr.bf16.mxu0 %v3012
    %3076 = vmatpush1.bf16.msra.mxu0 %v3011
    %3077 = vmatprep.subr.bf16.mxu0 %v3014
    %3078 = vmatpush1.bf16.msra.mxu0 %v3013
    %3079 = vmatprep.subr.bf16.mxu0 %v3016
    %3080 = vmatpush1.bf16.msra.mxu0 %v3015
    %3081 = vmatprep.subr.bf16.mxu0 %v3018
    %3082 = vmatpush1.bf16.msra.mxu0 %v3017
    %3083 = vmatprep.mubr.bf16.mxu0 %v2025
    %3084 = vmatmul.mubr.bf16.gmra.mrb[0].mxu0 %v2024
    %v3085 = vpop.f32.mrb[0].mxu0
    %v3086 = vadd.f32 %v2733, %v3085
    %v3087 = vpop.f32.mrb[0].mxu0
    %v3088 = vadd.f32 %v2735, %v3087
    %v3089 = vpop.f32.mrb[0].mxu0
    %v3090 = vadd.f32 %v2737, %v3089
    %v3091 = vpop.f32.mrb[0].mxu0
    %v3092 = vadd.f32 %v2739, %v3091
    %3093 = vmatprep.mubr.bf16.mxu0 %v2027
    %3094 = vmatmul.mubr.bf16.gmra.mrb[0].mxu0 %v2026
    %v3095 = vpop.f32.mrb[0].mxu0
    %v3096 = vadd.f32 %v2743, %v3095
    %v3097 = vpop.f32.mrb[0].mxu0
    %v3098 = vadd.f32 %v2745, %v3097
    %v3099 = vpop.f32.mrb[0].mxu0
    %v3100 = vadd.f32 %v2747, %v3099
    %v3101 = vpop.f32.mrb[0].mxu0
    %v3102 = vadd.f32 %v2749, %v3101
    %3103 = vmatprep.mubr.bf16.mxu0 %v2029
    %3104 = vmatmul.mubr.bf16.gmra.mrb[0].mxu0 %v2028
    %v3105 = vpop.f32.mrb[0].mxu0
    %v3106 = vadd.f32 %v2753, %v3105
    %v3107 = vpop.f32.mrb[0].mxu0
    %v3108 = vadd.f32 %v2755, %v3107
    %v3109 = vpop.f32.mrb[0].mxu0
    %v3110 = vadd.f32 %v2757, %v3109
    %v3111 = vpop.f32.mrb[0].mxu0
    %v3112 = vadd.f32 %v2759, %v3111
    %3113 = vmatprep.mubr.bf16.mxu0 %v2031
    %3114 = vmatmul.mubr.bf16.gmra.mrb[0].mxu0 %v2030
    %v3115 = vpop.f32.mrb[0].mxu0
    %v3116 = vadd.f32 %v2763, %v3115
    %v3117 = vpop.f32.mrb[0].mxu0
    %v3118 = vadd.f32 %v2765, %v3117
    %v3119 = vpop.f32.mrb[0].mxu0
    %v3120 = vadd.f32 %v2767, %v3119
    %v3121 = vpop.f32.mrb[0].mxu0
    %v3122 = vadd.f32 %v2769, %v3121
    %3123 = vmatprep.mubr.bf16.mxu0 %v2033
    %3124 = vmatmul.mubr.bf16.gmra.mrb[0].mxu0 %v2032
    %v3125 = vpop.f32.mrb[0].mxu0
    %v3126 = vadd.f32 %v2773, %v3125
    %v3127 = vpop.f32.mrb[0].mxu0
    %v3128 = vadd.f32 %v2775, %v3127
    %v3129 = vpop.f32.mrb[0].mxu0
    %v3130 = vadd.f32 %v2777, %v3129
    %v3131 = vpop.f32.mrb[0].mxu0
    %v3132 = vadd.f32 %v2779, %v3131
    %3133 = vmatprep.mubr.bf16.mxu0 %v2035
    %3134 = vmatmul.mubr.bf16.gmra.mrb[0].mxu0 %v2034
    %v3135 = vpop.f32.mrb[0].mxu0
    %v3136 = vadd.f32 %v2783, %v3135
    %v3137 = vpop.f32.mrb[0].mxu0
    %v3138 = vadd.f32 %v2785, %v3137
    %v3139 = vpop.f32.mrb[0].mxu0
    %v3140 = vadd.f32 %v2787, %v3139
    %v3141 = vpop.f32.mrb[0].mxu0
    %v3142 = vadd.f32 %v2789, %v3141
    %3143 = vmatprep.mubr.bf16.mxu0 %v2037
    %3144 = vmatmul.mubr.bf16.gmra.mrb[0].mxu0 %v2036
    %v3145 = vpop.f32.mrb[0].mxu0
    %v3146 = vadd.f32 %v2793, %v3145
    %v3147 = vpop.f32.mrb[0].mxu0
    %v3148 = vadd.f32 %v2795, %v3147
    %v3149 = vpop.f32.mrb[0].mxu0
    %v3150 = vadd.f32 %v2797, %v3149
    %v3151 = vpop.f32.mrb[0].mxu0
    %v3152 = vadd.f32 %v2799, %v3151
    %3153 = vmatprep.mubr.bf16.mxu0 %v2039
    %3154 = vmatmul.mubr.bf16.gmra.mrb[0].mxu0 %v2038
    %v3155 = vpop.f32.mrb[0].mxu0
    %v3156 = vadd.f32 %v2803, %v3155
    %v3157 = vpop.f32.mrb[0].mxu0
    %v3158 = vadd.f32 %v2805, %v3157
    %v3159 = vpop.f32.mrb[0].mxu0
    %v3160 = vadd.f32 %v2807, %v3159
    %v3161 = vpop.f32.mrb[0].mxu0
    %v3162 = vadd.f32 %v2809, %v3161
    %3163 = vmatprep.mubr.bf16.mxu0 %v2041
    %3164 = vmatmul.mubr.bf16.gmra.mrb[0].mxu0 %v2040
    %v3165 = vpop.f32.mrb[0].mxu0
    %v3166 = vadd.f32 %v2813, %v3165
    %v3167 = vpop.f32.mrb[0].mxu0
    %v3168 = vadd.f32 %v2815, %v3167
    %v3169 = vpop.f32.mrb[0].mxu0
    %v3170 = vadd.f32 %v2817, %v3169
    %v3171 = vpop.f32.mrb[0].mxu0
    %v3172 = vadd.f32 %v2819, %v3171
    %3173 = vmatprep.mubr.bf16.mxu0 %v2043
    %3174 = vmatmul.mubr.bf16.gmra.mrb[0].mxu0 %v2042
    %v3175 = vpop.f32.mrb[0].mxu0
    %v3176 = vadd.f32 %v2823, %v3175
    %v3177 = vpop.f32.mrb[0].mxu0
    %v3178 = vadd.f32 %v2825, %v3177
    %v3179 = vpop.f32.mrb[0].mxu0
    %v3180 = vadd.f32 %v2827, %v3179
    %v3181 = vpop.f32.mrb[0].mxu0
    %v3182 = vadd.f32 %v2829, %v3181
    %3183 = vmatprep.mubr.bf16.mxu0 %v2045
    %3184 = vmatmul.mubr.bf16.gmra.mrb[0].mxu0 %v2044
    %v3185 = vpop.f32.mrb[0].mxu0
    %v3186 = vadd.f32 %v2833, %v3185
    %v3187 = vpop.f32.mrb[0].mxu0
    %v3188 = vadd.f32 %v2835, %v3187
    %v3189 = vpop.f32.mrb[0].mxu0
    %v3190 = vadd.f32 %v2837, %v3189
    %v3191 = vpop.f32.mrb[0].mxu0
    %v3192 = vadd.f32 %v2839, %v3191
    %3193 = vmatprep.mubr.bf16.mxu0 %v2047
    %3194 = vmatmul.mubr.bf16.gmra.mrb[0].mxu0 %v2046
    %v3195 = vpop.f32.mrb[0].mxu0
    %v3196 = vadd.f32 %v2843, %v3195
    %v3197 = vpop.f32.mrb[0].mxu0
    %v3198 = vadd.f32 %v2845, %v3197
    %v3199 = vpop.f32.mrb[0].mxu0
    %v3200 = vadd.f32 %v2847, %v3199
    %v3201 = vpop.f32.mrb[0].mxu0
    %v3202 = vadd.f32 %v2849, %v3201
    %3203 = vmatprep.mubr.bf16.mxu0 %v2049
    %3204 = vmatmul.mubr.bf16.gmra.mrb[0].mxu0 %v2048
    %v3205 = vpop.f32.mrb[0].mxu0
    %v3206 = vadd.f32 %v2853, %v3205
    %v3207 = vpop.f32.mrb[0].mxu0
    %v3208 = vadd.f32 %v2855, %v3207
    %v3209 = vpop.f32.mrb[0].mxu0
    %v3210 = vadd.f32 %v2857, %v3209
    %v3211 = vpop.f32.mrb[0].mxu0
    %v3212 = vadd.f32 %v2859, %v3211
    %3213 = vmatprep.mubr.bf16.mxu0 %v2051
    %3214 = vmatmul.mubr.bf16.gmra.mrb[0].mxu0 %v2050
    %v3215 = vpop.f32.mrb[0].mxu0
    %v3216 = vadd.f32 %v2863, %v3215
    %v3217 = vpop.f32.mrb[0].mxu0
    %v3218 = vadd.f32 %v2865, %v3217
    %v3219 = vpop.f32.mrb[0].mxu0
    %v3220 = vadd.f32 %v2867, %v3219
    %v3221 = vpop.f32.mrb[0].mxu0
    %v3222 = vadd.f32 %v2869, %v3221
    %3223 = vmatprep.mubr.bf16.mxu0 %v2053
    %3224 = vmatmul.mubr.bf16.gmra.mrb[0].mxu0 %v2052
    %v3225 = vpop.f32.mrb[0].mxu0
    %v3226 = vadd.f32 %v2873, %v3225
    %v3227 = vpop.f32.mrb[0].mxu0
    %v3228 = vadd.f32 %v2875, %v3227
    %v3229 = vpop.f32.mrb[0].mxu0
    %v3230 = vadd.f32 %v2877, %v3229
    %v3231 = vpop.f32.mrb[0].mxu0
    %v3232 = vadd.f32 %v2879, %v3231
    %3233 = vmatprep.mubr.bf16.mxu0 %v2055
    %3234 = vmatmul.mubr.bf16.gmra.mrb[0].mxu0 %v2054
    %v3235 = vpop.f32.mrb[0].mxu0
    %v3236 = vadd.f32 %v2883, %v3235
    %v3237 = vpop.f32.mrb[0].mxu0
    %v3238 = vadd.f32 %v2885, %v3237
    %v3239 = vpop.f32.mrb[0].mxu0
    %v3240 = vadd.f32 %v2887, %v3239
    %v3241 = vpop.f32.mrb[0].mxu0
    %v3242 = vadd.f32 %v2889, %v3241
    %3243 = vdwg.mxu0
    %v3244 = vld [vmem:[#allocation3] sm:$0xfc]
    %v3245 = vld [vmem:[#allocation3 + $0x8] sm:$0xfc]
    %v3246 = vld [vmem:[#allocation3 + $0x20] sm:$0x3]
    %v3247 = vld [vmem:[#allocation3 + $0x28] sm:$0x3]
    %v3248 = vld [vmem:[#allocation3 + $0x30] sm:$0xfc]
    %v3249 = vld [vmem:[#allocation3 + $0x38] sm:$0xfc]
    %v3250 = vld [vmem:[#allocation3 + $0x50] sm:$0x3]
    %v3251 = vld [vmem:[#allocation3 + $0x58] sm:$0x3]
    %v3252 = vld [vmem:[#allocation3 + $0x60] sm:$0xfc]
    %v3253 = vld [vmem:[#allocation3 + $0x68] sm:$0xfc]
    %v3254 = vld [vmem:[#allocation3 + $0x80] sm:$0x3]
    %v3255 = vld [vmem:[#allocation3 + $0x88] sm:$0x3]
    %v3256 = vld [vmem:[#allocation3 + $0x90] sm:$0xfc]
    %v3257 = vld [vmem:[#allocation3 + $0x98] sm:$0xfc]
    %v3258 = vld [vmem:[#allocation3 + $0xb0] sm:$0x3]
    %v3259 = vld [vmem:[#allocation3 + $0xb8] sm:$0x3]
    %v3260 = vld [vmem:[#allocation3 + $0xc0] sm:$0xfc]
    %v3261 = vld [vmem:[#allocation3 + $0xc8] sm:$0xfc]
    %v3262 = vld [vmem:[#allocation3 + $0xe0] sm:$0x3]
    %v3263 = vld [vmem:[#allocation3 + $0xe8] sm:$0x3]
    %v3264 = vld [vmem:[#allocation3 + $0xf0] sm:$0xfc]
    %v3265 = vld [vmem:[#allocation3 + $0xf8] sm:$0xfc]
    %v3266 = vld [vmem:[#allocation3 + $0x110] sm:$0x3]
    %v3267 = vld [vmem:[#allocation3 + $0x118] sm:$0x3]
    %v3268 = vld [vmem:[#allocation3 + $0x120] sm:$0xfc]
    %v3269 = vld [vmem:[#allocation3 + $0x128] sm:$0xfc]
    %v3270 = vld [vmem:[#allocation3 + $0x140] sm:$0x3]
    %v3271 = vld [vmem:[#allocation3 + $0x148] sm:$0x3]
    %v3272 = vld [vmem:[#allocation3 + $0x150] sm:$0xfc]
    %v3273 = vld [vmem:[#allocation3 + $0x158] sm:$0xfc]
    %v3274 = vld [vmem:[#allocation3 + $0x170] sm:$0x3]
    %v3275 = vld [vmem:[#allocation3 + $0x178] sm:$0x3]
    %v3276 = vld [vmem:[#allocation3 + $0x180] sm:$0xfc]
    %v3277 = vld [vmem:[#allocation3 + $0x188] sm:$0xfc]
    %v3278 = vld [vmem:[#allocation3 + $0x1a0] sm:$0x3]
    %v3279 = vld [vmem:[#allocation3 + $0x1a8] sm:$0x3]
    %v3280 = vld [vmem:[#allocation3 + $0x1b0] sm:$0xfc]
    %v3281 = vld [vmem:[#allocation3 + $0x1b8] sm:$0xfc]
    %v3282 = vld [vmem:[#allocation3 + $0x1d0] sm:$0x3]
    %v3283 = vld [vmem:[#allocation3 + $0x1d8] sm:$0x3]
    %v3284 = vld [vmem:[#allocation3 + $0x1e0] sm:$0xfc]
    %v3285 = vld [vmem:[#allocation3 + $0x1e8] sm:$0xfc]
    %v3286 = vld [vmem:[#allocation3 + $0x200] sm:$0x3]
    %v3287 = vld [vmem:[#allocation3 + $0x208] sm:$0x3]
    %v3288 = vld [vmem:[#allocation3 + $0x210] sm:$0xfc]
    %v3289 = vld [vmem:[#allocation3 + $0x218] sm:$0xfc]
    %v3290 = vld [vmem:[#allocation3 + $0x230] sm:$0x3]
    %v3291 = vld [vmem:[#allocation3 + $0x238] sm:$0x3]
    %v3292 = vld [vmem:[#allocation3 + $0x240] sm:$0xfc]
    %v3293 = vld [vmem:[#allocation3 + $0x248] sm:$0xfc]
    %v3294 = vld [vmem:[#allocation3 + $0x260] sm:$0x3]
    %v3295 = vld [vmem:[#allocation3 + $0x268] sm:$0x3]
    %v3296 = vld [vmem:[#allocation3 + $0x270] sm:$0xfc]
    %v3297 = vld [vmem:[#allocation3 + $0x278] sm:$0xfc]
    %v3298 = vld [vmem:[#allocation3 + $0x290] sm:$0x3]
    %v3299 = vld [vmem:[#allocation3 + $0x298] sm:$0x3]
    %v3300 = vld [vmem:[#allocation3 + $0x2a0] sm:$0xfc]
    %v3301 = vld [vmem:[#allocation3 + $0x2a8] sm:$0xfc]
    %v3302 = vld [vmem:[#allocation3 + $0x2c0] sm:$0x3]
    %v3303 = vld [vmem:[#allocation3 + $0x2c8] sm:$0x3]
    %v3304 = vld [vmem:[#allocation3 + $0x2d0] sm:$0xfc]
    %v3305 = vld [vmem:[#allocation3 + $0x2d8] sm:$0xfc]
    %v3306 = vld [vmem:[#allocation3 + $0x2f0] sm:$0x3]
    %v3307 = vld [vmem:[#allocation3 + $0x2f8] sm:$0x3]
    %vm3372 = vcmask 1045504
    %v3373 = vrot.slane %v3244, 2
    %v3374 = vrot.slane %v1962, 2
    %v3375 = vsel %vm3372, %v3373, %v3374
    %v3376 = vrot.slane %v3245, 2
    %v3377 = vrot.slane %v1963, 2
    %v3378 = vsel %vm3372, %v3376, %v3377
    %v3379 = vrot.slane %v3246, 2
    %v3380 = vsel %vm3372, %v3374, %v3379
    %v3381 = vrot.slane %v3247, 2
    %v3382 = vsel %vm3372, %v3377, %v3381
    %v3383 = vrot.slane %v3248, 2
    %v3384 = vrot.slane %v1966, 2
    %v3385 = vsel %vm3372, %v3383, %v3384
    %v3386 = vrot.slane %v3249, 2
    %v3387 = vrot.slane %v1967, 2
    %v3388 = vsel %vm3372, %v3386, %v3387
    %v3389 = vrot.slane %v3250, 2
    %v3390 = vsel %vm3372, %v3384, %v3389
    %v3391 = vrot.slane %v3251, 2
    %v3392 = vsel %vm3372, %v3387, %v3391
    %v3393 = vrot.slane %v3252, 2
    %v3394 = vrot.slane %v1970, 2
    %v3395 = vsel %vm3372, %v3393, %v3394
    %v3396 = vrot.slane %v3253, 2
    %v3397 = vrot.slane %v1971, 2
    %v3398 = vsel %vm3372, %v3396, %v3397
    %v3399 = vrot.slane %v3254, 2
    %v3400 = vsel %vm3372, %v3394, %v3399
    %v3401 = vrot.slane %v3255, 2
    %v3402 = vsel %vm3372, %v3397, %v3401
    %v3403 = vrot.slane %v3256, 2
    %v3404 = vrot.slane %v1974, 2
    %v3405 = vsel %vm3372, %v3403, %v3404
    %v3406 = vrot.slane %v3257, 2
    %v3407 = vrot.slane %v1975, 2
    %v3408 = vsel %vm3372, %v3406, %v3407
    %v3409 = vrot.slane %v3258, 2
    %v3410 = vsel %vm3372, %v3404, %v3409
    %v3411 = vrot.slane %v3259, 2
    %v3412 = vsel %vm3372, %v3407, %v3411
    %v3413 = vrot.slane %v3260, 2
    %v3414 = vrot.slane %v1978, 2
    %v3415 = vsel %vm3372, %v3413, %v3414
    %v3416 = vrot.slane %v3261, 2
    %v3417 = vrot.slane %v1979, 2
    %v3418 = vsel %vm3372, %v3416, %v3417
    %v3419 = vrot.slane %v3262, 2
    %v3420 = vsel %vm3372, %v3414, %v3419
    %v3421 = vrot.slane %v3263, 2
    %v3422 = vsel %vm3372, %v3417, %v3421
    %v3423 = vrot.slane %v3264, 2
    %v3424 = vrot.slane %v1982, 2
    %v3425 = vsel %vm3372, %v3423, %v3424
    %v3426 = vrot.slane %v3265, 2
    %v3427 = vrot.slane %v1983, 2
    %v3428 = vsel %vm3372, %v3426, %v3427
    %v3429 = vrot.slane %v3266, 2
    %v3430 = vsel %vm3372, %v3424, %v3429
    %v3431 = vrot.slane %v3267, 2
    %v3432 = vsel %vm3372, %v3427, %v3431
    %v3433 = vrot.slane %v3268, 2
    %v3434 = vrot.slane %v1986, 2
    %v3435 = vsel %vm3372, %v3433, %v3434
    %v3436 = vrot.slane %v3269, 2
    %v3437 = vrot.slane %v1987, 2
    %v3438 = vsel %vm3372, %v3436, %v3437
    %v3439 = vrot.slane %v3270, 2
    %v3440 = vsel %vm3372, %v3434, %v3439
    %v3441 = vrot.slane %v3271, 2
    %v3442 = vsel %vm3372, %v3437, %v3441
    %v3443 = vrot.slane %v3272, 2
    %v3444 = vrot.slane %v1990, 2
    %v3445 = vsel %vm3372, %v3443, %v3444
    %v3446 = vrot.slane %v3273, 2
    %v3447 = vrot.slane %v1991, 2
    %v3448 = vsel %vm3372, %v3446, %v3447
    %v3449 = vrot.slane %v3274, 2
    %v3450 = vsel %vm3372, %v3444, %v3449
    %v3451 = vrot.slane %v3275, 2
    %v3452 = vsel %vm3372, %v3447, %v3451
    %v3453 = vrot.slane %v3276, 2
    %v3454 = vrot.slane %v1994, 2
    %v3455 = vsel %vm3372, %v3453, %v3454
    %v3456 = vrot.slane %v3277, 2
    %v3457 = vrot.slane %v1995, 2
    %v3458 = vsel %vm3372, %v3456, %v3457
    %v3459 = vrot.slane %v3278, 2
    %v3460 = vsel %vm3372, %v3454, %v3459
    %v3461 = vrot.slane %v3279, 2
    %v3462 = vsel %vm3372, %v3457, %v3461
    %v3463 = vrot.slane %v3280, 2
    %v3464 = vrot.slane %v1998, 2
    %v3465 = vsel %vm3372, %v3463, %v3464
    %v3466 = vrot.slane %v3281, 2
    %v3467 = vrot.slane %v1999, 2
    %v3468 = vsel %vm3372, %v3466, %v3467
    %v3469 = vrot.slane %v3282, 2
    %v3470 = vsel %vm3372, %v3464, %v3469
    %v3471 = vrot.slane %v3283, 2
    %v3472 = vsel %vm3372, %v3467, %v3471
    %v3473 = vrot.slane %v3284, 2
    %v3474 = vrot.slane %v2002, 2
    %v3475 = vsel %vm3372, %v3473, %v3474
    %v3476 = vrot.slane %v3285, 2
    %v3477 = vrot.slane %v2003, 2
    %v3478 = vsel %vm3372, %v3476, %v3477
    %v3479 = vrot.slane %v3286, 2
    %v3480 = vsel %vm3372, %v3474, %v3479
    %v3481 = vrot.slane %v3287, 2
    %v3482 = vsel %vm3372, %v3477, %v3481
    %v3483 = vrot.slane %v3288, 2
    %v3484 = vrot.slane %v2006, 2
    %v3485 = vsel %vm3372, %v3483, %v3484
    %v3486 = vrot.slane %v3289, 2
    %v3487 = vrot.slane %v2007, 2
    %v3488 = vsel %vm3372, %v3486, %v3487
    %v3489 = vrot.slane %v3290, 2
    %v3490 = vsel %vm3372, %v3484, %v3489
    %v3491 = vrot.slane %v3291, 2
    %v3492 = vsel %vm3372, %v3487, %v3491
    %v3493 = vrot.slane %v3292, 2
    %v3494 = vrot.slane %v2010, 2
    %v3495 = vsel %vm3372, %v3493, %v3494
    %v3496 = vrot.slane %v3293, 2
    %v3497 = vrot.slane %v2011, 2
    %v3498 = vsel %vm3372, %v3496, %v3497
    %v3499 = vrot.slane %v3294, 2
    %v3500 = vsel %vm3372, %v3494, %v3499
    %v3501 = vrot.slane %v3295, 2
    %v3502 = vsel %vm3372, %v3497, %v3501
    %v3503 = vrot.slane %v3296, 2
    %v3504 = vrot.slane %v2014, 2
    %v3505 = vsel %vm3372, %v3503, %v3504
    %v3506 = vrot.slane %v3297, 2
    %v3507 = vrot.slane %v2015, 2
    %v3508 = vsel %vm3372, %v3506, %v3507
    %v3509 = vrot.slane %v3298, 2
    %v3510 = vsel %vm3372, %v3504, %v3509
    %v3511 = vrot.slane %v3299, 2
    %v3512 = vsel %vm3372, %v3507, %v3511
    %v3513 = vrot.slane %v3300, 2
    %v3514 = vrot.slane %v2018, 2
    %v3515 = vsel %vm3372, %v3513, %v3514
    %v3516 = vrot.slane %v3301, 2
    %v3517 = vrot.slane %v2019, 2
    %v3518 = vsel %vm3372, %v3516, %v3517
    %v3519 = vrot.slane %v3302, 2
    %v3520 = vsel %vm3372, %v3514, %v3519
    %v3521 = vrot.slane %v3303, 2
    %v3522 = vsel %vm3372, %v3517, %v3521
    %v3523 = vrot.slane %v3304, 2
    %v3524 = vrot.slane %v2022, 2
    %v3525 = vsel %vm3372, %v3523, %v3524
    %v3526 = vrot.slane %v3305, 2
    %v3527 = vrot.slane %v2023, 2
    %v3528 = vsel %vm3372, %v3526, %v3527
    %v3529 = vrot.slane %v3306, 2
    %v3530 = vsel %vm3372, %v3524, %v3529
    %v3531 = vrot.slane %v3307, 2
    %v3532 = vsel %vm3372, %v3527, %v3531
    %v3597 = vpack.c.bf16 %v3380, %v3375
    %v3598 = vpack.c.bf16 %v3382, %v3378
    %v3599 = vpack.c.bf16 %v3390, %v3385
    %v3600 = vpack.c.bf16 %v3392, %v3388
    %v3601 = vpack.c.bf16 %v3400, %v3395
    %v3602 = vpack.c.bf16 %v3402, %v3398
    %v3603 = vpack.c.bf16 %v3410, %v3405
    %v3604 = vpack.c.bf16 %v3412, %v3408
    %v3605 = vpack.c.bf16 %v3420, %v3415
    %v3606 = vpack.c.bf16 %v3422, %v3418
    %v3607 = vpack.c.bf16 %v3430, %v3425
    %v3608 = vpack.c.bf16 %v3432, %v3428
    %v3609 = vpack.c.bf16 %v3440, %v3435
    %v3610 = vpack.c.bf16 %v3442, %v3438
    %v3611 = vpack.c.bf16 %v3450, %v3445
    %v3612 = vpack.c.bf16 %v3452, %v3448
    %v3613 = vpack.c.bf16 %v3460, %v3455
    %v3614 = vpack.c.bf16 %v3462, %v3458
    %v3615 = vpack.c.bf16 %v3470, %v3465
    %v3616 = vpack.c.bf16 %v3472, %v3468
    %v3617 = vpack.c.bf16 %v3480, %v3475
    %v3618 = vpack.c.bf16 %v3482, %v3478
    %v3619 = vpack.c.bf16 %v3490, %v3485
    %v3620 = vpack.c.bf16 %v3492, %v3488
    %v3621 = vpack.c.bf16 %v3500, %v3495
    %v3622 = vpack.c.bf16 %v3502, %v3498
    %v3623 = vpack.c.bf16 %v3510, %v3505
    %v3624 = vpack.c.bf16 %v3512, %v3508
    %v3625 = vpack.c.bf16 %v3520, %v3515
    %v3626 = vpack.c.bf16 %v3522, %v3518
    %v3627 = vpack.c.bf16 %v3530, %v3525
    %v3628 = vpack.c.bf16 %v3532, %v3528
    %s3629 = scalar_lea.vmem [#allocation7], 512
    %v3630 = vld [vmem:[%s3629] sm:$0xff]
    %v3631 = vld [vmem:[%s3629 + $0x8] sm:$0xff]
    %v3632 = vld [vmem:[%s3629 + $0x10] sm:$0xff]
    %v3633 = vld [vmem:[%s3629 + $0x18] sm:$0xff]
    %v3634 = vld [vmem:[%s3629 + $0x20] sm:$0xff]
    %v3635 = vld [vmem:[%s3629 + $0x28] sm:$0xff]
    %v3636 = vld [vmem:[%s3629 + $0x30] sm:$0xff]
    %v3637 = vld [vmem:[%s3629 + $0x38] sm:$0xff]
    %v3638 = vld [vmem:[%s3629 + $0x40] sm:$0xff]
    %v3639 = vld [vmem:[%s3629 + $0x48] sm:$0xff]
    %v3640 = vld [vmem:[%s3629 + $0x50] sm:$0xff]
    %v3641 = vld [vmem:[%s3629 + $0x58] sm:$0xff]
    %v3642 = vld [vmem:[%s3629 + $0x60] sm:$0xff]
    %v3643 = vld [vmem:[%s3629 + $0x68] sm:$0xff]
    %v3644 = vld [vmem:[%s3629 + $0x70] sm:$0xff]
    %v3645 = vld [vmem:[%s3629 + $0x78] sm:$0xff]
    %v3646 = vld [vmem:[%s3629 + $0x80] sm:$0xff]
    %v3647 = vld [vmem:[%s3629 + $0x88] sm:$0xff]
    %v3648 = vld [vmem:[%s3629 + $0x90] sm:$0xff]
    %v3649 = vld [vmem:[%s3629 + $0x98] sm:$0xff]
    %v3650 = vld [vmem:[%s3629 + $0xa0] sm:$0xff]
    %v3651 = vld [vmem:[%s3629 + $0xa8] sm:$0xff]
    %v3652 = vld [vmem:[%s3629 + $0xb0] sm:$0xff]
    %v3653 = vld [vmem:[%s3629 + $0xb8] sm:$0xff]
    %v3654 = vld [vmem:[%s3629 + $0xc0] sm:$0xff]
    %v3655 = vld [vmem:[%s3629 + $0xc8] sm:$0xff]
    %v3656 = vld [vmem:[%s3629 + $0xd0] sm:$0xff]
    %v3657 = vld [vmem:[%s3629 + $0xd8] sm:$0xff]
    %v3658 = vld [vmem:[%s3629 + $0xe0] sm:$0xff]
    %v3659 = vld [vmem:[%s3629 + $0xe8] sm:$0xff]
    %v3660 = vld [vmem:[%s3629 + $0xf0] sm:$0xff]
    %v3661 = vld [vmem:[%s3629 + $0xf8] sm:$0xff]
    %v3694 = vunpack.c.l.b16 %v3630
    %v3695 = vunpack.c.h.b16 %v3630
    %v3696 = vunpack.c.l.b16 %v3631
    %v3697 = vunpack.c.h.b16 %v3631
    %v3698 = vunpack.c.l.b16 %v3632
    %v3699 = vunpack.c.h.b16 %v3632
    %v3700 = vunpack.c.l.b16 %v3633
    %v3701 = vunpack.c.h.b16 %v3633
    %v3702 = vunpack.c.l.b16 %v3634
    %v3703 = vunpack.c.h.b16 %v3634
    %v3704 = vunpack.c.l.b16 %v3635
    %v3705 = vunpack.c.h.b16 %v3635
    %v3706 = vunpack.c.l.b16 %v3636
    %v3707 = vunpack.c.h.b16 %v3636
    %v3708 = vunpack.c.l.b16 %v3637
    %v3709 = vunpack.c.h.b16 %v3637
    %v3710 = vunpack.c.l.b16 %v3638
    %v3711 = vunpack.c.h.b16 %v3638
    %v3712 = vunpack.c.l.b16 %v3639
    %v3713 = vunpack.c.h.b16 %v3639
    %v3714 = vunpack.c.l.b16 %v3640
    %v3715 = vunpack.c.h.b16 %v3640
    %v3716 = vunpack.c.l.b16 %v3641
    %v3717 = vunpack.c.h.b16 %v3641
    %v3718 = vunpack.c.l.b16 %v3642
    %v3719 = vunpack.c.h.b16 %v3642
    %v3720 = vunpack.c.l.b16 %v3643
    %v3721 = vunpack.c.h.b16 %v3643
    %v3722 = vunpack.c.l.b16 %v3644
    %v3723 = vunpack.c.h.b16 %v3644
    %v3724 = vunpack.c.l.b16 %v3645
    %v3725 = vunpack.c.h.b16 %v3645
    %v3726 = vunpack.c.l.b16 %v3646
    %v3727 = vunpack.c.h.b16 %v3646
    %v3728 = vunpack.c.l.b16 %v3647
    %v3729 = vunpack.c.h.b16 %v3647
    %v3730 = vunpack.c.l.b16 %v3648
    %v3731 = vunpack.c.h.b16 %v3648
    %v3732 = vunpack.c.l.b16 %v3649
    %v3733 = vunpack.c.h.b16 %v3649
    %v3734 = vunpack.c.l.b16 %v3650
    %v3735 = vunpack.c.h.b16 %v3650
    %v3736 = vunpack.c.l.b16 %v3651
    %v3737 = vunpack.c.h.b16 %v3651
    %v3738 = vunpack.c.l.b16 %v3652
    %v3739 = vunpack.c.h.b16 %v3652
    %v3740 = vunpack.c.l.b16 %v3653
    %v3741 = vunpack.c.h.b16 %v3653
    %v3742 = vunpack.c.l.b16 %v3654
    %v3743 = vunpack.c.h.b16 %v3654
    %v3744 = vunpack.c.l.b16 %v3655
    %v3745 = vunpack.c.h.b16 %v3655
    %v3746 = vunpack.c.l.b16 %v3656
    %v3747 = vunpack.c.h.b16 %v3656
    %v3748 = vunpack.c.l.b16 %v3657
    %v3749 = vunpack.c.h.b16 %v3657
    %v3750 = vunpack.c.l.b16 %v3658
    %v3751 = vunpack.c.h.b16 %v3658
    %v3752 = vunpack.c.l.b16 %v3659
    %v3753 = vunpack.c.h.b16 %v3659
    %v3754 = vunpack.c.l.b16 %v3660
    %v3755 = vunpack.c.h.b16 %v3660
    %v3756 = vunpack.c.l.b16 %v3661
    %v3757 = vunpack.c.h.b16 %v3661
    %v3758 = vpack.c.b16 %v3696, %v3694
    %v3759 = vpack.c.b16 %v3697, %v3695
    %v3760 = vpack.c.b16 %v3700, %v3698
    %v3761 = vpack.c.b16 %v3701, %v3699
    %v3762 = vpack.c.b16 %v3704, %v3702
    %v3763 = vpack.c.b16 %v3705, %v3703
    %v3764 = vpack.c.b16 %v3708, %v3706
    %v3765 = vpack.c.b16 %v3709, %v3707
    %v3766 = vpack.c.b16 %v3712, %v3710
    %v3767 = vpack.c.b16 %v3713, %v3711
    %v3768 = vpack.c.b16 %v3716, %v3714
    %v3769 = vpack.c.b16 %v3717, %v3715
    %v3770 = vpack.c.b16 %v3720, %v3718
    %v3771 = vpack.c.b16 %v3721, %v3719
    %v3772 = vpack.c.b16 %v3724, %v3722
    %v3773 = vpack.c.b16 %v3725, %v3723
    %v3774 = vpack.c.b16 %v3728, %v3726
    %v3775 = vpack.c.b16 %v3729, %v3727
    %v3776 = vpack.c.b16 %v3732, %v3730
    %v3777 = vpack.c.b16 %v3733, %v3731
    %v3778 = vpack.c.b16 %v3736, %v3734
    %v3779 = vpack.c.b16 %v3737, %v3735
    %v3780 = vpack.c.b16 %v3740, %v3738
    %v3781 = vpack.c.b16 %v3741, %v3739
    %v3782 = vpack.c.b16 %v3744, %v3742
    %v3783 = vpack.c.b16 %v3745, %v3743
    %v3784 = vpack.c.b16 %v3748, %v3746
    %v3785 = vpack.c.b16 %v3749, %v3747
    %v3786 = vpack.c.b16 %v3752, %v3750
    %v3787 = vpack.c.b16 %v3753, %v3751
    %v3788 = vpack.c.b16 %v3756, %v3754
    %v3789 = vpack.c.b16 %v3757, %v3755
    %3822 = vmatprep.subr.bf16.mxu0 %v3759
    %3823 = vmatpush1.bf16.msra.mxu0 %v3758
    %3824 = vmatprep.subr.bf16.mxu0 %v3761
    %3825 = vmatpush1.bf16.msra.mxu0 %v3760
    %3826 = vmatprep.subr.bf16.mxu0 %v3763
    %3827 = vmatpush1.bf16.msra.mxu0 %v3762
    %3828 = vmatprep.subr.bf16.mxu0 %v3765
    %3829 = vmatpush1.bf16.msra.mxu0 %v3764
    %3830 = vmatprep.subr.bf16.mxu0 %v3767
    %3831 = vmatpush1.bf16.msra.mxu0 %v3766
    %3832 = vmatprep.subr.bf16.mxu0 %v3769
    %3833 = vmatpush1.bf16.msra.mxu0 %v3768
    %3834 = vmatprep.subr.bf16.mxu0 %v3771
    %3835 = vmatpush1.bf16.msra.mxu0 %v3770
    %3836 = vmatprep.subr.bf16.mxu0 %v3773
    %3837 = vmatpush1.bf16.msra.mxu0 %v3772
    %3838 = vmatprep.subr.bf16.mxu0 %v3775
    %3839 = vmatpush1.bf16.msra.mxu0 %v3774
    %3840 = vmatprep.subr.bf16.mxu0 %v3777
    %3841 = vmatpush1.bf16.msra.mxu0 %v3776
    %3842 = vmatprep.subr.bf16.mxu0 %v3779
    %3843 = vmatpush1.bf16.msra.mxu0 %v3778
    %3844 = vmatprep.subr.bf16.mxu0 %v3781
    %3845 = vmatpush1.bf16.msra.mxu0 %v3780
    %3846 = vmatprep.subr.bf16.mxu0 %v3783
    %3847 = vmatpush1.bf16.msra.mxu0 %v3782
    %3848 = vmatprep.subr.bf16.mxu0 %v3785
    %3849 = vmatpush1.bf16.msra.mxu0 %v3784
    %3850 = vmatprep.subr.bf16.mxu0 %v3787
    %3851 = vmatpush1.bf16.msra.mxu0 %v3786
    %3852 = vmatprep.subr.bf16.mxu0 %v3789
    %3853 = vmatpush1.bf16.msra.mxu0 %v3788
    %3854 = vmatprep.mubr.bf16.mxu0 %v3598
    %3855 = vmatmul.mubr.bf16.gmra.mrb[0].mxu0 %v3597
    %v3856 = vpop.f32.mrb[0].mxu0
    %v3857 = vadd.f32 0.0, %v3856
    %v3858 = vpop.f32.mrb[0].mxu0
    %v3859 = vadd.f32 0.0, %v3858
    %v3860 = vpop.f32.mrb[0].mxu0
    %v3861 = vadd.f32 0.0, %v3860
    %v3862 = vpop.f32.mrb[0].mxu0
    %v3863 = vadd.f32 0.0, %v3862
    %3864 = vmatprep.mubr.bf16.mxu0 %v3600
    %3865 = vmatmul.mubr.bf16.gmra.mrb[0].mxu0 %v3599
    %v3866 = vpop.f32.mrb[0].mxu0
    %v3867 = vadd.f32 0.0, %v3866
    %v3868 = vpop.f32.mrb[0].mxu0
    %v3869 = vadd.f32 0.0, %v3868
    %v3870 = vpop.f32.mrb[0].mxu0
    %v3871 = vadd.f32 0.0, %v3870
    %v3872 = vpop.f32.mrb[0].mxu0
    %v3873 = vadd.f32 0.0, %v3872
    %3874 = vmatprep.mubr.bf16.mxu0 %v3602
    %3875 = vmatmul.mubr.bf16.gmra.mrb[0].mxu0 %v3601
    %v3876 = vpop.f32.mrb[0].mxu0
    %v3877 = vadd.f32 0.0, %v3876
    %v3878 = vpop.f32.mrb[0].mxu0
    %v3879 = vadd.f32 0.0, %v3878
    %v3880 = vpop.f32.mrb[0].mxu0
    %v3881 = vadd.f32 0.0, %v3880
    %v3882 = vpop.f32.mrb[0].mxu0
    %v3883 = vadd.f32 0.0, %v3882
    %3884 = vmatprep.mubr.bf16.mxu0 %v3604
    %3885 = vmatmul.mubr.bf16.gmra.mrb[0].mxu0 %v3603
    %v3886 = vpop.f32.mrb[0].mxu0
    %v3887 = vadd.f32 0.0, %v3886
    %v3888 = vpop.f32.mrb[0].mxu0
    %v3889 = vadd.f32 0.0, %v3888
    %v3890 = vpop.f32.mrb[0].mxu0
    %v3891 = vadd.f32 0.0, %v3890
    %v3892 = vpop.f32.mrb[0].mxu0
    %v3893 = vadd.f32 0.0, %v3892
    %3894 = vmatprep.mubr.bf16.mxu0 %v3606
    %3895 = vmatmul.mubr.bf16.gmra.mrb[0].mxu0 %v3605
    %v3896 = vpop.f32.mrb[0].mxu0
    %v3897 = vadd.f32 0.0, %v3896
    %v3898 = vpop.f32.mrb[0].mxu0
    %v3899 = vadd.f32 0.0, %v3898
    %v3900 = vpop.f32.mrb[0].mxu0
    %v3901 = vadd.f32 0.0, %v3900
    %v3902 = vpop.f32.mrb[0].mxu0
    %v3903 = vadd.f32 0.0, %v3902
    %3904 = vmatprep.mubr.bf16.mxu0 %v3608
    %3905 = vmatmul.mubr.bf16.gmra.mrb[0].mxu0 %v3607
    %v3906 = vpop.f32.mrb[0].mxu0
    %v3907 = vadd.f32 0.0, %v3906
    %v3908 = vpop.f32.mrb[0].mxu0
    %v3909 = vadd.f32 0.0, %v3908
    %v3910 = vpop.f32.mrb[0].mxu0
    %v3911 = vadd.f32 0.0, %v3910
    %v3912 = vpop.f32.mrb[0].mxu0
    %v3913 = vadd.f32 0.0, %v3912
    %3914 = vmatprep.mubr.bf16.mxu0 %v3610
    %3915 = vmatmul.mubr.bf16.gmra.mrb[0].mxu0 %v3609
    %v3916 = vpop.f32.mrb[0].mxu0
    %v3917 = vadd.f32 0.0, %v3916
    %v3918 = vpop.f32.mrb[0].mxu0
    %v3919 = vadd.f32 0.0, %v3918
    %v3920 = vpop.f32.mrb[0].mxu0
    %v3921 = vadd.f32 0.0, %v3920
    %v3922 = vpop.f32.mrb[0].mxu0
    %v3923 = vadd.f32 0.0, %v3922
    %3924 = vmatprep.mubr.bf16.mxu0 %v3612
    %3925 = vmatmul.mubr.bf16.gmra.mrb[0].mxu0 %v3611
    %v3926 = vpop.f32.mrb[0].mxu0
    %v3927 = vadd.f32 0.0, %v3926
    %v3928 = vpop.f32.mrb[0].mxu0
    %v3929 = vadd.f32 0.0, %v3928
    %v3930 = vpop.f32.mrb[0].mxu0
    %v3931 = vadd.f32 0.0, %v3930
    %v3932 = vpop.f32.mrb[0].mxu0
    %v3933 = vadd.f32 0.0, %v3932
    %3934 = vmatprep.mubr.bf16.mxu0 %v3614
    %3935 = vmatmul.mubr.bf16.gmra.mrb[0].mxu0 %v3613
    %v3936 = vpop.f32.mrb[0].mxu0
    %v3937 = vadd.f32 0.0, %v3936
    %v3938 = vpop.f32.mrb[0].mxu0
    %v3939 = vadd.f32 0.0, %v3938
    %v3940 = vpop.f32.mrb[0].mxu0
    %v3941 = vadd.f32 0.0, %v3940
    %v3942 = vpop.f32.mrb[0].mxu0
    %v3943 = vadd.f32 0.0, %v3942
    %3944 = vmatprep.mubr.bf16.mxu0 %v3616
    %3945 = vmatmul.mubr.bf16.gmra.mrb[0].mxu0 %v3615
    %v3946 = vpop.f32.mrb[0].mxu0
    %v3947 = vadd.f32 0.0, %v3946
    %v3948 = vpop.f32.mrb[0].mxu0
    %v3949 = vadd.f32 0.0, %v3948
    %v3950 = vpop.f32.mrb[0].mxu0
    %v3951 = vadd.f32 0.0, %v3950
    %v3952 = vpop.f32.mrb[0].mxu0
    %v3953 = vadd.f32 0.0, %v3952
    %3954 = vmatprep.mubr.bf16.mxu0 %v3618
    %3955 = vmatmul.mubr.bf16.gmra.mrb[0].mxu0 %v3617
    %v3956 = vpop.f32.mrb[0].mxu0
    %v3957 = vadd.f32 0.0, %v3956
    %v3958 = vpop.f32.mrb[0].mxu0
    %v3959 = vadd.f32 0.0, %v3958
    %v3960 = vpop.f32.mrb[0].mxu0
    %v3961 = vadd.f32 0.0, %v3960
    %v3962 = vpop.f32.mrb[0].mxu0
    %v3963 = vadd.f32 0.0, %v3962
    %3964 = vmatprep.mubr.bf16.mxu0 %v3620
    %3965 = vmatmul.mubr.bf16.gmra.mrb[0].mxu0 %v3619
    %v3966 = vpop.f32.mrb[0].mxu0
    %v3967 = vadd.f32 0.0, %v3966
    %v3968 = vpop.f32.mrb[0].mxu0
    %v3969 = vadd.f32 0.0, %v3968
    %v3970 = vpop.f32.mrb[0].mxu0
    %v3971 = vadd.f32 0.0, %v3970
    %v3972 = vpop.f32.mrb[0].mxu0
    %v3973 = vadd.f32 0.0, %v3972
    %3974 = vmatprep.mubr.bf16.mxu0 %v3622
    %3975 = vmatmul.mubr.bf16.gmra.mrb[0].mxu0 %v3621
    %v3976 = vpop.f32.mrb[0].mxu0
    %v3977 = vadd.f32 0.0, %v3976
    %v3978 = vpop.f32.mrb[0].mxu0
    %v3979 = vadd.f32 0.0, %v3978
    %v3980 = vpop.f32.mrb[0].mxu0
    %v3981 = vadd.f32 0.0, %v3980
    %v3982 = vpop.f32.mrb[0].mxu0
    %v3983 = vadd.f32 0.0, %v3982
    %3984 = vmatprep.mubr.bf16.mxu0 %v3624
    %3985 = vmatmul.mubr.bf16.gmra.mrb[0].mxu0 %v3623
    %v3986 = vpop.f32.mrb[0].mxu0
    %v3987 = vadd.f32 0.0, %v3986
    %v3988 = vpop.f32.mrb[0].mxu0
    %v3989 = vadd.f32 0.0, %v3988
    %v3990 = vpop.f32.mrb[0].mxu0
    %v3991 = vadd.f32 0.0, %v3990
    %v3992 = vpop.f32.mrb[0].mxu0
    %v3993 = vadd.f32 0.0, %v3992
    %3994 = vmatprep.mubr.bf16.mxu0 %v3626
    %3995 = vmatmul.mubr.bf16.gmra.mrb[0].mxu0 %v3625
    %v3996 = vpop.f32.mrb[0].mxu0
    %v3997 = vadd.f32 0.0, %v3996
    %v3998 = vpop.f32.mrb[0].mxu0
    %v3999 = vadd.f32 0.0, %v3998
    %v4000 = vpop.f32.mrb[0].mxu0
    %v4001 = vadd.f32 0.0, %v4000
    %v4002 = vpop.f32.mrb[0].mxu0
    %v4003 = vadd.f32 0.0, %v4002
    %4004 = vmatprep.mubr.bf16.mxu0 %v3628
    %4005 = vmatmul.mubr.bf16.gmra.mrb[0].mxu0 %v3627
    %v4006 = vpop.f32.mrb[0].mxu0
    %v4007 = vadd.f32 0.0, %v4006
    %v4008 = vpop.f32.mrb[0].mxu0
    %v4009 = vadd.f32 0.0, %v4008
    %v4010 = vpop.f32.mrb[0].mxu0
    %v4011 = vadd.f32 0.0, %v4010
    %v4012 = vpop.f32.mrb[0].mxu0
    %v4013 = vadd.f32 0.0, %v4012
    %4014 = vdwg.mxu0
    %v4015 = vadd.f32 %v3086, %v3857
    %v4016 = vadd.f32 %v3088, %v3859
    %v4017 = vadd.f32 %v3090, %v3861
    %v4018 = vadd.f32 %v3092, %v3863
    %v4019 = vadd.f32 %v3096, %v3867
    %v4020 = vadd.f32 %v3098, %v3869
    %v4021 = vadd.f32 %v3100, %v3871
    %v4022 = vadd.f32 %v3102, %v3873
    %v4023 = vadd.f32 %v3106, %v3877
    %v4024 = vadd.f32 %v3108, %v3879
    %v4025 = vadd.f32 %v3110, %v3881
    %v4026 = vadd.f32 %v3112, %v3883
    %v4027 = vadd.f32 %v3116, %v3887
    %v4028 = vadd.f32 %v3118, %v3889
    %v4029 = vadd.f32 %v3120, %v3891
    %v4030 = vadd.f32 %v3122, %v3893
    %v4031 = vadd.f32 %v3126, %v3897
    %v4032 = vadd.f32 %v3128, %v3899
    %v4033 = vadd.f32 %v3130, %v3901
    %v4034 = vadd.f32 %v3132, %v3903
    %v4035 = vadd.f32 %v3136, %v3907
    %v4036 = vadd.f32 %v3138, %v3909
    %v4037 = vadd.f32 %v3140, %v3911
    %v4038 = vadd.f32 %v3142, %v3913
    %v4039 = vadd.f32 %v3146, %v3917
    %v4040 = vadd.f32 %v3148, %v3919
    %v4041 = vadd.f32 %v3150, %v3921
    %v4042 = vadd.f32 %v3152, %v3923
    %v4043 = vadd.f32 %v3156, %v3927
    %v4044 = vadd.f32 %v3158, %v3929
    %v4045 = vadd.f32 %v3160, %v3931
    %v4046 = vadd.f32 %v3162, %v3933
    %v4047 = vadd.f32 %v3166, %v3937
    %v4048 = vadd.f32 %v3168, %v3939
    %v4049 = vadd.f32 %v3170, %v3941
    %v4050 = vadd.f32 %v3172, %v3943
    %v4051 = vadd.f32 %v3176, %v3947
    %v4052 = vadd.f32 %v3178, %v3949
    %v4053 = vadd.f32 %v3180, %v3951
    %v4054 = vadd.f32 %v3182, %v3953
    %v4055 = vadd.f32 %v3186, %v3957
    %v4056 = vadd.f32 %v3188, %v3959
    %v4057 = vadd.f32 %v3190, %v3961
    %v4058 = vadd.f32 %v3192, %v3963
    %v4059 = vadd.f32 %v3196, %v3967
    %v4060 = vadd.f32 %v3198, %v3969
    %v4061 = vadd.f32 %v3200, %v3971
    %v4062 = vadd.f32 %v3202, %v3973
    %v4063 = vadd.f32 %v3206, %v3977
    %v4064 = vadd.f32 %v3208, %v3979
    %v4065 = vadd.f32 %v3210, %v3981
    %v4066 = vadd.f32 %v3212, %v3983
    %v4067 = vadd.f32 %v3216, %v3987
    %v4068 = vadd.f32 %v3218, %v3989
    %v4069 = vadd.f32 %v3220, %v3991
    %v4070 = vadd.f32 %v3222, %v3993
    %v4071 = vadd.f32 %v3226, %v3997
    %v4072 = vadd.f32 %v3228, %v3999
    %v4073 = vadd.f32 %v3230, %v4001
    %v4074 = vadd.f32 %v3232, %v4003
    %v4075 = vadd.f32 %v3236, %v4007
    %v4076 = vadd.f32 %v3238, %v4009
    %v4077 = vadd.f32 %v3240, %v4011
    %v4078 = vadd.f32 %v3242, %v4013
    %v4079 = vld [vmem:[%s5] sm:$0x3]
    %v4081 = vlaneseq
    %v4082 = vshrl.u32 %v4081, 7
    %v4083 = vsub.s32 0, %v4082
    %v4084 = vrot.slane %v4079, %v4083
    %v4085 = vlaneseq
    %v4086 = vshrl.u32 %v4085, 7
    %v4087 = vsub.s32 1, %v4086
    %v4088 = vrot.slane %v4079, %v4087
    %v4091 = vmul.f32 %v4015, %v4084
    %v4092 = vmul.f32 %v4016, %v4088
    %v4093 = vmul.f32 %v4017, %v4084
    %v4094 = vmul.f32 %v4018, %v4088
    %v4095 = vmul.f32 %v4019, %v4084
    %v4096 = vmul.f32 %v4020, %v4088
    %v4097 = vmul.f32 %v4021, %v4084
    %v4098 = vmul.f32 %v4022, %v4088
    %v4099 = vmul.f32 %v4023, %v4084
    %v4100 = vmul.f32 %v4024, %v4088
    %v4101 = vmul.f32 %v4025, %v4084
    %v4102 = vmul.f32 %v4026, %v4088
    %v4103 = vmul.f32 %v4027, %v4084
    %v4104 = vmul.f32 %v4028, %v4088
    %v4105 = vmul.f32 %v4029, %v4084
    %v4106 = vmul.f32 %v4030, %v4088
    %v4107 = vmul.f32 %v4031, %v4084
    %v4108 = vmul.f32 %v4032, %v4088
    %v4109 = vmul.f32 %v4033, %v4084
    %v4110 = vmul.f32 %v4034, %v4088
    %v4111 = vmul.f32 %v4035, %v4084
    %v4112 = vmul.f32 %v4036, %v4088
    %v4113 = vmul.f32 %v4037, %v4084
    %v4114 = vmul.f32 %v4038, %v4088
    %v4115 = vmul.f32 %v4039, %v4084
    %v4116 = vmul.f32 %v4040, %v4088
    %v4117 = vmul.f32 %v4041, %v4084
    %v4118 = vmul.f32 %v4042, %v4088
    %v4119 = vmul.f32 %v4043, %v4084
    %v4120 = vmul.f32 %v4044, %v4088
    %v4121 = vmul.f32 %v4045, %v4084
    %v4122 = vmul.f32 %v4046, %v4088
    %v4123 = vmul.f32 %v4047, %v4084
    %v4124 = vmul.f32 %v4048, %v4088
    %v4125 = vmul.f32 %v4049, %v4084
    %v4126 = vmul.f32 %v4050, %v4088
    %v4127 = vmul.f32 %v4051, %v4084
    %v4128 = vmul.f32 %v4052, %v4088
    %v4129 = vmul.f32 %v4053, %v4084
    %v4130 = vmul.f32 %v4054, %v4088
    %v4131 = vmul.f32 %v4055, %v4084
    %v4132 = vmul.f32 %v4056, %v4088
    %v4133 = vmul.f32 %v4057, %v4084
    %v4134 = vmul.f32 %v4058, %v4088
    %v4135 = vmul.f32 %v4059, %v4084
    %v4136 = vmul.f32 %v4060, %v4088
    %v4137 = vmul.f32 %v4061, %v4084
    %v4138 = vmul.f32 %v4062, %v4088
    %v4139 = vmul.f32 %v4063, %v4084
    %v4140 = vmul.f32 %v4064, %v4088
    %v4141 = vmul.f32 %v4065, %v4084
    %v4142 = vmul.f32 %v4066, %v4088
    %v4143 = vmul.f32 %v4067, %v4084
    %v4144 = vmul.f32 %v4068, %v4088
    %v4145 = vmul.f32 %v4069, %v4084
    %v4146 = vmul.f32 %v4070, %v4088
    %v4147 = vmul.f32 %v4071, %v4084
    %v4148 = vmul.f32 %v4072, %v4088
    %v4149 = vmul.f32 %v4073, %v4084
    %v4150 = vmul.f32 %v4074, %v4088
    %v4151 = vmul.f32 %v4075, %v4084
    %v4152 = vmul.f32 %v4076, %v4088
    %v4153 = vmul.f32 %v4077, %v4084
    %v4154 = vmul.f32 %v4078, %v4088
    %v4155 = vld [vmem:[%s6] sm:$0x3]
    %v4157 = vlaneseq
    %v4158 = vshrl.u32 %v4157, 7
    %v4159 = vsub.s32 0, %v4158
    %v4160 = vrot.slane %v4155, %v4159
    %v4161 = vlaneseq
    %v4162 = vshrl.u32 %v4161, 7
    %v4163 = vsub.s32 1, %v4162
    %v4164 = vrot.slane %v4155, %v4163
    %v4167 = vadd.f32 %v4091, %v4160
    %v4168 = vadd.f32 %v4092, %v4164
    %v4169 = vadd.f32 %v4093, %v4160
    %v4170 = vadd.f32 %v4094, %v4164
    %v4171 = vadd.f32 %v4095, %v4160
    %v4172 = vadd.f32 %v4096, %v4164
    %v4173 = vadd.f32 %v4097, %v4160
    %v4174 = vadd.f32 %v4098, %v4164
    %v4175 = vadd.f32 %v4099, %v4160
    %v4176 = vadd.f32 %v4100, %v4164
    %v4177 = vadd.f32 %v4101, %v4160
    %v4178 = vadd.f32 %v4102, %v4164
    %v4179 = vadd.f32 %v4103, %v4160
    %v4180 = vadd.f32 %v4104, %v4164
    %v4181 = vadd.f32 %v4105, %v4160
    %v4182 = vadd.f32 %v4106, %v4164
    %v4183 = vadd.f32 %v4107, %v4160
    %v4184 = vadd.f32 %v4108, %v4164
    %v4185 = vadd.f32 %v4109, %v4160
    %v4186 = vadd.f32 %v4110, %v4164
    %v4187 = vadd.f32 %v4111, %v4160
    %v4188 = vadd.f32 %v4112, %v4164
    %v4189 = vadd.f32 %v4113, %v4160
    %v4190 = vadd.f32 %v4114, %v4164
    %v4191 = vadd.f32 %v4115, %v4160
    %v4192 = vadd.f32 %v4116, %v4164
    %v4193 = vadd.f32 %v4117, %v4160
    %v4194 = vadd.f32 %v4118, %v4164
    %v4195 = vadd.f32 %v4119, %v4160
    %v4196 = vadd.f32 %v4120, %v4164
    %v4197 = vadd.f32 %v4121, %v4160
    %v4198 = vadd.f32 %v4122, %v4164
    %v4199 = vadd.f32 %v4123, %v4160
    %v4200 = vadd.f32 %v4124, %v4164
    %v4201 = vadd.f32 %v4125, %v4160
    %v4202 = vadd.f32 %v4126, %v4164
    %v4203 = vadd.f32 %v4127, %v4160
    %v4204 = vadd.f32 %v4128, %v4164
    %v4205 = vadd.f32 %v4129, %v4160
    %v4206 = vadd.f32 %v4130, %v4164
    %v4207 = vadd.f32 %v4131, %v4160
    %v4208 = vadd.f32 %v4132, %v4164
    %v4209 = vadd.f32 %v4133, %v4160
    %v4210 = vadd.f32 %v4134, %v4164
    %v4211 = vadd.f32 %v4135, %v4160
    %v4212 = vadd.f32 %v4136, %v4164
    %v4213 = vadd.f32 %v4137, %v4160
    %v4214 = vadd.f32 %v4138, %v4164
    %v4215 = vadd.f32 %v4139, %v4160
    %v4216 = vadd.f32 %v4140, %v4164
    %v4217 = vadd.f32 %v4141, %v4160
    %v4218 = vadd.f32 %v4142, %v4164
    %v4219 = vadd.f32 %v4143, %v4160
    %v4220 = vadd.f32 %v4144, %v4164
    %v4221 = vadd.f32 %v4145, %v4160
    %v4222 = vadd.f32 %v4146, %v4164
    %v4223 = vadd.f32 %v4147, %v4160
    %v4224 = vadd.f32 %v4148, %v4164
    %v4225 = vadd.f32 %v4149, %v4160
    %v4226 = vadd.f32 %v4150, %v4164
    %v4227 = vadd.f32 %v4151, %v4160
    %v4228 = vadd.f32 %v4152, %v4164
    %v4229 = vadd.f32 %v4153, %v4160
    %v4230 = vadd.f32 %v4154, %v4164
    %v4231 = vadd.f32 %v4167, %v4169
    %v4232 = vrot.slane %v4231, 4
    %v4233 = vadd.f32 %v4231, %v4232
    %v4234 = vrot.slane %v4233, 2
    %v4235 = vadd.f32 %v4233, %v4234
    %v4236 = vrot.slane %v4235, 1
    %v4237 = vadd.f32 %v4235, %v4236
    %v4238 = vadd.f32 %v4168, %v4170
    %v4239 = vrot.slane %v4238, 4
    %v4240 = vadd.f32 %v4238, %v4239
    %v4241 = vrot.slane %v4240, 2
    %v4242 = vadd.f32 %v4240, %v4241
    %v4243 = vrot.slane %v4242, 1
    %v4244 = vadd.f32 %v4242, %v4243
    %v4245 = vadd.f32 %v4171, %v4173
    %v4246 = vrot.slane %v4245, 4
    %v4247 = vadd.f32 %v4245, %v4246
    %v4248 = vrot.slane %v4247, 2
    %v4249 = vadd.f32 %v4247, %v4248
    %v4250 = vrot.slane %v4249, 1
    %v4251 = vadd.f32 %v4249, %v4250
    %v4252 = vadd.f32 %v4172, %v4174
    %v4253 = vrot.slane %v4252, 4
    %v4254 = vadd.f32 %v4252, %v4253
    %v4255 = vrot.slane %v4254, 2
    %v4256 = vadd.f32 %v4254, %v4255
    %v4257 = vrot.slane %v4256, 1
    %v4258 = vadd.f32 %v4256, %v4257
    %v4259 = vadd.f32 %v4175, %v4177
    %v4260 = vrot.slane %v4259, 4
    %v4261 = vadd.f32 %v4259, %v4260
    %v4262 = vrot.slane %v4261, 2
    %v4263 = vadd.f32 %v4261, %v4262
    %v4264 = vrot.slane %v4263, 1
    %v4265 = vadd.f32 %v4263, %v4264
    %v4266 = vadd.f32 %v4176, %v4178
    %v4267 = vrot.slane %v4266, 4
    %v4268 = vadd.f32 %v4266, %v4267
    %v4269 = vrot.slane %v4268, 2
    %v4270 = vadd.f32 %v4268, %v4269
    %v4271 = vrot.slane %v4270, 1
    %v4272 = vadd.f32 %v4270, %v4271
    %v4273 = vadd.f32 %v4179, %v4181
    %v4274 = vrot.slane %v4273, 4
    %v4275 = vadd.f32 %v4273, %v4274
    %v4276 = vrot.slane %v4275, 2
    %v4277 = vadd.f32 %v4275, %v4276
    %v4278 = vrot.slane %v4277, 1
    %v4279 = vadd.f32 %v4277, %v4278
    %v4280 = vadd.f32 %v4180, %v4182
    %v4281 = vrot.slane %v4280, 4
    %v4282 = vadd.f32 %v4280, %v4281
    %v4283 = vrot.slane %v4282, 2
    %v4284 = vadd.f32 %v4282, %v4283
    %v4285 = vrot.slane %v4284, 1
    %v4286 = vadd.f32 %v4284, %v4285
    %v4287 = vadd.f32 %v4183, %v4185
    %v4288 = vrot.slane %v4287, 4
    %v4289 = vadd.f32 %v4287, %v4288
    %v4290 = vrot.slane %v4289, 2
    %v4291 = vadd.f32 %v4289, %v4290
    %v4292 = vrot.slane %v4291, 1
    %v4293 = vadd.f32 %v4291, %v4292
    %v4294 = vadd.f32 %v4184, %v4186
    %v4295 = vrot.slane %v4294, 4
    %v4296 = vadd.f32 %v4294, %v4295
    %v4297 = vrot.slane %v4296, 2
    %v4298 = vadd.f32 %v4296, %v4297
    %v4299 = vrot.slane %v4298, 1
    %v4300 = vadd.f32 %v4298, %v4299
    %v4301 = vadd.f32 %v4187, %v4189
    %v4302 = vrot.slane %v4301, 4
    %v4303 = vadd.f32 %v4301, %v4302
    %v4304 = vrot.slane %v4303, 2
    %v4305 = vadd.f32 %v4303, %v4304
    %v4306 = vrot.slane %v4305, 1
    %v4307 = vadd.f32 %v4305, %v4306
    %v4308 = vadd.f32 %v4188, %v4190
    %v4309 = vrot.slane %v4308, 4
    %v4310 = vadd.f32 %v4308, %v4309
    %v4311 = vrot.slane %v4310, 2
    %v4312 = vadd.f32 %v4310, %v4311
    %v4313 = vrot.slane %v4312, 1
    %v4314 = vadd.f32 %v4312, %v4313
    %v4315 = vadd.f32 %v4191, %v4193
    %v4316 = vrot.slane %v4315, 4
    %v4317 = vadd.f32 %v4315, %v4316
    %v4318 = vrot.slane %v4317, 2
    %v4319 = vadd.f32 %v4317, %v4318
    %v4320 = vrot.slane %v4319, 1
    %v4321 = vadd.f32 %v4319, %v4320
    %v4322 = vadd.f32 %v4192, %v4194
    %v4323 = vrot.slane %v4322, 4
    %v4324 = vadd.f32 %v4322, %v4323
    %v4325 = vrot.slane %v4324, 2
    %v4326 = vadd.f32 %v4324, %v4325
    %v4327 = vrot.slane %v4326, 1
    %v4328 = vadd.f32 %v4326, %v4327
    %v4329 = vadd.f32 %v4195, %v4197
    %v4330 = vrot.slane %v4329, 4
    %v4331 = vadd.f32 %v4329, %v4330
    %v4332 = vrot.slane %v4331, 2
    %v4333 = vadd.f32 %v4331, %v4332
    %v4334 = vrot.slane %v4333, 1
    %v4335 = vadd.f32 %v4333, %v4334
    %v4336 = vadd.f32 %v4196, %v4198
    %v4337 = vrot.slane %v4336, 4
    %v4338 = vadd.f32 %v4336, %v4337
    %v4339 = vrot.slane %v4338, 2
    %v4340 = vadd.f32 %v4338, %v4339
    %v4341 = vrot.slane %v4340, 1
    %v4342 = vadd.f32 %v4340, %v4341
    %v4343 = vadd.f32 %v4199, %v4201
    %v4344 = vrot.slane %v4343, 4
    %v4345 = vadd.f32 %v4343, %v4344
    %v4346 = vrot.slane %v4345, 2
    %v4347 = vadd.f32 %v4345, %v4346
    %v4348 = vrot.slane %v4347, 1
    %v4349 = vadd.f32 %v4347, %v4348
    %v4350 = vadd.f32 %v4200, %v4202
    %v4351 = vrot.slane %v4350, 4
    %v4352 = vadd.f32 %v4350, %v4351
    %v4353 = vrot.slane %v4352, 2
    %v4354 = vadd.f32 %v4352, %v4353
    %v4355 = vrot.slane %v4354, 1
    %v4356 = vadd.f32 %v4354, %v4355
    %v4357 = vadd.f32 %v4203, %v4205
    %v4358 = vrot.slane %v4357, 4
    %v4359 = vadd.f32 %v4357, %v4358
    %v4360 = vrot.slane %v4359, 2
    %v4361 = vadd.f32 %v4359, %v4360
    %v4362 = vrot.slane %v4361, 1
    %v4363 = vadd.f32 %v4361, %v4362
    %v4364 = vadd.f32 %v4204, %v4206
    %v4365 = vrot.slane %v4364, 4
    %v4366 = vadd.f32 %v4364, %v4365
    %v4367 = vrot.slane %v4366, 2
    %v4368 = vadd.f32 %v4366, %v4367
    %v4369 = vrot.slane %v4368, 1
    %v4370 = vadd.f32 %v4368, %v4369
    %v4371 = vadd.f32 %v4207, %v4209
    %v4372 = vrot.slane %v4371, 4
    %v4373 = vadd.f32 %v4371, %v4372
    %v4374 = vrot.slane %v4373, 2
    %v4375 = vadd.f32 %v4373, %v4374
    %v4376 = vrot.slane %v4375, 1
    %v4377 = vadd.f32 %v4375, %v4376
    %v4378 = vadd.f32 %v4208, %v4210
    %v4379 = vrot.slane %v4378, 4
    %v4380 = vadd.f32 %v4378, %v4379
    %v4381 = vrot.slane %v4380, 2
    %v4382 = vadd.f32 %v4380, %v4381
    %v4383 = vrot.slane %v4382, 1
    %v4384 = vadd.f32 %v4382, %v4383
    %v4385 = vadd.f32 %v4211, %v4213
    %v4386 = vrot.slane %v4385, 4
    %v4387 = vadd.f32 %v4385, %v4386
    %v4388 = vrot.slane %v4387, 2
    %v4389 = vadd.f32 %v4387, %v4388
    %v4390 = vrot.slane %v4389, 1
    %v4391 = vadd.f32 %v4389, %v4390
    %v4392 = vadd.f32 %v4212, %v4214
    %v4393 = vrot.slane %v4392, 4
    %v4394 = vadd.f32 %v4392, %v4393
    %v4395 = vrot.slane %v4394, 2
    %v4396 = vadd.f32 %v4394, %v4395
    %v4397 = vrot.slane %v4396, 1
    %v4398 = vadd.f32 %v4396, %v4397
    %v4399 = vadd.f32 %v4215, %v4217
    %v4400 = vrot.slane %v4399, 4
    %v4401 = vadd.f32 %v4399, %v4400
    %v4402 = vrot.slane %v4401, 2
    %v4403 = vadd.f32 %v4401, %v4402
    %v4404 = vrot.slane %v4403, 1
    %v4405 = vadd.f32 %v4403, %v4404
    %v4406 = vadd.f32 %v4216, %v4218
    %v4407 = vrot.slane %v4406, 4
    %v4408 = vadd.f32 %v4406, %v4407
    %v4409 = vrot.slane %v4408, 2
    %v4410 = vadd.f32 %v4408, %v4409
    %v4411 = vrot.slane %v4410, 1
    %v4412 = vadd.f32 %v4410, %v4411
    %v4413 = vadd.f32 %v4219, %v4221
    %v4414 = vrot.slane %v4413, 4
    %v4415 = vadd.f32 %v4413, %v4414
    %v4416 = vrot.slane %v4415, 2
    %v4417 = vadd.f32 %v4415, %v4416
    %v4418 = vrot.slane %v4417, 1
    %v4419 = vadd.f32 %v4417, %v4418
    %v4420 = vadd.f32 %v4220, %v4222
    %v4421 = vrot.slane %v4420, 4
    %v4422 = vadd.f32 %v4420, %v4421
    %v4423 = vrot.slane %v4422, 2
    %v4424 = vadd.f32 %v4422, %v4423
    %v4425 = vrot.slane %v4424, 1
    %v4426 = vadd.f32 %v4424, %v4425
    %v4427 = vadd.f32 %v4223, %v4225
    %v4428 = vrot.slane %v4427, 4
    %v4429 = vadd.f32 %v4427, %v4428
    %v4430 = vrot.slane %v4429, 2
    %v4431 = vadd.f32 %v4429, %v4430
    %v4432 = vrot.slane %v4431, 1
    %v4433 = vadd.f32 %v4431, %v4432
    %v4434 = vadd.f32 %v4224, %v4226
    %v4435 = vrot.slane %v4434, 4
    %v4436 = vadd.f32 %v4434, %v4435
    %v4437 = vrot.slane %v4436, 2
    %v4438 = vadd.f32 %v4436, %v4437
    %v4439 = vrot.slane %v4438, 1
    %v4440 = vadd.f32 %v4438, %v4439
    %v4441 = vadd.f32 %v4227, %v4229
    %v4442 = vrot.slane %v4441, 4
    %v4443 = vadd.f32 %v4441, %v4442
    %v4444 = vrot.slane %v4443, 2
    %v4445 = vadd.f32 %v4443, %v4444
    %v4446 = vrot.slane %v4445, 1
    %v4447 = vadd.f32 %v4445, %v4446
    %v4448 = vadd.f32 %v4228, %v4230
    %v4449 = vrot.slane %v4448, 4
    %v4450 = vadd.f32 %v4448, %v4449
    %v4451 = vrot.slane %v4450, 2
    %v4452 = vadd.f32 %v4450, %v4451
    %v4453 = vrot.slane %v4452, 1
    %v4454 = vadd.f32 %v4452, %v4453
    %v4455 = vpack.c.bf16 %v4237, %v4237
    %v4456 = vpack.c.bf16 %v4244, %v4244
    %v4457 = vpack.c.bf16 %v4251, %v4251
    %v4458 = vpack.c.bf16 %v4258, %v4258
    %v4459 = vpack.c.bf16 %v4265, %v4265
    %v4460 = vpack.c.bf16 %v4272, %v4272
    %v4461 = vpack.c.bf16 %v4279, %v4279
    %v4462 = vpack.c.bf16 %v4286, %v4286
    %v4463 = vpack.c.bf16 %v4293, %v4293
    %v4464 = vpack.c.bf16 %v4300, %v4300
    %v4465 = vpack.c.bf16 %v4307, %v4307
    %v4466 = vpack.c.bf16 %v4314, %v4314
    %v4467 = vpack.c.bf16 %v4321, %v4321
    %v4468 = vpack.c.bf16 %v4328, %v4328
    %v4469 = vpack.c.bf16 %v4335, %v4335
    %v4470 = vpack.c.bf16 %v4342, %v4342
    %v4471 = vpack.c.bf16 %v4349, %v4349
    %v4472 = vpack.c.bf16 %v4356, %v4356
    %v4473 = vpack.c.bf16 %v4363, %v4363
    %v4474 = vpack.c.bf16 %v4370, %v4370
    %v4475 = vpack.c.bf16 %v4377, %v4377
    %v4476 = vpack.c.bf16 %v4384, %v4384
    %v4477 = vpack.c.bf16 %v4391, %v4391
    %v4478 = vpack.c.bf16 %v4398, %v4398
    %v4479 = vpack.c.bf16 %v4405, %v4405
    %v4480 = vpack.c.bf16 %v4412, %v4412
    %v4481 = vpack.c.bf16 %v4419, %v4419
    %v4482 = vpack.c.bf16 %v4426, %v4426
    %v4483 = vpack.c.bf16 %v4433, %v4433
    %v4484 = vpack.c.bf16 %v4440, %v4440
    %v4485 = vpack.c.bf16 %v4447, %v4447
    %v4486 = vpack.c.bf16 %v4454, %v4454
    %v4487 = vld [vmem:[%s7] sm:$0xf]
    %v4488 = vld [vmem:[%s7 + $0x4] sm:$0xf]
    %v4489 = vld [vmem:[%s7 + $0x8] sm:$0xf]
    %v4490 = vld [vmem:[%s7 + $0xc] sm:$0xf]
    %v4491 = vld [vmem:[%s7 + $0x10] sm:$0xf]
    %v4492 = vld [vmem:[%s7 + $0x14] sm:$0xf]
    %v4493 = vld [vmem:[%s7 + $0x18] sm:$0xf]
    %v4494 = vld [vmem:[%s7 + $0x1c] sm:$0xf]
    %v4495 = vld [vmem:[%s7 + $0x20] sm:$0xf]
    %v4496 = vld [vmem:[%s7 + $0x24] sm:$0xf]
    %v4497 = vld [vmem:[%s7 + $0x28] sm:$0xf]
    %v4498 = vld [vmem:[%s7 + $0x2c] sm:$0xf]
    %v4499 = vld [vmem:[%s7 + $0x30] sm:$0xf]
    %v4500 = vld [vmem:[%s7 + $0x34] sm:$0xf]
    %v4501 = vld [vmem:[%s7 + $0x38] sm:$0xf]
    %v4502 = vld [vmem:[%s7 + $0x3c] sm:$0xf]
    %v4503 = vld [vmem:[%s7 + $0x40] sm:$0xf]
    %v4504 = vld [vmem:[%s7 + $0x44] sm:$0xf]
    %v4505 = vld [vmem:[%s7 + $0x48] sm:$0xf]
    %v4506 = vld [vmem:[%s7 + $0x4c] sm:$0xf]
    %v4507 = vld [vmem:[%s7 + $0x50] sm:$0xf]
    %v4508 = vld [vmem:[%s7 + $0x54] sm:$0xf]
    %v4509 = vld [vmem:[%s7 + $0x58] sm:$0xf]
    %v4510 = vld [vmem:[%s7 + $0x5c] sm:$0xf]
    %v4511 = vld [vmem:[%s7 + $0x60] sm:$0xf]
    %v4512 = vld [vmem:[%s7 + $0x64] sm:$0xf]
    %v4513 = vld [vmem:[%s7 + $0x68] sm:$0xf]
    %v4514 = vld [vmem:[%s7 + $0x6c] sm:$0xf]
    %v4515 = vld [vmem:[%s7 + $0x70] sm:$0xf]
    %v4516 = vld [vmem:[%s7 + $0x74] sm:$0xf]
    %v4517 = vld [vmem:[%s7 + $0x78] sm:$0xf]
    %v4518 = vld [vmem:[%s7 + $0x7c] sm:$0xf]
    %v4551 = vunpack.c.l.b16 %v4455
    %v4552 = vunpack.c.l.b16 %v4456
    %v4553 = vunpack.c.l.b16 %v4457
    %v4554 = vunpack.c.l.b16 %v4458
    %v4555 = vunpack.c.l.b16 %v4459
    %v4556 = vunpack.c.l.b16 %v4460
    %v4557 = vunpack.c.l.b16 %v4461
    %v4558 = vunpack.c.l.b16 %v4462
    %v4559 = vunpack.c.l.b16 %v4463
    %v4560 = vunpack.c.l.b16 %v4464
    %v4561 = vunpack.c.l.b16 %v4465
    %v4562 = vunpack.c.l.b16 %v4466
    %v4563 = vunpack.c.l.b16 %v4467
    %v4564 = vunpack.c.l.b16 %v4468
    %v4565 = vunpack.c.l.b16 %v4469
    %v4566 = vunpack.c.l.b16 %v4470
    %v4567 = vunpack.c.l.b16 %v4471
    %v4568 = vunpack.c.l.b16 %v4472
    %v4569 = vunpack.c.l.b16 %v4473
    %v4570 = vunpack.c.l.b16 %v4474
    %v4571 = vunpack.c.l.b16 %v4475
    %v4572 = vunpack.c.l.b16 %v4476
    %v4573 = vunpack.c.l.b16 %v4477
    %v4574 = vunpack.c.l.b16 %v4478
    %v4575 = vunpack.c.l.b16 %v4479
    %v4576 = vunpack.c.l.b16 %v4480
    %v4577 = vunpack.c.l.b16 %v4481
    %v4578 = vunpack.c.l.b16 %v4482
    %v4579 = vunpack.c.l.b16 %v4483
    %v4580 = vunpack.c.l.b16 %v4484
    %v4581 = vunpack.c.l.b16 %v4485
    %v4582 = vunpack.c.l.b16 %v4486
    %vm4583 = vcmask 1041409
    %v4584 = vsel %vm4583, %v4553, %v4551
    %vm4585 = vcmask 1042434
    %v4586 = vsel %vm4585, %v4555, %v4584
    %vm4587 = vcmask 1043459
    %v4588 = vsel %vm4587, %v4557, %v4586
    %vm4589 = vcmask 1044484
    %v4590 = vsel %vm4589, %v4559, %v4588
    %vm4591 = vcmask 1045509
    %v4592 = vsel %vm4591, %v4561, %v4590
    %vm4593 = vcmask 1046534
    %v4594 = vsel %vm4593, %v4563, %v4592
    %vm4595 = vcmask 1047559
    %v4596 = vsel %vm4595, %v4565, %v4594
    %v4597 = vsel %vm4583, %v4554, %v4552
    %v4598 = vsel %vm4585, %v4556, %v4597
    %v4599 = vsel %vm4587, %v4558, %v4598
    %v4600 = vsel %vm4589, %v4560, %v4599
    %v4601 = vsel %vm4591, %v4562, %v4600
    %v4602 = vsel %vm4593, %v4564, %v4601
    %v4603 = vsel %vm4595, %v4566, %v4602
    %v4604 = vsel %vm4583, %v4569, %v4567
    %v4605 = vsel %vm4585, %v4571, %v4604
    %v4606 = vsel %vm4587, %v4573, %v4605
    %v4607 = vsel %vm4589, %v4575, %v4606
    %v4608 = vsel %vm4591, %v4577, %v4607
    %v4609 = vsel %vm4593, %v4579, %v4608
    %v4610 = vsel %vm4595, %v4581, %v4609
    %v4611 = vsel %vm4583, %v4570, %v4568
    %v4612 = vsel %vm4585, %v4572, %v4611
    %v4613 = vsel %vm4587, %v4574, %v4612
    %v4614 = vsel %vm4589, %v4576, %v4613
    %v4615 = vsel %vm4591, %v4578, %v4614
    %v4616 = vsel %vm4593, %v4580, %v4615
    %v4617 = vsel %vm4595, %v4582, %v4616
    %v4618 = vpack.c.b16 %v4610, %v4596
    %v4619 = vpack.c.b16 %v4617, %v4603
    %v4654 = vunpack.c.l.b16 %v4487
    %v4655 = vunpack.c.l.b16 %v4488
    %v4656 = vunpack.c.l.b16 %v4489
    %v4657 = vunpack.c.l.b16 %v4490
    %v4658 = vunpack.c.l.b16 %v4491
    %v4659 = vunpack.c.l.b16 %v4492
    %v4660 = vunpack.c.l.b16 %v4493
    %v4661 = vunpack.c.l.b16 %v4494
    %v4662 = vunpack.c.l.b16 %v4495
    %v4663 = vunpack.c.l.b16 %v4496
    %v4664 = vunpack.c.l.b16 %v4497
    %v4665 = vunpack.c.l.b16 %v4498
    %v4666 = vunpack.c.l.b16 %v4499
    %v4667 = vunpack.c.l.b16 %v4500
    %v4668 = vunpack.c.l.b16 %v4501
    %v4669 = vunpack.c.l.b16 %v4502
    %v4670 = vunpack.c.l.b16 %v4503
    %v4671 = vunpack.c.l.b16 %v4504
    %v4672 = vunpack.c.l.b16 %v4505
    %v4673 = vunpack.c.l.b16 %v4506
    %v4674 = vunpack.c.l.b16 %v4507
    %v4675 = vunpack.c.l.b16 %v4508
    %v4676 = vunpack.c.l.b16 %v4509
    %v4677 = vunpack.c.l.b16 %v4510
    %v4678 = vunpack.c.l.b16 %v4511
    %v4679 = vunpack.c.l.b16 %v4512
    %v4680 = vunpack.c.l.b16 %v4513
    %v4681 = vunpack.c.l.b16 %v4514
    %v4682 = vunpack.c.l.b16 %v4515
    %v4683 = vunpack.c.l.b16 %v4516
    %v4684 = vunpack.c.l.b16 %v4517
    %v4685 = vunpack.c.l.b16 %v4518
    %v4686 = vpack.c.b16 %v4655, %v4654
    %v4687 = vpack.c.b16 %v4657, %v4656
    %v4688 = vpack.c.b16 %v4659, %v4658
    %v4689 = vpack.c.b16 %v4661, %v4660
    %v4690 = vpack.c.b16 %v4663, %v4662
    %v4691 = vpack.c.b16 %v4665, %v4664
    %v4692 = vpack.c.b16 %v4667, %v4666
    %v4693 = vpack.c.b16 %v4669, %v4668
    %v4694 = vpack.c.b16 %v4671, %v4670
    %v4695 = vpack.c.b16 %v4673, %v4672
    %v4696 = vpack.c.b16 %v4675, %v4674
    %v4697 = vpack.c.b16 %v4677, %v4676
    %v4698 = vpack.c.b16 %v4679, %v4678
    %v4699 = vpack.c.b16 %v4681, %v4680
    %v4700 = vpack.c.b16 %v4683, %v4682
    %v4701 = vpack.c.b16 %v4685, %v4684
    %4718 = vmatprep.subr.bf16.mxu0 0
    %4719 = vmatpush1.bf16.msra.mxu0 %v4686
    %4720 = vmatprep.subr.bf16.mxu0 0
    %4721 = vmatpush1.bf16.msra.mxu0 %v4687
    %4722 = vmatprep.subr.bf16.mxu0 0
    %4723 = vmatpush1.bf16.msra.mxu0 %v4688
    %4724 = vmatprep.subr.bf16.mxu0 0
    %4725 = vmatpush1.bf16.msra.mxu0 %v4689
    %4726 = vmatprep.subr.bf16.mxu0 0
    %4727 = vmatpush1.bf16.msra.mxu0 %v4690
    %4728 = vmatprep.subr.bf16.mxu0 0
    %4729 = vmatpush1.bf16.msra.mxu0 %v4691
    %4730 = vmatprep.subr.bf16.mxu0 0
    %4731 = vmatpush1.bf16.msra.mxu0 %v4692
    %4732 = vmatprep.subr.bf16.mxu0 0
    %4733 = vmatpush1.bf16.msra.mxu0 %v4693
    %4734 = vmatprep.subr.bf16.mxu0 0
    %4735 = vmatpush1.bf16.msra.mxu0 %v4694
    %4736 = vmatprep.subr.bf16.mxu0 0
    %4737 = vmatpush1.bf16.msra.mxu0 %v4695
    %4738 = vmatprep.subr.bf16.mxu0 0
    %4739 = vmatpush1.bf16.msra.mxu0 %v4696
    %4740 = vmatprep.subr.bf16.mxu0 0
    %4741 = vmatpush1.bf16.msra.mxu0 %v4697
    %4742 = vmatprep.subr.bf16.mxu0 0
    %4743 = vmatpush1.bf16.msra.mxu0 %v4698
    %4744 = vmatprep.subr.bf16.mxu0 0
    %4745 = vmatpush1.bf16.msra.mxu0 %v4699
    %4746 = vmatprep.subr.bf16.mxu0 0
    %4747 = vmatpush1.bf16.msra.mxu0 %v4700
    %4748 = vmatprep.subr.bf16.mxu0 0
    %4749 = vmatpush1.bf16.msra.mxu0 %v4701
    %4750 = vmatprep.mubr.bf16.mxu0 %v4619
    %4751 = vmatmul.mubr.bf16.gmra.mrb[0].mxu0 %v4618
    %v4752 = vpop.f32.mrb[0].mxu0
    %v4753 = vadd.f32 0.0, %v4752
    %v4754 = vpop.f32.mrb[0].mxu0
    %v4755 = vpop.f32.mrb[0].mxu0
    %v4756 = vadd.f32 0.0, %v4755
    %v4757 = vpop.f32.mrb[0].mxu0
    %4758 = vdwg.mxu0
    %v4759 = vpack.c.bf16 %v4756, %v4753
    %v4760 = vld [vmem:[%s8] sm:$0xf]
    %v4761 = vld [vmem:[%s8 + $0x4] sm:$0xf]
    %v4764 = vunpack.c.l.b16 %v4760
    %v4765 = vunpack.c.l.b16 %v4761
    %v4766 = vpack.c.b16 %v4765, %v4764
    %vm4768 = vcmask 130048
    %v4770 = vsel %vm4768, %v4759, 0
    %4772 = vmatprep.subr.bf16.mxu0 0
    %4773 = vmatpush1.bf16.msra.mxu0 %v4766
    %4774 = vmatprep.subr.bf16.mxu0 0
    %4775 = vmatpush1.bf16.msra.mxu0 0
    %4776 = vmatprep.subr.bf16.mxu0 0
    %4777 = vmatpush1.bf16.msra.mxu0 0
    %4778 = vmatprep.subr.bf16.mxu0 0
    %4779 = vmatpush1.bf16.msra.mxu0 0
    %4780 = vmatprep.subr.bf16.mxu0 0
    %4781 = vmatpush1.bf16.msra.mxu0 0
    %4782 = vmatprep.subr.bf16.mxu0 0
    %4783 = vmatpush1.bf16.msra.mxu0 0
    %4784 = vmatprep.subr.bf16.mxu0 0
    %4785 = vmatpush1.bf16.msra.mxu0 0
    %4786 = vmatprep.subr.bf16.mxu0 0
    %4787 = vmatpush1.bf16.msra.mxu0 0
    %4788 = vmatprep.subr.bf16.mxu0 0
    %4789 = vmatpush1.bf16.msra.mxu0 0
    %4790 = vmatprep.subr.bf16.mxu0 0
    %4791 = vmatpush1.bf16.msra.mxu0 0
    %4792 = vmatprep.subr.bf16.mxu0 0
    %4793 = vmatpush1.bf16.msra.mxu0 0
    %4794 = vmatprep.subr.bf16.mxu0 0
    %4795 = vmatpush1.bf16.msra.mxu0 0
    %4796 = vmatprep.subr.bf16.mxu0 0
    %4797 = vmatpush1.bf16.msra.mxu0 0
    %4798 = vmatprep.subr.bf16.mxu0 0
    %4799 = vmatpush1.bf16.msra.mxu0 0
    %4800 = vmatprep.subr.bf16.mxu0 0
    %4801 = vmatpush1.bf16.msra.mxu0 0
    %4802 = vmatprep.subr.bf16.mxu0 0
    %4803 = vmatpush1.bf16.msra.mxu0 0
    %4804 = vmatprep.mubr.bf16.mxu0 0
    %4805 = vmatmul.mubr.bf16.gmra.mrb[0].mxu0 %v4770
    %v4806 = vpop.f32.mrb[0].mxu0
    %v4807 = vadd.f32 0.0, %v4806
    %v4808 = vpop.f32.mrb[0].mxu0
    %v4809 = vpop.f32.mrb[0].mxu0
    %v4810 = vadd.f32 0.0, %v4809
    %v4811 = vpop.f32.mrb[0].mxu0
    %4812 = vdwg.mxu0
    %v4813 = vmax.f32 %v4807, 0.0
    %v4814 = vmax.f32 %v4810, 0.0
    %v4815 = vpack.c.bf16 %v4814, %v4813
    %v4816 = vld [vmem:[%s9] sm:$0xf]
    %v4819 = vunpack.c.l.s4 1983009808
    %v4820 = vunpack.c.0.s8 %v4819
    %v4821 = vlaneseq
    %v4822 = vshrl.u32 %v4821, 7
    %v4823 = vsub.s32 %v4820, %v4822
    %v4824 = vrot.slane %v4816, %v4823
    %v4825 = vcombine.high %v4824, %v4824
    %vm4826 = vcmask 31744
    %v4828 = vsel %vm4826, %v4815, 0
    %vm4830 = vcmask 1041408
    %v4832 = vsel %vm4830, %v4824, 0
    %v4835 = vsel %vm4830, %v4825, 0
    %4837 = vmatprep.subr.bf16.mxu0 %v4835
    %4838 = vmatpush1.bf16.msra.mxu0 %v4832
    %4839 = vmatprep.subr.bf16.mxu0 0
    %4840 = vmatpush1.bf16.msra.mxu0 0
    %4841 = vmatprep.subr.bf16.mxu0 0
    %4842 = vmatpush1.bf16.msra.mxu0 0
    %4843 = vmatprep.subr.bf16.mxu0 0
    %4844 = vmatpush1.bf16.msra.mxu0 0
    %4845 = vmatprep.subr.bf16.mxu0 0
    %4846 = vmatpush1.bf16.msra.mxu0 0
    %4847 = vmatprep.subr.bf16.mxu0 0
    %4848 = vmatpush1.bf16.msra.mxu0 0
    %4849 = vmatprep.subr.bf16.mxu0 0
    %4850 = vmatpush1.bf16.msra.mxu0 0
    %4851 = vmatprep.subr.bf16.mxu0 0
    %4852 = vmatpush1.bf16.msra.mxu0 0
    %4853 = vmatprep.subr.bf16.mxu0 0
    %4854 = vmatpush1.bf16.msra.mxu0 0
    %4855 = vmatprep.subr.bf16.mxu0 0
    %4856 = vmatpush1.bf16.msra.mxu0 0
    %4857 = vmatprep.subr.bf16.mxu0 0
    %4858 = vmatpush1.bf16.msra.mxu0 0
    %4859 = vmatprep.subr.bf16.mxu0 0
    %4860 = vmatpush1.bf16.msra.mxu0 0
    %4861 = vmatprep.subr.bf16.mxu0 0
    %4862 = vmatpush1.bf16.msra.mxu0 0
    %4863 = vmatprep.subr.bf16.mxu0 0
    %4864 = vmatpush1.bf16.msra.mxu0 0
    %4865 = vmatprep.subr.bf16.mxu0 0
    %4866 = vmatpush1.bf16.msra.mxu0 0
    %4867 = vmatprep.subr.bf16.mxu0 0
    %4868 = vmatpush1.bf16.msra.mxu0 0
    %4869 = vmatprep.mubr.bf16.mxu0 0
    %4870 = vmatmul.mubr.bf16.gmra.mrb[0].mxu0 %v4828
    %v4871 = vpop.f32.mrb[0].mxu0
    %v4872 = vadd.f32 0.0, %v4871
    %v4873 = vpop.f32.mrb[0].mxu0
    %v4874 = vadd.f32 0.0, %v4873
    %v4875 = vpop.f32.mrb[0].mxu0
    %v4876 = vadd.f32 0.0, %v4875
    %v4877 = vpop.f32.mrb[0].mxu0
    %v4878 = vadd.f32 0.0, %v4877
    %4879 = vdwg.mxu0
    %v4880 = vxor.u32 %v4872, 2147483648
    %v4881 = vxor.u32 %v4874, 2147483648
    %v4882 = vxor.u32 %v4876, 2147483648
    %v4883 = vxor.u32 %v4878, 2147483648
    %v4884 = vmul.f32 %v4880, 1.442695
    %v4885 = vpow.pop %v4884
    %v4886 = vmul.f32 %v4881, 1.442695
    %v4887 = vpow.pop %v4886
    %v4888 = vmul.f32 %v4882, 1.442695
    %v4889 = vpow.pop %v4888
    %v4890 = vmul.f32 %v4883, 1.442695
    %v4891 = vpow.pop %v4890
    %v4892 = vadd.f32 %v4885, 1.0
    %v4893 = vadd.f32 %v4887, 1.0
    %v4894 = vadd.f32 %v4889, 1.0
    %v4895 = vadd.f32 %v4891, 1.0
    %v4896 = vrcp.pop %v4892
    %v4897 = vmul.f32 1.0, %v4896
    %v4898 = vrcp.pop %v4893
    %v4899 = vmul.f32 1.0, %v4898
    %v4900 = vrcp.pop %v4894
    %v4901 = vmul.f32 1.0, %v4900
    %v4902 = vrcp.pop %v4895
    %v4903 = vmul.f32 1.0, %v4902
    %v4908 = vcombine.low %v4897, %v4899
    %v4909 = vcombine.high %v4897, %v4899
    %v4911 = vunpack.c.l.s4 1966171168
    %v4912 = vunpack.c.0.s8 %v4911
    %v4913 = vlaneseq
    %v4914 = vshrl.u32 %v4913, 7
    %v4915 = vsub.s32 %v4912, %v4914
    %v4916 = vrot.slane %v4908, %v4915
    %v4918 = vunpack.c.l.s4 1966171168
    %v4919 = vunpack.c.0.s8 %v4918
    %v4920 = vlaneseq
    %v4921 = vshrl.u32 %v4920, 7
    %v4922 = vsub.s32 %v4919, %v4921
    %v4923 = vrot.slane %v4909, %v4922
    %v4924 = vcombine.high %v4916, %v4916
    %v4925 = vcombine.high %v4923, %v4923
    %v4927 = vunpack.c.l.s4 1966171168
    %v4928 = vunpack.c.0.s8 %v4927
    %v4929 = vlaneseq
    %v4930 = vshrl.u32 %v4929, 7
    %v4931 = vsub.s32 %v4928, %v4930
    %v4932 = vrot.slane %v4916, %v4931
    %v4934 = vunpack.c.l.s4 1966171168
    %v4935 = vunpack.c.0.s8 %v4934
    %v4936 = vlaneseq
    %v4937 = vshrl.u32 %v4936, 7
    %v4938 = vsub.s32 %v4935, %v4937
    %v4939 = vrot.slane %v4923, %v4938
    %v4941 = vunpack.c.l.s4 1966171168
    %v4942 = vunpack.c.0.s8 %v4941
    %v4943 = vlaneseq
    %v4944 = vshrl.u32 %v4943, 7
    %v4945 = vsub.s32 %v4942, %v4944
    %v4946 = vrot.slane %v4924, %v4945
    %v4948 = vunpack.c.l.s4 1966171168
    %v4949 = vunpack.c.0.s8 %v4948
    %v4950 = vlaneseq
    %v4951 = vshrl.u32 %v4950, 7
    %v4952 = vsub.s32 %v4949, %v4951
    %v4953 = vrot.slane %v4925, %v4952
    %v4954 = vcombine.high %v4932, %v4932
    %v4955 = vcombine.high %v4939, %v4939
    %v4956 = vcombine.high %v4946, %v4946
    %v4957 = vcombine.high %v4953, %v4953
    %v4958 = vcombine.low %v4901, %v4903
    %v4959 = vcombine.high %v4901, %v4903
    %v4961 = vunpack.c.l.s4 1966171168
    %v4962 = vunpack.c.0.s8 %v4961
    %v4963 = vlaneseq
    %v4964 = vshrl.u32 %v4963, 7
    %v4965 = vsub.s32 %v4962, %v4964
    %v4966 = vrot.slane %v4958, %v4965
    %v4968 = vunpack.c.l.s4 1966171168
    %v4969 = vunpack.c.0.s8 %v4968
    %v4970 = vlaneseq
    %v4971 = vshrl.u32 %v4970, 7
    %v4972 = vsub.s32 %v4969, %v4971
    %v4973 = vrot.slane %v4959, %v4972
    %v4974 = vcombine.high %v4966, %v4966
    %v4975 = vcombine.high %v4973, %v4973
    %v4977 = vunpack.c.l.s4 1966171168
    %v4978 = vunpack.c.0.s8 %v4977
    %v4979 = vlaneseq
    %v4980 = vshrl.u32 %v4979, 7
    %v4981 = vsub.s32 %v4978, %v4980
    %v4982 = vrot.slane %v4966, %v4981
    %v4984 = vunpack.c.l.s4 1966171168
    %v4985 = vunpack.c.0.s8 %v4984
    %v4986 = vlaneseq
    %v4987 = vshrl.u32 %v4986, 7
    %v4988 = vsub.s32 %v4985, %v4987
    %v4989 = vrot.slane %v4973, %v4988
    %v4991 = vunpack.c.l.s4 1966171168
    %v4992 = vunpack.c.0.s8 %v4991
    %v4993 = vlaneseq
    %v4994 = vshrl.u32 %v4993, 7
    %v4995 = vsub.s32 %v4992, %v4994
    %v4996 = vrot.slane %v4974, %v4995
    %v4998 = vunpack.c.l.s4 1966171168
    %v4999 = vunpack.c.0.s8 %v4998
    %v5000 = vlaneseq
    %v5001 = vshrl.u32 %v5000, 7
    %v5002 = vsub.s32 %v4999, %v5001
    %v5003 = vrot.slane %v4975, %v5002
    %v5004 = vcombine.high %v4982, %v4982
    %v5005 = vcombine.high %v4989, %v4989
    %v5006 = vcombine.high %v4996, %v4996
    %v5007 = vcombine.high %v5003, %v5003
    %v5008 = vlaneseq
    %v5009 = vshrl.u32 %v5008, 7
    %v5010 = vsub.s32 0, %v5009
    %v5011 = vrot.slane %v4932, %v5010
    %v5012 = vlaneseq
    %v5013 = vshrl.u32 %v5012, 7
    %v5014 = vsub.s32 1, %v5013
    %v5015 = vrot.slane %v4932, %v5014
    %v5016 = vlaneseq
    %v5017 = vshrl.u32 %v5016, 7
    %v5018 = vsub.s32 0, %v5017
    %v5019 = vrot.slane %v4946, %v5018
    %v5020 = vlaneseq
    %v5021 = vshrl.u32 %v5020, 7
    %v5022 = vsub.s32 1, %v5021
    %v5023 = vrot.slane %v4946, %v5022
    %v5024 = vlaneseq
    %v5025 = vshrl.u32 %v5024, 7
    %v5026 = vsub.s32 0, %v5025
    %v5027 = vrot.slane %v4954, %v5026
    %v5028 = vlaneseq
    %v5029 = vshrl.u32 %v5028, 7
    %v5030 = vsub.s32 1, %v5029
    %v5031 = vrot.slane %v4954, %v5030
    %v5032 = vlaneseq
    %v5033 = vshrl.u32 %v5032, 7
    %v5034 = vsub.s32 0, %v5033
    %v5035 = vrot.slane %v4956, %v5034
    %v5036 = vlaneseq
    %v5037 = vshrl.u32 %v5036, 7
    %v5038 = vsub.s32 1, %v5037
    %v5039 = vrot.slane %v4956, %v5038
    %v5040 = vlaneseq
    %v5041 = vshrl.u32 %v5040, 7
    %v5042 = vsub.s32 0, %v5041
    %v5043 = vrot.slane %v4939, %v5042
    %v5044 = vlaneseq
    %v5045 = vshrl.u32 %v5044, 7
    %v5046 = vsub.s32 1, %v5045
    %v5047 = vrot.slane %v4939, %v5046
    %v5048 = vlaneseq
    %v5049 = vshrl.u32 %v5048, 7
    %v5050 = vsub.s32 0, %v5049
    %v5051 = vrot.slane %v4953, %v5050
    %v5052 = vlaneseq
    %v5053 = vshrl.u32 %v5052, 7
    %v5054 = vsub.s32 1, %v5053
    %v5055 = vrot.slane %v4953, %v5054
    %v5056 = vlaneseq
    %v5057 = vshrl.u32 %v5056, 7
    %v5058 = vsub.s32 0, %v5057
    %v5059 = vrot.slane %v4955, %v5058
    %v5060 = vlaneseq
    %v5061 = vshrl.u32 %v5060, 7
    %v5062 = vsub.s32 1, %v5061
    %v5063 = vrot.slane %v4955, %v5062
    %v5064 = vlaneseq
    %v5065 = vshrl.u32 %v5064, 7
    %v5066 = vsub.s32 0, %v5065
    %v5067 = vrot.slane %v4957, %v5066
    %v5068 = vlaneseq
    %v5069 = vshrl.u32 %v5068, 7
    %v5070 = vsub.s32 1, %v5069
    %v5071 = vrot.slane %v4957, %v5070
    %v5072 = vlaneseq
    %v5073 = vshrl.u32 %v5072, 7
    %v5074 = vsub.s32 0, %v5073
    %v5075 = vrot.slane %v4982, %v5074
    %v5076 = vlaneseq
    %v5077 = vshrl.u32 %v5076, 7
    %v5078 = vsub.s32 1, %v5077
    %v5079 = vrot.slane %v4982, %v5078
    %v5080 = vlaneseq
    %v5081 = vshrl.u32 %v5080, 7
    %v5082 = vsub.s32 0, %v5081
    %v5083 = vrot.slane %v4996, %v5082
    %v5084 = vlaneseq
    %v5085 = vshrl.u32 %v5084, 7
    %v5086 = vsub.s32 1, %v5085
    %v5087 = vrot.slane %v4996, %v5086
    %v5088 = vlaneseq
    %v5089 = vshrl.u32 %v5088, 7
    %v5090 = vsub.s32 0, %v5089
    %v5091 = vrot.slane %v5004, %v5090
    %v5092 = vlaneseq
    %v5093 = vshrl.u32 %v5092, 7
    %v5094 = vsub.s32 1, %v5093
    %v5095 = vrot.slane %v5004, %v5094
    %v5096 = vlaneseq
    %v5097 = vshrl.u32 %v5096, 7
    %v5098 = vsub.s32 0, %v5097
    %v5099 = vrot.slane %v5006, %v5098
    %v5100 = vlaneseq
    %v5101 = vshrl.u32 %v5100, 7
    %v5102 = vsub.s32 1, %v5101
    %v5103 = vrot.slane %v5006, %v5102
    %v5104 = vlaneseq
    %v5105 = vshrl.u32 %v5104, 7
    %v5106 = vsub.s32 0, %v5105
    %v5107 = vrot.slane %v4989, %v5106
    %v5108 = vlaneseq
    %v5109 = vshrl.u32 %v5108, 7
    %v5110 = vsub.s32 1, %v5109
    %v5111 = vrot.slane %v4989, %v5110
    %v5112 = vlaneseq
    %v5113 = vshrl.u32 %v5112, 7
    %v5114 = vsub.s32 0, %v5113
    %v5115 = vrot.slane %v5003, %v5114
    %v5116 = vlaneseq
    %v5117 = vshrl.u32 %v5116, 7
    %v5118 = vsub.s32 1, %v5117
    %v5119 = vrot.slane %v5003, %v5118
    %v5120 = vlaneseq
    %v5121 = vshrl.u32 %v5120, 7
    %v5122 = vsub.s32 0, %v5121
    %v5123 = vrot.slane %v5005, %v5122
    %v5124 = vlaneseq
    %v5125 = vshrl.u32 %v5124, 7
    %v5126 = vsub.s32 1, %v5125
    %v5127 = vrot.slane %v5005, %v5126
    %v5128 = vlaneseq
    %v5129 = vshrl.u32 %v5128, 7
    %v5130 = vsub.s32 0, %v5129
    %v5131 = vrot.slane %v5007, %v5130
    %v5132 = vlaneseq
    %v5133 = vshrl.u32 %v5132, 7
    %v5134 = vsub.s32 1, %v5133
    %v5135 = vrot.slane %v5007, %v5134
    %v5168 = vmul.f32 %v4167, %v5011
    %v5169 = vmul.f32 %v4168, %v5015
    %v5170 = vmul.f32 %v4169, %v5011
    %v5171 = vmul.f32 %v4170, %v5015
    %v5172 = vmul.f32 %v4171, %v5019
    %v5173 = vmul.f32 %v4172, %v5023
    %v5174 = vmul.f32 %v4173, %v5019
    %v5175 = vmul.f32 %v4174, %v5023
    %v5176 = vmul.f32 %v4175, %v5027
    %v5177 = vmul.f32 %v4176, %v5031
    %v5178 = vmul.f32 %v4177, %v5027
    %v5179 = vmul.f32 %v4178, %v5031
    %v5180 = vmul.f32 %v4179, %v5035
    %v5181 = vmul.f32 %v4180, %v5039
    %v5182 = vmul.f32 %v4181, %v5035
    %v5183 = vmul.f32 %v4182, %v5039
    %v5184 = vmul.f32 %v4183, %v5043
    %v5185 = vmul.f32 %v4184, %v5047
    %v5186 = vmul.f32 %v4185, %v5043
    %v5187 = vmul.f32 %v4186, %v5047
    %v5188 = vmul.f32 %v4187, %v5051
    %v5189 = vmul.f32 %v4188, %v5055
    %v5190 = vmul.f32 %v4189, %v5051
    %v5191 = vmul.f32 %v4190, %v5055
    %v5192 = vmul.f32 %v4191, %v5059
    %v5193 = vmul.f32 %v4192, %v5063
    %v5194 = vmul.f32 %v4193, %v5059
    %v5195 = vmul.f32 %v4194, %v5063
    %v5196 = vmul.f32 %v4195, %v5067
    %v5197 = vmul.f32 %v4196, %v5071
    %v5198 = vmul.f32 %v4197, %v5067
    %v5199 = vmul.f32 %v4198, %v5071
    %v5200 = vmul.f32 %v4199, %v5075
    %v5201 = vmul.f32 %v4200, %v5079
    %v5202 = vmul.f32 %v4201, %v5075
    %v5203 = vmul.f32 %v4202, %v5079
    %v5204 = vmul.f32 %v4203, %v5083
    %v5205 = vmul.f32 %v4204, %v5087
    %v5206 = vmul.f32 %v4205, %v5083
    %v5207 = vmul.f32 %v4206, %v5087
    %v5208 = vmul.f32 %v4207, %v5091
    %v5209 = vmul.f32 %v4208, %v5095
    %v5210 = vmul.f32 %v4209, %v5091
    %v5211 = vmul.f32 %v4210, %v5095
    %v5212 = vmul.f32 %v4211, %v5099
    %v5213 = vmul.f32 %v4212, %v5103
    %v5214 = vmul.f32 %v4213, %v5099
    %v5215 = vmul.f32 %v4214, %v5103
    %v5216 = vmul.f32 %v4215, %v5107
    %v5217 = vmul.f32 %v4216, %v5111
    %v5218 = vmul.f32 %v4217, %v5107
    %v5219 = vmul.f32 %v4218, %v5111
    %v5220 = vmul.f32 %v4219, %v5115
    %v5221 = vmul.f32 %v4220, %v5119
    %v5222 = vmul.f32 %v4221, %v5115
    %v5223 = vmul.f32 %v4222, %v5119
    %v5224 = vmul.f32 %v4223, %v5123
    %v5225 = vmul.f32 %v4224, %v5127
    %v5226 = vmul.f32 %v4225, %v5123
    %v5227 = vmul.f32 %v4226, %v5127
    %v5228 = vmul.f32 %v4227, %v5131
    %v5229 = vmul.f32 %v4228, %v5135
    %v5230 = vmul.f32 %v4229, %v5131
    %v5231 = vmul.f32 %v4230, %v5135
    %v5232 = vld [vmem:[#allocation9] sm:$0xff]
    %v5233 = vld [vmem:[#allocation9 + $0x8] sm:$0xff]
    %v5234 = vld [vmem:[#allocation9 + $0x10] sm:$0xff]
    %v5235 = vld [vmem:[#allocation9 + $0x18] sm:$0xff]
    %v5236 = vld [vmem:[#allocation9 + $0x20] sm:$0xff]
    %v5237 = vld [vmem:[#allocation9 + $0x28] sm:$0xff]
    %v5238 = vld [vmem:[#allocation9 + $0x30] sm:$0xff]
    %v5239 = vld [vmem:[#allocation9 + $0x38] sm:$0xff]
    %v5240 = vld [vmem:[#allocation9 + $0x40] sm:$0xff]
    %v5241 = vld [vmem:[#allocation9 + $0x48] sm:$0xff]
    %v5242 = vld [vmem:[#allocation9 + $0x50] sm:$0xff]
    %v5243 = vld [vmem:[#allocation9 + $0x58] sm:$0xff]
    %v5244 = vld [vmem:[#allocation9 + $0x60] sm:$0xff]
    %v5245 = vld [vmem:[#allocation9 + $0x68] sm:$0xff]
    %v5246 = vld [vmem:[#allocation9 + $0x70] sm:$0xff]
    %v5247 = vld [vmem:[#allocation9 + $0x78] sm:$0xff]
    %v5280 = vunpack.c.l.b16 %v218
    %v5281 = vunpack.c.l.b16 %v219
    %v5282 = vunpack.c.l.b16 %v220
    %v5283 = vunpack.c.l.b16 %v221
    %v5284 = vunpack.c.l.b16 %v222
    %v5285 = vunpack.c.l.b16 %v223
    %v5286 = vunpack.c.l.b16 %v224
    %v5287 = vunpack.c.l.b16 %v225
    %v5288 = vunpack.c.l.b16 %v226
    %v5289 = vunpack.c.l.b16 %v227
    %v5290 = vunpack.c.l.b16 %v228
    %v5291 = vunpack.c.l.b16 %v229
    %v5292 = vunpack.c.l.b16 %v230
    %v5293 = vunpack.c.l.b16 %v231
    %v5294 = vunpack.c.l.b16 %v232
    %v5295 = vunpack.c.l.b16 %v233
    %v5296 = vunpack.c.l.b16 %v234
    %v5297 = vunpack.c.l.b16 %v235
    %v5298 = vunpack.c.l.b16 %v236
    %v5299 = vunpack.c.l.b16 %v237
    %v5300 = vunpack.c.l.b16 %v238
    %v5301 = vunpack.c.l.b16 %v239
    %v5302 = vunpack.c.l.b16 %v240
    %v5303 = vunpack.c.l.b16 %v241
    %v5304 = vunpack.c.l.b16 %v242
    %v5305 = vunpack.c.l.b16 %v243
    %v5306 = vunpack.c.l.b16 %v244
    %v5307 = vunpack.c.l.b16 %v245
    %v5308 = vunpack.c.l.b16 %v246
    %v5309 = vunpack.c.l.b16 %v247
    %v5310 = vunpack.c.l.b16 %v248
    %v5311 = vunpack.c.l.b16 %v249
    %v5312 = vpack.c.b16 %v5281, %v5280
    %v5313 = vpack.c.b16 %v5283, %v5282
    %v5314 = vpack.c.b16 %v5285, %v5284
    %v5315 = vpack.c.b16 %v5287, %v5286
    %v5316 = vpack.c.b16 %v5289, %v5288
    %v5317 = vpack.c.b16 %v5291, %v5290
    %v5318 = vpack.c.b16 %v5293, %v5292
    %v5319 = vpack.c.b16 %v5295, %v5294
    %v5320 = vpack.c.b16 %v5297, %v5296
    %v5321 = vpack.c.b16 %v5299, %v5298
    %v5322 = vpack.c.b16 %v5301, %v5300
    %v5323 = vpack.c.b16 %v5303, %v5302
    %v5324 = vpack.c.b16 %v5305, %v5304
    %v5325 = vpack.c.b16 %v5307, %v5306
    %v5326 = vpack.c.b16 %v5309, %v5308
    %v5327 = vpack.c.b16 %v5311, %v5310
    %v5360 = vunpack.c.l.b16 %v5232
    %v5361 = vunpack.c.h.b16 %v5232
    %v5362 = vunpack.c.l.b16 %v5233
    %v5363 = vunpack.c.h.b16 %v5233
    %v5364 = vunpack.c.l.b16 %v5234
    %v5365 = vunpack.c.h.b16 %v5234
    %v5366 = vunpack.c.l.b16 %v5235
    %v5367 = vunpack.c.h.b16 %v5235
    %v5368 = vunpack.c.l.b16 %v5236
    %v5369 = vunpack.c.h.b16 %v5236
    %v5370 = vunpack.c.l.b16 %v5237
    %v5371 = vunpack.c.h.b16 %v5237
    %v5372 = vunpack.c.l.b16 %v5238
    %v5373 = vunpack.c.h.b16 %v5238
    %v5374 = vunpack.c.l.b16 %v5239
    %v5375 = vunpack.c.h.b16 %v5239
    %v5376 = vunpack.c.l.b16 %v5240
    %v5377 = vunpack.c.h.b16 %v5240
    %v5378 = vunpack.c.l.b16 %v5241
    %v5379 = vunpack.c.h.b16 %v5241
    %v5380 = vunpack.c.l.b16 %v5242
    %v5381 = vunpack.c.h.b16 %v5242
    %v5382 = vunpack.c.l.b16 %v5243
    %v5383 = vunpack.c.h.b16 %v5243
    %v5384 = vunpack.c.l.b16 %v5244
    %v5385 = vunpack.c.h.b16 %v5244
    %v5386 = vunpack.c.l.b16 %v5245
    %v5387 = vunpack.c.h.b16 %v5245
    %v5388 = vunpack.c.l.b16 %v5246
    %v5389 = vunpack.c.h.b16 %v5246
    %v5390 = vunpack.c.l.b16 %v5247
    %v5391 = vunpack.c.h.b16 %v5247
    %v5392 = vpack.c.b16 %v5362, %v5360
    %v5393 = vpack.c.b16 %v5363, %v5361
    %v5394 = vpack.c.b16 %v5366, %v5364
    %v5395 = vpack.c.b16 %v5367, %v5365
    %v5396 = vpack.c.b16 %v5370, %v5368
    %v5397 = vpack.c.b16 %v5371, %v5369
    %v5398 = vpack.c.b16 %v5374, %v5372
    %v5399 = vpack.c.b16 %v5375, %v5373
    %v5400 = vpack.c.b16 %v5378, %v5376
    %v5401 = vpack.c.b16 %v5379, %v5377
    %v5402 = vpack.c.b16 %v5382, %v5380
    %v5403 = vpack.c.b16 %v5383, %v5381
    %v5404 = vpack.c.b16 %v5386, %v5384
    %v5405 = vpack.c.b16 %v5387, %v5385
    %v5406 = vpack.c.b16 %v5390, %v5388
    %v5407 = vpack.c.b16 %v5391, %v5389
    %5424 = vmatprep.subr.bf16.mxu0 %v5393
    %5425 = vmatpush1.bf16.msra.mxu0 %v5392
    %5426 = vmatprep.subr.bf16.mxu0 %v5395
    %5427 = vmatpush1.bf16.msra.mxu0 %v5394
    %5428 = vmatprep.subr.bf16.mxu0 %v5397
    %5429 = vmatpush1.bf16.msra.mxu0 %v5396
    %5430 = vmatprep.subr.bf16.mxu0 %v5399
    %5431 = vmatpush1.bf16.msra.mxu0 %v5398
    %5432 = vmatprep.subr.bf16.mxu0 %v5401
    %5433 = vmatpush1.bf16.msra.mxu0 %v5400
    %5434 = vmatprep.subr.bf16.mxu0 %v5403
    %5435 = vmatpush1.bf16.msra.mxu0 %v5402
    %5436 = vmatprep.subr.bf16.mxu0 %v5405
    %5437 = vmatpush1.bf16.msra.mxu0 %v5404
    %5438 = vmatprep.subr.bf16.mxu0 %v5407
    %5439 = vmatpush1.bf16.msra.mxu0 %v5406
    %5440 = vmatprep.subr.bf16.mxu0 0
    %5441 = vmatpush1.bf16.msra.mxu0 0
    %5442 = vmatprep.subr.bf16.mxu0 0
    %5443 = vmatpush1.bf16.msra.mxu0 0
    %5444 = vmatprep.subr.bf16.mxu0 0
    %5445 = vmatpush1.bf16.msra.mxu0 0
    %5446 = vmatprep.subr.bf16.mxu0 0
    %5447 = vmatpush1.bf16.msra.mxu0 0
    %5448 = vmatprep.subr.bf16.mxu0 0
    %5449 = vmatpush1.bf16.msra.mxu0 0
    %5450 = vmatprep.subr.bf16.mxu0 0
    %5451 = vmatpush1.bf16.msra.mxu0 0
    %5452 = vmatprep.subr.bf16.mxu0 0
    %5453 = vmatpush1.bf16.msra.mxu0 0
    %5454 = vmatprep.subr.bf16.mxu0 0
    %5455 = vmatpush1.bf16.msra.mxu0 0
    %5456 = vmatprep.mubr.bf16.mxu0 0
    %5457 = vmatmul.mubr.bf16.gmra.mrb[0].mxu0 %v5312
    %v5458 = vpop.f32.mrb[0].mxu0
    %v5459 = vadd.f32 0.0, %v5458
    %v5460 = vpop.f32.mrb[0].mxu0
    %v5461 = vadd.f32 0.0, %v5460
    %v5462 = vpop.f32.mrb[0].mxu0
    %v5463 = vadd.f32 0.0, %v5462
    %v5464 = vpop.f32.mrb[0].mxu0
    %v5465 = vadd.f32 0.0, %v5464
    %5466 = vmatprep.mubr.bf16.mxu0 0
    %5467 = vmatmul.mubr.bf16.gmra.mrb[0].mxu0 %v5313
    %v5468 = vpop.f32.mrb[0].mxu0
    %v5469 = vadd.f32 0.0, %v5468
    %v5470 = vpop.f32.mrb[0].mxu0
    %v5471 = vadd.f32 0.0, %v5470
    %v5472 = vpop.f32.mrb[0].mxu0
    %v5473 = vadd.f32 0.0, %v5472
    %v5474 = vpop.f32.mrb[0].mxu0
    %v5475 = vadd.f32 0.0, %v5474
    %5476 = vmatprep.mubr.bf16.mxu0 0
    %5477 = vmatmul.mubr.bf16.gmra.mrb[0].mxu0 %v5314
    %v5478 = vpop.f32.mrb[0].mxu0
    %v5479 = vadd.f32 0.0, %v5478
    %v5480 = vpop.f32.mrb[0].mxu0
    %v5481 = vadd.f32 0.0, %v5480
    %v5482 = vpop.f32.mrb[0].mxu0
    %v5483 = vadd.f32 0.0, %v5482
    %v5484 = vpop.f32.mrb[0].mxu0
    %v5485 = vadd.f32 0.0, %v5484
    %5486 = vmatprep.mubr.bf16.mxu0 0
    %5487 = vmatmul.mubr.bf16.gmra.mrb[0].mxu0 %v5315
    %v5488 = vpop.f32.mrb[0].mxu0
    %v5489 = vadd.f32 0.0, %v5488
    %v5490 = vpop.f32.mrb[0].mxu0
    %v5491 = vadd.f32 0.0, %v5490
    %v5492 = vpop.f32.mrb[0].mxu0
    %v5493 = vadd.f32 0.0, %v5492
    %v5494 = vpop.f32.mrb[0].mxu0
    %v5495 = vadd.f32 0.0, %v5494
    %5496 = vmatprep.mubr.bf16.mxu0 0
    %5497 = vmatmul.mubr.bf16.gmra.mrb[0].mxu0 %v5316
    %v5498 = vpop.f32.mrb[0].mxu0
    %v5499 = vadd.f32 0.0, %v5498
    %v5500 = vpop.f32.mrb[0].mxu0
    %v5501 = vadd.f32 0.0, %v5500
    %v5502 = vpop.f32.mrb[0].mxu0
    %v5503 = vadd.f32 0.0, %v5502
    %v5504 = vpop.f32.mrb[0].mxu0
    %v5505 = vadd.f32 0.0, %v5504
    %5506 = vmatprep.mubr.bf16.mxu0 0
    %5507 = vmatmul.mubr.bf16.gmra.mrb[0].mxu0 %v5317
    %v5508 = vpop.f32.mrb[0].mxu0
    %v5509 = vadd.f32 0.0, %v5508
    %v5510 = vpop.f32.mrb[0].mxu0
    %v5511 = vadd.f32 0.0, %v5510
    %v5512 = vpop.f32.mrb[0].mxu0
    %v5513 = vadd.f32 0.0, %v5512
    %v5514 = vpop.f32.mrb[0].mxu0
    %v5515 = vadd.f32 0.0, %v5514
    %5516 = vmatprep.mubr.bf16.mxu0 0
    %5517 = vmatmul.mubr.bf16.gmra.mrb[0].mxu0 %v5318
    %v5518 = vpop.f32.mrb[0].mxu0
    %v5519 = vadd.f32 0.0, %v5518
    %v5520 = vpop.f32.mrb[0].mxu0
    %v5521 = vadd.f32 0.0, %v5520
    %v5522 = vpop.f32.mrb[0].mxu0
    %v5523 = vadd.f32 0.0, %v5522
    %v5524 = vpop.f32.mrb[0].mxu0
    %v5525 = vadd.f32 0.0, %v5524
    %5526 = vmatprep.mubr.bf16.mxu0 0
    %5527 = vmatmul.mubr.bf16.gmra.mrb[0].mxu0 %v5319
    %v5528 = vpop.f32.mrb[0].mxu0
    %v5529 = vadd.f32 0.0, %v5528
    %v5530 = vpop.f32.mrb[0].mxu0
    %v5531 = vadd.f32 0.0, %v5530
    %v5532 = vpop.f32.mrb[0].mxu0
    %v5533 = vadd.f32 0.0, %v5532
    %v5534 = vpop.f32.mrb[0].mxu0
    %v5535 = vadd.f32 0.0, %v5534
    %5536 = vmatprep.mubr.bf16.mxu0 0
    %5537 = vmatmul.mubr.bf16.gmra.mrb[0].mxu0 %v5320
    %v5538 = vpop.f32.mrb[0].mxu0
    %v5539 = vadd.f32 0.0, %v5538
    %v5540 = vpop.f32.mrb[0].mxu0
    %v5541 = vadd.f32 0.0, %v5540
    %v5542 = vpop.f32.mrb[0].mxu0
    %v5543 = vadd.f32 0.0, %v5542
    %v5544 = vpop.f32.mrb[0].mxu0
    %v5545 = vadd.f32 0.0, %v5544
    %5546 = vmatprep.mubr.bf16.mxu0 0
    %5547 = vmatmul.mubr.bf16.gmra.mrb[0].mxu0 %v5321
    %v5548 = vpop.f32.mrb[0].mxu0
    %v5549 = vadd.f32 0.0, %v5548
    %v5550 = vpop.f32.mrb[0].mxu0
    %v5551 = vadd.f32 0.0, %v5550
    %v5552 = vpop.f32.mrb[0].mxu0
    %v5553 = vadd.f32 0.0, %v5552
    %v5554 = vpop.f32.mrb[0].mxu0
    %v5555 = vadd.f32 0.0, %v5554
    %5556 = vmatprep.mubr.bf16.mxu0 0
    %5557 = vmatmul.mubr.bf16.gmra.mrb[0].mxu0 %v5322
    %v5558 = vpop.f32.mrb[0].mxu0
    %v5559 = vadd.f32 0.0, %v5558
    %v5560 = vpop.f32.mrb[0].mxu0
    %v5561 = vadd.f32 0.0, %v5560
    %v5562 = vpop.f32.mrb[0].mxu0
    %v5563 = vadd.f32 0.0, %v5562
    %v5564 = vpop.f32.mrb[0].mxu0
    %v5565 = vadd.f32 0.0, %v5564
    %5566 = vmatprep.mubr.bf16.mxu0 0
    %5567 = vmatmul.mubr.bf16.gmra.mrb[0].mxu0 %v5323
    %v5568 = vpop.f32.mrb[0].mxu0
    %v5569 = vadd.f32 0.0, %v5568
    %v5570 = vpop.f32.mrb[0].mxu0
    %v5571 = vadd.f32 0.0, %v5570
    %v5572 = vpop.f32.mrb[0].mxu0
    %v5573 = vadd.f32 0.0, %v5572
    %v5574 = vpop.f32.mrb[0].mxu0
    %v5575 = vadd.f32 0.0, %v5574
    %5576 = vmatprep.mubr.bf16.mxu0 0
    %5577 = vmatmul.mubr.bf16.gmra.mrb[0].mxu0 %v5324
    %v5578 = vpop.f32.mrb[0].mxu0
    %v5579 = vadd.f32 0.0, %v5578
    %v5580 = vpop.f32.mrb[0].mxu0
    %v5581 = vadd.f32 0.0, %v5580
    %v5582 = vpop.f32.mrb[0].mxu0
    %v5583 = vadd.f32 0.0, %v5582
    %v5584 = vpop.f32.mrb[0].mxu0
    %v5585 = vadd.f32 0.0, %v5584
    %5586 = vmatprep.mubr.bf16.mxu0 0
    %5587 = vmatmul.mubr.bf16.gmra.mrb[0].mxu0 %v5325
    %v5588 = vpop.f32.mrb[0].mxu0
    %v5589 = vadd.f32 0.0, %v5588
    %v5590 = vpop.f32.mrb[0].mxu0
    %v5591 = vadd.f32 0.0, %v5590
    %v5592 = vpop.f32.mrb[0].mxu0
    %v5593 = vadd.f32 0.0, %v5592
    %v5594 = vpop.f32.mrb[0].mxu0
    %v5595 = vadd.f32 0.0, %v5594
    %5596 = vmatprep.mubr.bf16.mxu0 0
    %5597 = vmatmul.mubr.bf16.gmra.mrb[0].mxu0 %v5326
    %v5598 = vpop.f32.mrb[0].mxu0
    %v5599 = vadd.f32 0.0, %v5598
    %v5600 = vpop.f32.mrb[0].mxu0
    %v5601 = vadd.f32 0.0, %v5600
    %v5602 = vpop.f32.mrb[0].mxu0
    %v5603 = vadd.f32 0.0, %v5602
    %v5604 = vpop.f32.mrb[0].mxu0
    %v5605 = vadd.f32 0.0, %v5604
    %5606 = vmatprep.mubr.bf16.mxu0 0
    %5607 = vmatmul.mubr.bf16.gmra.mrb[0].mxu0 %v5327
    %v5608 = vpop.f32.mrb[0].mxu0
    %v5609 = vadd.f32 0.0, %v5608
    %v5610 = vpop.f32.mrb[0].mxu0
    %v5611 = vadd.f32 0.0, %v5610
    %v5612 = vpop.f32.mrb[0].mxu0
    %v5613 = vadd.f32 0.0, %v5612
    %v5614 = vpop.f32.mrb[0].mxu0
    %v5615 = vadd.f32 0.0, %v5614
    %5616 = vdwg.mxu0
    %v5617 = vld [vmem:[%s11] sm:$0x3]
    %v5619 = vlaneseq
    %v5620 = vshrl.u32 %v5619, 7
    %v5621 = vsub.s32 0, %v5620
    %v5622 = vrot.slane %v5617, %v5621
    %v5623 = vlaneseq
    %v5624 = vshrl.u32 %v5623, 7
    %v5625 = vsub.s32 1, %v5624
    %v5626 = vrot.slane %v5617, %v5625
    %v5629 = vmul.f32 %v5459, %v5622
    %v5630 = vmul.f32 %v5461, %v5626
    %v5631 = vmul.f32 %v5463, %v5622
    %v5632 = vmul.f32 %v5465, %v5626
    %v5633 = vmul.f32 %v5469, %v5622
    %v5634 = vmul.f32 %v5471, %v5626
    %v5635 = vmul.f32 %v5473, %v5622
    %v5636 = vmul.f32 %v5475, %v5626
    %v5637 = vmul.f32 %v5479, %v5622
    %v5638 = vmul.f32 %v5481, %v5626
    %v5639 = vmul.f32 %v5483, %v5622
    %v5640 = vmul.f32 %v5485, %v5626
    %v5641 = vmul.f32 %v5489, %v5622
    %v5642 = vmul.f32 %v5491, %v5626
    %v5643 = vmul.f32 %v5493, %v5622
    %v5644 = vmul.f32 %v5495, %v5626
    %v5645 = vmul.f32 %v5499, %v5622
    %v5646 = vmul.f32 %v5501, %v5626
    %v5647 = vmul.f32 %v5503, %v5622
    %v5648 = vmul.f32 %v5505, %v5626
    %v5649 = vmul.f32 %v5509, %v5622
    %v5650 = vmul.f32 %v5511, %v5626
    %v5651 = vmul.f32 %v5513, %v5622
    %v5652 = vmul.f32 %v5515, %v5626
    %v5653 = vmul.f32 %v5519, %v5622
    %v5654 = vmul.f32 %v5521, %v5626
    %v5655 = vmul.f32 %v5523, %v5622
    %v5656 = vmul.f32 %v5525, %v5626
    %v5657 = vmul.f32 %v5529, %v5622
    %v5658 = vmul.f32 %v5531, %v5626
    %v5659 = vmul.f32 %v5533, %v5622
    %v5660 = vmul.f32 %v5535, %v5626
    %v5661 = vmul.f32 %v5539, %v5622
    %v5662 = vmul.f32 %v5541, %v5626
    %v5663 = vmul.f32 %v5543, %v5622
    %v5664 = vmul.f32 %v5545, %v5626
    %v5665 = vmul.f32 %v5549, %v5622
    %v5666 = vmul.f32 %v5551, %v5626
    %v5667 = vmul.f32 %v5553, %v5622
    %v5668 = vmul.f32 %v5555, %v5626
    %v5669 = vmul.f32 %v5559, %v5622
    %v5670 = vmul.f32 %v5561, %v5626
    %v5671 = vmul.f32 %v5563, %v5622
    %v5672 = vmul.f32 %v5565, %v5626
    %v5673 = vmul.f32 %v5569, %v5622
    %v5674 = vmul.f32 %v5571, %v5626
    %v5675 = vmul.f32 %v5573, %v5622
    %v5676 = vmul.f32 %v5575, %v5626
    %v5677 = vmul.f32 %v5579, %v5622
    %v5678 = vmul.f32 %v5581, %v5626
    %v5679 = vmul.f32 %v5583, %v5622
    %v5680 = vmul.f32 %v5585, %v5626
    %v5681 = vmul.f32 %v5589, %v5622
    %v5682 = vmul.f32 %v5591, %v5626
    %v5683 = vmul.f32 %v5593, %v5622
    %v5684 = vmul.f32 %v5595, %v5626
    %v5685 = vmul.f32 %v5599, %v5622
    %v5686 = vmul.f32 %v5601, %v5626
    %v5687 = vmul.f32 %v5603, %v5622
    %v5688 = vmul.f32 %v5605, %v5626
    %v5689 = vmul.f32 %v5609, %v5622
    %v5690 = vmul.f32 %v5611, %v5626
    %v5691 = vmul.f32 %v5613, %v5622
    %v5692 = vmul.f32 %v5615, %v5626
    %v5693 = vld [vmem:[%s12] sm:$0x3]
    %v5695 = vlaneseq
    %v5696 = vshrl.u32 %v5695, 7
    %v5697 = vsub.s32 0, %v5696
    %v5698 = vrot.slane %v5693, %v5697
    %v5699 = vlaneseq
    %v5700 = vshrl.u32 %v5699, 7
    %v5701 = vsub.s32 1, %v5700
    %v5702 = vrot.slane %v5693, %v5701
    %v5705 = vadd.f32 %v5629, %v5698
    %v5706 = vadd.f32 %v5630, %v5702
    %v5707 = vadd.f32 %v5631, %v5698
    %v5708 = vadd.f32 %v5632, %v5702
    %v5709 = vadd.f32 %v5633, %v5698
    %v5710 = vadd.f32 %v5634, %v5702
    %v5711 = vadd.f32 %v5635, %v5698
    %v5712 = vadd.f32 %v5636, %v5702
    %v5713 = vadd.f32 %v5637, %v5698
    %v5714 = vadd.f32 %v5638, %v5702
    %v5715 = vadd.f32 %v5639, %v5698
    %v5716 = vadd.f32 %v5640, %v5702
    %v5717 = vadd.f32 %v5641, %v5698
    %v5718 = vadd.f32 %v5642, %v5702
    %v5719 = vadd.f32 %v5643, %v5698
    %v5720 = vadd.f32 %v5644, %v5702
    %v5721 = vadd.f32 %v5645, %v5698
    %v5722 = vadd.f32 %v5646, %v5702
    %v5723 = vadd.f32 %v5647, %v5698
    %v5724 = vadd.f32 %v5648, %v5702
    %v5725 = vadd.f32 %v5649, %v5698
    %v5726 = vadd.f32 %v5650, %v5702
    %v5727 = vadd.f32 %v5651, %v5698
    %v5728 = vadd.f32 %v5652, %v5702
    %v5729 = vadd.f32 %v5653, %v5698
    %v5730 = vadd.f32 %v5654, %v5702
    %v5731 = vadd.f32 %v5655, %v5698
    %v5732 = vadd.f32 %v5656, %v5702
    %v5733 = vadd.f32 %v5657, %v5698
    %v5734 = vadd.f32 %v5658, %v5702
    %v5735 = vadd.f32 %v5659, %v5698
    %v5736 = vadd.f32 %v5660, %v5702
    %v5737 = vadd.f32 %v5661, %v5698
    %v5738 = vadd.f32 %v5662, %v5702
    %v5739 = vadd.f32 %v5663, %v5698
    %v5740 = vadd.f32 %v5664, %v5702
    %v5741 = vadd.f32 %v5665, %v5698
    %v5742 = vadd.f32 %v5666, %v5702
    %v5743 = vadd.f32 %v5667, %v5698
    %v5744 = vadd.f32 %v5668, %v5702
    %v5745 = vadd.f32 %v5669, %v5698
    %v5746 = vadd.f32 %v5670, %v5702
    %v5747 = vadd.f32 %v5671, %v5698
    %v5748 = vadd.f32 %v5672, %v5702
    %v5749 = vadd.f32 %v5673, %v5698
    %v5750 = vadd.f32 %v5674, %v5702
    %v5751 = vadd.f32 %v5675, %v5698
    %v5752 = vadd.f32 %v5676, %v5702
    %v5753 = vadd.f32 %v5677, %v5698
    %v5754 = vadd.f32 %v5678, %v5702
    %v5755 = vadd.f32 %v5679, %v5698
    %v5756 = vadd.f32 %v5680, %v5702
    %v5757 = vadd.f32 %v5681, %v5698
    %v5758 = vadd.f32 %v5682, %v5702
    %v5759 = vadd.f32 %v5683, %v5698
    %v5760 = vadd.f32 %v5684, %v5702
    %v5761 = vadd.f32 %v5685, %v5698
    %v5762 = vadd.f32 %v5686, %v5702
    %v5763 = vadd.f32 %v5687, %v5698
    %v5764 = vadd.f32 %v5688, %v5702
    %v5765 = vadd.f32 %v5689, %v5698
    %v5766 = vadd.f32 %v5690, %v5702
    %v5767 = vadd.f32 %v5691, %v5698
    %v5768 = vadd.f32 %v5692, %v5702
    %v5769 = vadd.f32 %v5168, %v5705
    %v5770 = vadd.f32 %v5169, %v5706
    %v5771 = vadd.f32 %v5170, %v5707
    %v5772 = vadd.f32 %v5171, %v5708
    %v5773 = vadd.f32 %v5172, %v5709
    %v5774 = vadd.f32 %v5173, %v5710
    %v5775 = vadd.f32 %v5174, %v5711
    %v5776 = vadd.f32 %v5175, %v5712
    %v5777 = vadd.f32 %v5176, %v5713
    %v5778 = vadd.f32 %v5177, %v5714
    %v5779 = vadd.f32 %v5178, %v5715
    %v5780 = vadd.f32 %v5179, %v5716
    %v5781 = vadd.f32 %v5180, %v5717
    %v5782 = vadd.f32 %v5181, %v5718
    %v5783 = vadd.f32 %v5182, %v5719
    %v5784 = vadd.f32 %v5183, %v5720
    %v5785 = vadd.f32 %v5184, %v5721
    %v5786 = vadd.f32 %v5185, %v5722
    %v5787 = vadd.f32 %v5186, %v5723
    %v5788 = vadd.f32 %v5187, %v5724
    %v5789 = vadd.f32 %v5188, %v5725
    %v5790 = vadd.f32 %v5189, %v5726
    %v5791 = vadd.f32 %v5190, %v5727
    %v5792 = vadd.f32 %v5191, %v5728
    %v5793 = vadd.f32 %v5192, %v5729
    %v5794 = vadd.f32 %v5193, %v5730
    %v5795 = vadd.f32 %v5194, %v5731
    %v5796 = vadd.f32 %v5195, %v5732
    %v5797 = vadd.f32 %v5196, %v5733
    %v5798 = vadd.f32 %v5197, %v5734
    %v5799 = vadd.f32 %v5198, %v5735
    %v5800 = vadd.f32 %v5199, %v5736
    %v5801 = vadd.f32 %v5200, %v5737
    %v5802 = vadd.f32 %v5201, %v5738
    %v5803 = vadd.f32 %v5202, %v5739
    %v5804 = vadd.f32 %v5203, %v5740
    %v5805 = vadd.f32 %v5204, %v5741
    %v5806 = vadd.f32 %v5205, %v5742
    %v5807 = vadd.f32 %v5206, %v5743
    %v5808 = vadd.f32 %v5207, %v5744
    %v5809 = vadd.f32 %v5208, %v5745
    %v5810 = vadd.f32 %v5209, %v5746
    %v5811 = vadd.f32 %v5210, %v5747
    %v5812 = vadd.f32 %v5211, %v5748
    %v5813 = vadd.f32 %v5212, %v5749
    %v5814 = vadd.f32 %v5213, %v5750
    %v5815 = vadd.f32 %v5214, %v5751
    %v5816 = vadd.f32 %v5215, %v5752
    %v5817 = vadd.f32 %v5216, %v5753
    %v5818 = vadd.f32 %v5217, %v5754
    %v5819 = vadd.f32 %v5218, %v5755
    %v5820 = vadd.f32 %v5219, %v5756
    %v5821 = vadd.f32 %v5220, %v5757
    %v5822 = vadd.f32 %v5221, %v5758
    %v5823 = vadd.f32 %v5222, %v5759
    %v5824 = vadd.f32 %v5223, %v5760
    %v5825 = vadd.f32 %v5224, %v5761
    %v5826 = vadd.f32 %v5225, %v5762
    %v5827 = vadd.f32 %v5226, %v5763
    %v5828 = vadd.f32 %v5227, %v5764
    %v5829 = vadd.f32 %v5228, %v5765
    %v5830 = vadd.f32 %v5229, %v5766
    %v5831 = vadd.f32 %v5230, %v5767
    %v5832 = vadd.f32 %v5231, %v5768
    %v5833 = vmax.f32 %v5769, 0.0
    %v5834 = vmax.f32 %v5770, 0.0
    %v5835 = vmax.f32 %v5771, 0.0
    %v5836 = vmax.f32 %v5772, 0.0
    %v5837 = vmax.f32 %v5773, 0.0
    %v5838 = vmax.f32 %v5774, 0.0
    %v5839 = vmax.f32 %v5775, 0.0
    %v5840 = vmax.f32 %v5776, 0.0
    %v5841 = vmax.f32 %v5777, 0.0
    %v5842 = vmax.f32 %v5778, 0.0
    %v5843 = vmax.f32 %v5779, 0.0
    %v5844 = vmax.f32 %v5780, 0.0
    %v5845 = vmax.f32 %v5781, 0.0
    %v5846 = vmax.f32 %v5782, 0.0
    %v5847 = vmax.f32 %v5783, 0.0
    %v5848 = vmax.f32 %v5784, 0.0
    %v5849 = vmax.f32 %v5785, 0.0
    %v5850 = vmax.f32 %v5786, 0.0
    %v5851 = vmax.f32 %v5787, 0.0
    %v5852 = vmax.f32 %v5788, 0.0
    %v5853 = vmax.f32 %v5789, 0.0
    %v5854 = vmax.f32 %v5790, 0.0
    %v5855 = vmax.f32 %v5791, 0.0
    %v5856 = vmax.f32 %v5792, 0.0
    %v5857 = vmax.f32 %v5793, 0.0
    %v5858 = vmax.f32 %v5794, 0.0
    %v5859 = vmax.f32 %v5795, 0.0
    %v5860 = vmax.f32 %v5796, 0.0
    %v5861 = vmax.f32 %v5797, 0.0
    %v5862 = vmax.f32 %v5798, 0.0
    %v5863 = vmax.f32 %v5799, 0.0
    %v5864 = vmax.f32 %v5800, 0.0
    %v5865 = vmax.f32 %v5801, 0.0
    %v5866 = vmax.f32 %v5802, 0.0
    %v5867 = vmax.f32 %v5803, 0.0
    %v5868 = vmax.f32 %v5804, 0.0
    %v5869 = vmax.f32 %v5805, 0.0
    %v5870 = vmax.f32 %v5806, 0.0
    %v5871 = vmax.f32 %v5807, 0.0
    %v5872 = vmax.f32 %v5808, 0.0
    %v5873 = vmax.f32 %v5809, 0.0
    %v5874 = vmax.f32 %v5810, 0.0
    %v5875 = vmax.f32 %v5811, 0.0
    %v5876 = vmax.f32 %v5812, 0.0
    %v5877 = vmax.f32 %v5813, 0.0
    %v5878 = vmax.f32 %v5814, 0.0
    %v5879 = vmax.f32 %v5815, 0.0
    %v5880 = vmax.f32 %v5816, 0.0
    %v5881 = vmax.f32 %v5817, 0.0
    %v5882 = vmax.f32 %v5818, 0.0
    %v5883 = vmax.f32 %v5819, 0.0
    %v5884 = vmax.f32 %v5820, 0.0
    %v5885 = vmax.f32 %v5821, 0.0
    %v5886 = vmax.f32 %v5822, 0.0
    %v5887 = vmax.f32 %v5823, 0.0
    %v5888 = vmax.f32 %v5824, 0.0
    %v5889 = vmax.f32 %v5825, 0.0
    %v5890 = vmax.f32 %v5826, 0.0
    %v5891 = vmax.f32 %v5827, 0.0
    %v5892 = vmax.f32 %v5828, 0.0
    %v5893 = vmax.f32 %v5829, 0.0
    %v5894 = vmax.f32 %v5830, 0.0
    %v5895 = vmax.f32 %v5831, 0.0
    %v5896 = vmax.f32 %v5832, 0.0
    %5897 = vst [vmem:[#allocation10] sm:$0xff] %v5833
    %5898 = vst [vmem:[#allocation10 + $0x8] sm:$0xff] %v5834
    %5899 = vst [vmem:[#allocation10 + $0x10] sm:$0xff] %v5835
    %5900 = vst [vmem:[#allocation10 + $0x18] sm:$0xff] %v5836
    %5901 = vst [vmem:[#allocation10 + $0x20] sm:$0xff] %v5837
    %5902 = vst [vmem:[#allocation10 + $0x28] sm:$0xff] %v5838
    %5903 = vst [vmem:[#allocation10 + $0x30] sm:$0xff] %v5839
    %5904 = vst [vmem:[#allocation10 + $0x38] sm:$0xff] %v5840
    %5905 = vst [vmem:[#allocation10 + $0x40] sm:$0xff] %v5841
    %5906 = vst [vmem:[#allocation10 + $0x48] sm:$0xff] %v5842
    %5907 = vst [vmem:[#allocation10 + $0x50] sm:$0xff] %v5843
    %5908 = vst [vmem:[#allocation10 + $0x58] sm:$0xff] %v5844
    %5909 = vst [vmem:[#allocation10 + $0x60] sm:$0xff] %v5845
    %5910 = vst [vmem:[#allocation10 + $0x68] sm:$0xff] %v5846
    %5911 = vst [vmem:[#allocation10 + $0x70] sm:$0xff] %v5847
    %5912 = vst [vmem:[#allocation10 + $0x78] sm:$0xff] %v5848
    %5913 = vst [vmem:[#allocation10 + $0x80] sm:$0xff] %v5849
    %5914 = vst [vmem:[#allocation10 + $0x88] sm:$0xff] %v5850
    %5915 = vst [vmem:[#allocation10 + $0x90] sm:$0xff] %v5851
    %5916 = vst [vmem:[#allocation10 + $0x98] sm:$0xff] %v5852
    %5917 = vst [vmem:[#allocation10 + $0xa0] sm:$0xff] %v5853
    %5918 = vst [vmem:[#allocation10 + $0xa8] sm:$0xff] %v5854
    %5919 = vst [vmem:[#allocation10 + $0xb0] sm:$0xff] %v5855
    %5920 = vst [vmem:[#allocation10 + $0xb8] sm:$0xff] %v5856
    %5921 = vst [vmem:[#allocation10 + $0xc0] sm:$0xff] %v5857
    %5922 = vst [vmem:[#allocation10 + $0xc8] sm:$0xff] %v5858
    %5923 = vst [vmem:[#allocation10 + $0xd0] sm:$0xff] %v5859
    %5924 = vst [vmem:[#allocation10 + $0xd8] sm:$0xff] %v5860
    %5925 = vst [vmem:[#allocation10 + $0xe0] sm:$0xff] %v5861
    %5926 = vst [vmem:[#allocation10 + $0xe8] sm:$0xff] %v5862
    %5927 = vst [vmem:[#allocation10 + $0xf0] sm:$0xff] %v5863
    %5928 = vst [vmem:[#allocation10 + $0xf8] sm:$0xff] %v5864
    %5929 = vst [vmem:[#allocation10 + $0x100] sm:$0xff] %v5865
    %5930 = vst [vmem:[#allocation10 + $0x108] sm:$0xff] %v5866
    %5931 = vst [vmem:[#allocation10 + $0x110] sm:$0xff] %v5867
    %5932 = vst [vmem:[#allocation10 + $0x118] sm:$0xff] %v5868
    %5933 = vst [vmem:[#allocation10 + $0x120] sm:$0xff] %v5869
    %5934 = vst [vmem:[#allocation10 + $0x128] sm:$0xff] %v5870
    %5935 = vst [vmem:[#allocation10 + $0x130] sm:$0xff] %v5871
    %5936 = vst [vmem:[#allocation10 + $0x138] sm:$0xff] %v5872
    %5937 = vst [vmem:[#allocation10 + $0x140] sm:$0xff] %v5873
    %5938 = vst [vmem:[#allocation10 + $0x148] sm:$0xff] %v5874
    %5939 = vst [vmem:[#allocation10 + $0x150] sm:$0xff] %v5875
    %5940 = vst [vmem:[#allocation10 + $0x158] sm:$0xff] %v5876
    %5941 = vst [vmem:[#allocation10 + $0x160] sm:$0xff] %v5877
    %5942 = vst [vmem:[#allocation10 + $0x168] sm:$0xff] %v5878
    %5943 = vst [vmem:[#allocation10 + $0x170] sm:$0xff] %v5879
    %5944 = vst [vmem:[#allocation10 + $0x178] sm:$0xff] %v5880
    %5945 = vst [vmem:[#allocation10 + $0x180] sm:$0xff] %v5881
    %5946 = vst [vmem:[#allocation10 + $0x188] sm:$0xff] %v5882
    %5947 = vst [vmem:[#allocation10 + $0x190] sm:$0xff] %v5883
    %5948 = vst [vmem:[#allocation10 + $0x198] sm:$0xff] %v5884
    %5949 = vst [vmem:[#allocation10 + $0x1a0] sm:$0xff] %v5885
    %5950 = vst [vmem:[#allocation10 + $0x1a8] sm:$0xff] %v5886
    %5951 = vst [vmem:[#allocation10 + $0x1b0] sm:$0xff] %v5887
    %5952 = vst [vmem:[#allocation10 + $0x1b8] sm:$0xff] %v5888
    %5953 = vst [vmem:[#allocation10 + $0x1c0] sm:$0xff] %v5889
    %5954 = vst [vmem:[#allocation10 + $0x1c8] sm:$0xff] %v5890
    %5955 = vst [vmem:[#allocation10 + $0x1d0] sm:$0xff] %v5891
    %5956 = vst [vmem:[#allocation10 + $0x1d8] sm:$0xff] %v5892
    %5957 = vst [vmem:[#allocation10 + $0x1e0] sm:$0xff] %v5893
    %5958 = vst [vmem:[#allocation10 + $0x1e8] sm:$0xff] %v5894
    %5959 = vst [vmem:[#allocation10 + $0x1f0] sm:$0xff] %v5895
    %5960 = vst [vmem:[#allocation10 + $0x1f8] sm:$0xff] %v5896
    // Predicated region
    $region66: #{tpu_custom_call.1} parent=1 // pred_check
      _
    $region67: #{tpu_custom_call.1} parent=1 // pred_check_branch
      %5962 = sbr.rel (0) target = $region69
    $region68: #{tpu_custom_call.1} parent=1 // pred_region
      %s5964 = ssub.s32 8192, 8192
      %5965 = vsyncadd [#allocation6], %s5964
      %s5966 = sshll.u32 [#allocation10], 4
      %s5967 = int_to_ptr.vmem [resolvable:$true] %s5966
      %5972 = dma.vmem_to_hbm [thread:$0]  %s5967, 8192, %s13, [#allocation6], 256, 256, 16
    $region69: #{tpu_custom_call.1} parent=1 // pred_fallthru
      _
    // Predicated region
    $region70: #{tpu_custom_call.1} parent=1 // pred_check
      _
    $region71: #{tpu_custom_call.1} parent=1 // pred_check_branch
      %5974 = sbr.rel (0) target = $region73
    $region72: #{tpu_custom_call.1} parent=1 // pred_region
      %5975 = dma.done [#allocation6], 8192
    $region73: #{tpu_custom_call.1} parent=1 // pred_fallthru
      _
    %5976 = vsyncpa [#allocation5], 1
    %5977 = vsyncpa [#allocation8], 1
    %5978 = vsyncpa [#allocation6], 1

</llo_original>
